<compile_context>
chip_gen: v6e
topology: v6e:2x2x1
jax: 0.10.0
libtpu: 0.0.40
codegen_flags: <defaults>
</compile_context>

<pallas_src>
import jax
import jax.numpy as jnp
from jax.experimental import pallas as pl
from jax.experimental.pallas import tpu as pltpu

# ---------------------------------------------------------------------------
# dimensions
# ---------------------------------------------------------------------------
B = 2            # batch
H = W = 16       # spatial (small demo size)
HW = H * W
C_IN = 14        # 2 (flow) + 3 (lidar1) + 3 (lidar2) + 3 (img1) + 3 (img2)
C_STEM = 64      # pose-net stem channels
D_FEAT = 1024    # decoder_output dim (pose_net out_dim)
D_HID = 2048     # head hidden dim
D_ROT = 4        # quaternion
D_TRN = 3        # translation
NUM_HEADS = 2    # rotation, translation (stacked)
OUT_W = 8        # narrow padded output width (covers max(D_ROT, D_TRN))
TN = 512         # head hidden-dim tile (streamed)


# ---------------------------------------------------------------------------
# fused kernel
#   grid = (head, D_HID // TN)   head: "parallel", hidden tile: "arbitrary"
#   k == 0 prologue (per head, needed per-core for megacore correctness):
#     h1     = relu( x[B*HW, 14] @ W1[14, 64] + b1 )        (1x1 conv as matmul)
#     pooled = pool_mat[B, B*HW] @ h1                       (avg pool via MXU)
#     dec    = pooled @ W2[64, 1024] + b2                   -> bf16 VMEM scratch
#     acc    = 0
#   every k (streamed bf16 head tile, f32 MXU accumulation):
#     hk   = relu( dec @ Wh1[:, kTN:(k+1)TN] + bh1_k )
#     acc += hk @ Wh2[kTN:(k+1)TN, :OUT_W]
#   k == last:
#     out[head] = acc + bh2
# ---------------------------------------------------------------------------
def volnet_kernel(x_ref, pool_ref, w1_ref, b1_ref, w2_ref, b2_ref,
                  wh1_ref, bh1_ref, wh2_ref, bh2_ref,
                  out_ref, dec_sc, acc_sc):
    k = pl.program_id(1)

    @pl.when(k == 0)
    def _():
        x = x_ref[...]                                                 # (B*HW, C_IN)
        h1 = jnp.maximum(
            jnp.dot(x, w1_ref[...], preferred_element_type=jnp.float32)
            + b1_ref[...], 0.0)                                        # (B*HW, C_STEM)
        pooled = jnp.dot(pool_ref[...], h1,
                         preferred_element_type=jnp.float32)           # (B, C_STEM)
        dec = (jnp.dot(pooled, w2_ref[...],
                       preferred_element_type=jnp.float32)
               + b2_ref[...])                                          # (B, D_FEAT)
        dec_sc[...] = dec.astype(jnp.bfloat16)
        acc_sc[...] = jnp.zeros_like(acc_sc)

    hk = jnp.maximum(
        jnp.dot(dec_sc[...], wh1_ref[0],
                preferred_element_type=jnp.float32) + bh1_ref[0], 0.0)  # (B, TN)
    acc_sc[...] += jnp.dot(hk.astype(jnp.bfloat16), wh2_ref[0],
                           preferred_element_type=jnp.float32)          # (B, OUT_W)

    @pl.when(k == pl.num_programs(1) - 1)
    def _():
        out_ref[0] = acc_sc[...] + bh2_ref[0]


def volnet_pallas(fused_flat, pool_mat, w1, b1, w2, b2, wh1, bh1, wh2, bh2):
    n_rows = fused_flat.shape[0]                                       # B*HW
    return pl.pallas_call(
        volnet_kernel,
        out_shape=jax.ShapeDtypeStruct((NUM_HEADS, B, OUT_W), jnp.float32),
        grid=(NUM_HEADS, D_HID // TN),
        in_specs=[
            pl.BlockSpec((n_rows, C_IN), lambda hd, k: (0, 0)),        # fused_flat
            pl.BlockSpec((B, n_rows), lambda hd, k: (0, 0)),           # pool_mat
            pl.BlockSpec((C_IN, C_STEM), lambda hd, k: (0, 0)),        # w1
            pl.BlockSpec((1, C_STEM), lambda hd, k: (0, 0)),           # b1
            pl.BlockSpec((C_STEM, D_FEAT), lambda hd, k: (0, 0)),      # w2
            pl.BlockSpec((1, D_FEAT), lambda hd, k: (0, 0)),           # b2
            pl.BlockSpec((1, D_FEAT, TN), lambda hd, k: (hd, 0, k)),   # wh1 (bf16)
            pl.BlockSpec((1, 1, TN), lambda hd, k: (hd, 0, k)),        # bh1
            pl.BlockSpec((1, TN, OUT_W), lambda hd, k: (hd, k, 0)),    # wh2 (bf16)
            pl.BlockSpec((1, 1, OUT_W), lambda hd, k: (hd, 0, 0)),     # bh2
        ],
        out_specs=pl.BlockSpec((1, B, OUT_W), lambda hd, k: (hd, 0, 0)),
        scratch_shapes=[pltpu.VMEM((B, D_FEAT), jnp.bfloat16),
                        pltpu.VMEM((B, OUT_W), jnp.float32)],
        compiler_params=pltpu.CompilerParams(
            dimension_semantics=("parallel", "arbitrary")),
    )(fused_flat, pool_mat, w1, b1, w2, b2, wh1, bh1, wh2, bh2)


# ---------------------------------------------------------------------------
# forward wrapper (matches the PyTorch module's data flow)
# ---------------------------------------------------------------------------
def vol_net_forward(x, params, return_flow=False):
    """x: dict with 'images' (B,2,3,H,W), 'pointmaps' (B,2,3,H,W),
    'flows' (B,1,2,H,W) — NCHW, matching the PyTorch module."""
    img1 = x['images'][:, 0]
    img2 = x['images'][:, 1]
    lidar1 = x['pointmaps'][:, 0]
    lidar2 = x['pointmaps'][:, 1]
    flow = jnp.squeeze(x['flows'], axis=1)                              # (B, 2, H, W)

    # torch.cat([flow, lidar1, lidar2], 1) then cat with [img1, img2] on dim 1
    fused = jnp.concatenate([flow, lidar1, lidar2, img1, img2], axis=1)  # (B,14,H,W)

    # NCHW -> NHWC -> (B*H*W, C) so the 1x1 conv is a single channel matmul
    b, c, h, w = fused.shape
    fused_flat = jnp.transpose(fused, (0, 2, 3, 1)).reshape(b * h * w, c)

    # per-batch average-pool as a matmul: (B, B*HW) block-diagonal 1/HW matrix
    pool_mat = jnp.repeat(jnp.eye(b, dtype=jnp.float32), h * w, axis=1) / (h * w)

    # pack rotation+translation heads into one bf16 weight stream; the
    # second-layer weights/bias are padded only to OUT_W (=8) lanes.
    wh1 = jnp.stack([params['wr1'], params['wt1']]).astype(jnp.bfloat16)   # (2,1024,2048)
    bh1 = jnp.stack([params['br1'], params['bt1']])                        # (2,1,2048)
    wh2 = jnp.stack([
        jnp.pad(params['wr2'], ((0, 0), (0, OUT_W - D_ROT))),
        jnp.pad(params['wt2'], ((0, 0), (0, OUT_W - D_TRN))),
    ]).astype(jnp.bfloat16)                                                # (2,2048,8)
    bh2 = jnp.stack([
        jnp.pad(params['br2'], ((0, 0), (0, OUT_W - D_ROT))),
        jnp.pad(params['bt2'], ((0, 0), (0, OUT_W - D_TRN))),
    ])                                                                     # (2,1,8)

    out = volnet_pallas(fused_flat, pool_mat,
                        params['w1'], params['b1'], params['w2'], params['b2'],
                        wh1, bh1, wh2, bh2)                                # (2,B,8)

    result = {'rotation': out[0, :, :D_ROT], 'translation': out[1, :, :D_TRN]}
    if return_flow:
        result['flow'] = flow
    return result


# ---------------------------------------------------------------------------
# reference (plain jnp, same bf16 head numerics) for a sanity check
# ---------------------------------------------------------------------------
def ref_forward(x, params):
    img1 = x['images'][:, 0]; img2 = x['images'][:, 1]
    lidar1 = x['pointmaps'][:, 0]; lidar2 = x['pointmaps'][:, 1]
    flow = jnp.squeeze(x['flows'], axis=1)
    fused = jnp.concatenate([flow, lidar1, lidar2, img1, img2], axis=1)
    b, c, h, w = fused.shape
    xf = jnp.transpose(fused, (0, 2, 3, 1)).reshape(b, h * w, c)
    hdn = jnp.maximum(xf @ params['w1'] + params['b1'], 0.0)
    pooled = hdn.mean(axis=1)
    dec = pooled @ params['w2'] + params['b2'][0]
    d = dec.astype(jnp.bfloat16)

    def head(wa, ba, wb, bb):
        hh = jnp.maximum(
            jnp.dot(d, wa.astype(jnp.bfloat16),
                    preferred_element_type=jnp.float32) + ba[0], 0.0)
        return jnp.dot(hh.astype(jnp.bfloat16), wb.astype(jnp.bfloat16),
                       preferred_element_type=jnp.float32) + bb[0]

    rot = head(params['wr1'], params['br1'], params['wr2'], params['br2'])
    trn = head(params['wt1'], params['bt1'], params['wt2'], params['bt2'])
    return rot, trn


def make_params(key):
    ks = jax.random.split(key, 6)
    def lin(k, fan_in, shape):
        return jax.random.normal(k, shape, jnp.float32) / jnp.sqrt(fan_in)
    return {
        'w1': lin(ks[0], C_IN, (C_IN, C_STEM)),      'b1': jnp.zeros((1, C_STEM), jnp.float32),
        'w2': lin(ks[1], C_STEM, (C_STEM, D_FEAT)),  'b2': jnp.zeros((1, D_FEAT), jnp.float32),
        'wr1': lin(ks[2], D_FEAT, (D_FEAT, D_HID)),  'br1': jnp.zeros((1, D_HID), jnp.float32),
        'wr2': lin(ks[3], D_HID, (D_HID, D_ROT)),    'br2': jnp.zeros((1, D_ROT), jnp.float32),
        'wt1': lin(ks[4], D_FEAT, (D_FEAT, D_HID)),  'bt1': jnp.zeros((1, D_HID), jnp.float32),
        'wt2': lin(ks[5], D_HID, (D_HID, D_TRN)),    'bt2': jnp.zeros((1, D_TRN), jnp.float32),
    }


if __name__ == "__main__":
    key = jax.random.PRNGKey(0)
    k_img, k_pm, k_fl, k_par = jax.random.split(key, 4)

    x = {
        'images':    jax.random.normal(k_img, (B, 2, 3, H, W), jnp.float32),
        'pointmaps': jax.random.normal(k_pm,  (B, 2, 3, H, W), jnp.float32),
        'flows':     jax.random.normal(k_fl,  (B, 1, 2, H, W), jnp.float32),
    }
    params = make_params(k_par)

    out = vol_net_forward(x, params, return_flow=True)
    jax.block_until_ready(out)

    rot_ref, trn_ref = ref_forward(x, params)
    assert out['rotation'].shape == (B, D_ROT)
    assert out['translation'].shape == (B, D_TRN)
    assert out['flow'].shape == (B, 2, H, W)
    assert jnp.allclose(out['rotation'], rot_ref, atol=1e-2, rtol=1e-2)
    assert jnp.allclose(out['translation'], trn_ref, atol=1e-2, rtol=1e-2)

    print("KERNEL_OK")
</pallas_src>

<mosaic_0001>
module attributes {stable_mosaic.version = 11 : i64} {
  func.func @volnet_kernel(%arg0: i32, %arg1: i32, %arg2: memref<512x14xf32, #tpu.memory_space<vmem>>, %arg3: memref<2x512xf32, #tpu.memory_space<vmem>>, %arg4: memref<14x64xf32, #tpu.memory_space<vmem>>, %arg5: memref<1x64xf32, #tpu.memory_space<vmem>>, %arg6: memref<64x1024xf32, #tpu.memory_space<vmem>>, %arg7: memref<1x1024xf32, #tpu.memory_space<vmem>>, %arg8: memref<1x1024x512xbf16, #tpu.memory_space<vmem>>, %arg9: memref<1x1x512xf32, #tpu.memory_space<vmem>>, %arg10: memref<1x512x8xbf16, #tpu.memory_space<vmem>>, %arg11: memref<1x1x8xf32, #tpu.memory_space<vmem>>, %arg12: memref<1x2x8xf32, #tpu.memory_space<vmem>>, %arg13: memref<2x1024xbf16, #tpu.memory_space<vmem>>, %arg14: memref<2x8xf32, #tpu.memory_space<vmem>>) attributes {dimension_semantics = [#tpu.dimension_semantics<parallel>, #tpu.dimension_semantics<arbitrary>], iteration_bounds = array<i64: 2, 4>, scalar_prefetch = 0 : i64, scratch_operands = 2 : i64, tpu.core_type = #tpu.core_type<tc>, window_params = [{pipeline_mode = #tpu.pipeline_mode<synchronous>, transform_indices = @transform_0, window_bounds = array<i64: 512, 14>}, {pipeline_mode = #tpu.pipeline_mode<synchronous>, transform_indices = @transform_1, window_bounds = array<i64: 2, 512>}, {pipeline_mode = #tpu.pipeline_mode<synchronous>, transform_indices = @transform_2, window_bounds = array<i64: 14, 64>}, {pipeline_mode = #tpu.pipeline_mode<synchronous>, transform_indices = @transform_3, window_bounds = array<i64: 1, 64>}, {pipeline_mode = #tpu.pipeline_mode<synchronous>, transform_indices = @transform_4, window_bounds = array<i64: 64, 1024>}, {pipeline_mode = #tpu.pipeline_mode<synchronous>, transform_indices = @transform_5, window_bounds = array<i64: 1, 1024>}, {transform_indices = @transform_6, window_bounds = array<i64: 1, 1024, 512>}, {transform_indices = @transform_7, window_bounds = array<i64: 1, 1, 512>}, {transform_indices = @transform_8, window_bounds = array<i64: 1, 512, 8>}, {transform_indices = @transform_9, window_bounds = array<i64: 1, 1, 8>}, {transform_indices = @transform_10, window_bounds = array<i64: 1, 2, 8>}]} {
    %c0_i32 = arith.constant 0 : i32
    %0 = arith.cmpi eq, %arg1, %c0_i32 : i32
    %1 = arith.extui %0 : i1 to i32
    %c0_i32_0 = arith.constant 0 : i32
    %2 = arith.cmpi ne, %1, %c0_i32_0 : i32
    scf.if %2 {
      %c0_18 = arith.constant 0 : index
      %c0_19 = arith.constant 0 : index
      %23 = vector.load %arg2[%c0_18, %c0_19] : memref<512x14xf32, #tpu.memory_space<vmem>>, vector<512x14xf32>
      %c0_20 = arith.constant 0 : index
      %c0_21 = arith.constant 0 : index
      %24 = vector.load %arg4[%c0_20, %c0_21] : memref<14x64xf32, #tpu.memory_space<vmem>>, vector<14x64xf32>
      %cst_22 = arith.constant dense<0.000000e+00> : vector<512x64xf32>
      %25 = tpu.matmul %23, %24, %cst_22 {dimension_numbers = #tpu.dot_dimension_numbers<[1], [0], [0], [1], [0, 0, 1, 1], [], []>} : vector<512x14xf32>, vector<14x64xf32>, vector<512x64xf32> -> vector<512x64xf32>
      %c0_23 = arith.constant 0 : index
      %c0_24 = arith.constant 0 : index
      %26 = vector.load %arg5[%c0_23, %c0_24] : memref<1x64xf32, #tpu.memory_space<vmem>>, vector<1x64xf32>
      %27 = vector.broadcast %26 : vector<1x64xf32> to vector<512x64xf32>
      %28 = arith.addf %25, %27 : vector<512x64xf32>
      %cst_25 = arith.constant 0.000000e+00 : f32
      %29 = vector.broadcast %cst_25 : f32 to vector<512x64xf32>
      %30 = arith.maximumf %28, %29 : vector<512x64xf32>
      %c0_26 = arith.constant 0 : index
      %c0_27 = arith.constant 0 : index
      %31 = vector.load %arg3[%c0_26, %c0_27] : memref<2x512xf32, #tpu.memory_space<vmem>>, vector<2x512xf32>
      %cst_28 = arith.constant dense<0.000000e+00> : vector<2x64xf32>
      %32 = tpu.matmul %31, %30, %cst_28 {dimension_numbers = #tpu.dot_dimension_numbers<[1], [0], [0], [1], [0, 0, 1, 1], [], []>} : vector<2x512xf32>, vector<512x64xf32>, vector<2x64xf32> -> vector<2x64xf32>
      %c0_29 = arith.constant 0 : index
      %c0_30 = arith.constant 0 : index
      %33 = vector.load %arg6[%c0_29, %c0_30] : memref<64x1024xf32, #tpu.memory_space<vmem>>, vector<64x1024xf32>
      %cst_31 = arith.constant dense<0.000000e+00> : vector<2x1024xf32>
      %34 = tpu.matmul %32, %33, %cst_31 {dimension_numbers = #tpu.dot_dimension_numbers<[1], [0], [0], [1], [0, 0, 1, 1], [], []>} : vector<2x64xf32>, vector<64x1024xf32>, vector<2x1024xf32> -> vector<2x1024xf32>
      %c0_32 = arith.constant 0 : index
      %c0_33 = arith.constant 0 : index
      %35 = vector.load %arg7[%c0_32, %c0_33] : memref<1x1024xf32, #tpu.memory_space<vmem>>, vector<1x1024xf32>
      %36 = vector.broadcast %35 : vector<1x1024xf32> to vector<2x1024xf32>
      %37 = arith.addf %34, %36 : vector<2x1024xf32>
      %38 = arith.truncf %37 : vector<2x1024xf32> to vector<2x1024xbf16>
      %c0_34 = arith.constant 0 : index
      %c0_35 = arith.constant 0 : index
      %39 = vector.load %arg13[%c0_34, %c0_35] : memref<2x1024xbf16, #tpu.memory_space<vmem>>, vector<2x1024xbf16>
      tpu.vector_store %arg13[%c0_34, %c0_35], %38 {strides = array<i32>} : memref<2x1024xbf16, #tpu.memory_space<vmem>>, vector<2x1024xbf16>,
      %cst_36 = arith.constant 0.000000e+00 : f32
      %40 = vector.broadcast %cst_36 : f32 to vector<2x8xf32>
      %c0_37 = arith.constant 0 : index
      %c0_38 = arith.constant 0 : index
      %41 = vector.load %arg14[%c0_37, %c0_38] : memref<2x8xf32, #tpu.memory_space<vmem>>, vector<2x8xf32>
      tpu.vector_store %arg14[%c0_37, %c0_38], %40 {strides = array<i32>} : memref<2x8xf32, #tpu.memory_space<vmem>>, vector<2x8xf32>,
    } else {
    }
    %c0 = arith.constant 0 : index
    %c0_1 = arith.constant 0 : index
    %3 = vector.load %arg13[%c0, %c0_1] : memref<2x1024xbf16, #tpu.memory_space<vmem>>, vector<2x1024xbf16>
    %c0_2 = arith.constant 0 : index
    %c0_3 = arith.constant 0 : index
    %c0_4 = arith.constant 0 : index
    %4 = vector.load %arg8[%c0_2, %c0_3, %c0_4] : memref<1x1024x512xbf16, #tpu.memory_space<vmem>>, vector<1x1024x512xbf16>
    %5 = vector.shape_cast %4 : vector<1x1024x512xbf16> to vector<1024x512xbf16>
    %cst = arith.constant dense<0.000000e+00> : vector<2x512xf32>
    %6 = tpu.matmul %3, %5, %cst {dimension_numbers = #tpu.dot_dimension_numbers<[1], [0], [0], [1], [0, 0, 1, 1], [], []>} : vector<2x1024xbf16>, vector<1024x512xbf16>, vector<2x512xf32> -> vector<2x512xf32>
    %c0_5 = arith.constant 0 : index
    %c0_6 = arith.constant 0 : index
    %c0_7 = arith.constant 0 : index
    %7 = vector.load %arg9[%c0_5, %c0_6, %c0_7] : memref<1x1x512xf32, #tpu.memory_space<vmem>>, vector<1x1x512xf32>
    %8 = vector.shape_cast %7 : vector<1x1x512xf32> to vector<1x512xf32>
    %9 = vector.broadcast %8 : vector<1x512xf32> to vector<2x512xf32>
    %10 = arith.addf %6, %9 : vector<2x512xf32>
    %cst_8 = arith.constant 0.000000e+00 : f32
    %11 = vector.broadcast %cst_8 : f32 to vector<2x512xf32>
    %12 = arith.maximumf %10, %11 : vector<2x512xf32>
    %c0_9 = arith.constant 0 : index
    %c0_10 = arith.constant 0 : index
    %13 = vector.load %arg14[%c0_9, %c0_10] : memref<2x8xf32, #tpu.memory_space<vmem>>, vector<2x8xf32>
    %14 = arith.truncf %12 : vector<2x512xf32> to vector<2x512xbf16>
    %c0_11 = arith.constant 0 : index
    %c0_12 = arith.constant 0 : index
    %c0_13 = arith.constant 0 : index
    %15 = vector.load %arg10[%c0_11, %c0_12, %c0_13] : memref<1x512x8xbf16, #tpu.memory_space<vmem>>, vector<1x512x8xbf16>
    %16 = vector.shape_cast %15 : vector<1x512x8xbf16> to vector<512x8xbf16>
    %cst_14 = arith.constant dense<0.000000e+00> : vector<2x8xf32>
    %17 = tpu.matmul %14, %16, %cst_14 {dimension_numbers = #tpu.dot_dimension_numbers<[1], [0], [0], [1], [0, 0, 1, 1], [], []>} : vector<2x512xbf16>, vector<512x8xbf16>, vector<2x8xf32> -> vector<2x8xf32>
    %18 = arith.addf %13, %17 : vector<2x8xf32>
    %c0_15 = arith.constant 0 : index
    %c0_16 = arith.constant 0 : index
    %19 = vector.load %arg14[%c0_15, %c0_16] : memref<2x8xf32, #tpu.memory_space<vmem>>, vector<2x8xf32>
    tpu.vector_store %arg14[%c0_15, %c0_16], %18 {strides = array<i32>} : memref<2x8xf32, #tpu.memory_space<vmem>>, vector<2x8xf32>,
    %c3_i32 = arith.constant 3 : i32
    %20 = arith.cmpi eq, %arg1, %c3_i32 : i32
    %21 = arith.extui %20 : i1 to i32
    %c0_i32_17 = arith.constant 0 : i32
    %22 = arith.cmpi ne, %21, %c0_i32_17 : i32
    scf.if %22 {
      %c0_18 = arith.constant 0 : index
      %c0_19 = arith.constant 0 : index
      %23 = vector.load %arg14[%c0_18, %c0_19] : memref<2x8xf32, #tpu.memory_space<vmem>>, vector<2x8xf32>
      %c0_20 = arith.constant 0 : index
      %c0_21 = arith.constant 0 : index
      %c0_22 = arith.constant 0 : index
      %24 = vector.load %arg11[%c0_20, %c0_21, %c0_22] : memref<1x1x8xf32, #tpu.memory_space<vmem>>, vector<1x1x8xf32>
      %25 = vector.shape_cast %24 : vector<1x1x8xf32> to vector<1x8xf32>
      %26 = vector.broadcast %25 : vector<1x8xf32> to vector<2x8xf32>
      %27 = arith.addf %23, %26 : vector<2x8xf32>
      %c0_23 = arith.constant 0 : index
      %c0_24 = arith.constant 0 : index
      %c0_25 = arith.constant 0 : index
      %28 = vector.load %arg12[%c0_23, %c0_24, %c0_25] : memref<1x2x8xf32, #tpu.memory_space<vmem>>, vector<1x2x8xf32>
      %29 = vector.shape_cast %28 : vector<1x2x8xf32> to vector<2x8xf32>
      %30 = vector.shape_cast %27 : vector<2x8xf32> to vector<1x2x8xf32>
      tpu.vector_store %arg12[%c0_23, %c0_24, %c0_25], %30 {strides = array<i32>} : memref<1x2x8xf32, #tpu.memory_space<vmem>>, vector<1x2x8xf32>,
    } else {
    }
    return
  }
  func.func @transform_0(%arg0: i32, %arg1: i32) -> (i32, i32) {
    %c0_i32 = arith.constant 0 : i32
    %c0_i32_0 = arith.constant 0 : i32
    %c0_i32_1 = arith.constant 0 : i32
    return %c0_i32, %c0_i32_0 : i32, i32
  }
  func.func @transform_1(%arg0: i32, %arg1: i32) -> (i32, i32) {
    %c0_i32 = arith.constant 0 : i32
    %c0_i32_0 = arith.constant 0 : i32
    %c0_i32_1 = arith.constant 0 : i32
    return %c0_i32, %c0_i32_0 : i32, i32
  }
  func.func @transform_2(%arg0: i32, %arg1: i32) -> (i32, i32) {
    %c0_i32 = arith.constant 0 : i32
    %c0_i32_0 = arith.constant 0 : i32
    %c0_i32_1 = arith.constant 0 : i32
    return %c0_i32, %c0_i32_0 : i32, i32
  }
  func.func @transform_3(%arg0: i32, %arg1: i32) -> (i32, i32) {
    %c0_i32 = arith.constant 0 : i32
    %c0_i32_0 = arith.constant 0 : i32
    %c0_i32_1 = arith.constant 0 : i32
    return %c0_i32, %c0_i32_0 : i32, i32
  }
  func.func @transform_4(%arg0: i32, %arg1: i32) -> (i32, i32) {
    %c0_i32 = arith.constant 0 : i32
    %c0_i32_0 = arith.constant 0 : i32
    %c0_i32_1 = arith.constant 0 : i32
    return %c0_i32, %c0_i32_0 : i32, i32
  }
  func.func @transform_5(%arg0: i32, %arg1: i32) -> (i32, i32) {
    %c0_i32 = arith.constant 0 : i32
    %c0_i32_0 = arith.constant 0 : i32
    %c0_i32_1 = arith.constant 0 : i32
    return %c0_i32, %c0_i32_0 : i32, i32
  }
  func.func @transform_6(%arg0: i32, %arg1: i32) -> (i32, i32, i32) {
    %c0_i32 = arith.constant 0 : i32
    %c0_i32_0 = arith.constant 0 : i32
    return %arg0, %c0_i32, %arg1 : i32, i32, i32
  }
  func.func @transform_7(%arg0: i32, %arg1: i32) -> (i32, i32, i32) {
    %c0_i32 = arith.constant 0 : i32
    %c0_i32_0 = arith.constant 0 : i32
    return %arg0, %c0_i32, %arg1 : i32, i32, i32
  }
  func.func @transform_8(%arg0: i32, %arg1: i32) -> (i32, i32, i32) {
    %c0_i32 = arith.constant 0 : i32
    %c0_i32_0 = arith.constant 0 : i32
    return %arg0, %arg1, %c0_i32 : i32, i32, i32
  }
  func.func @transform_9(%arg0: i32, %arg1: i32) -> (i32, i32, i32) {
    %c0_i32 = arith.constant 0 : i32
    %c0_i32_0 = arith.constant 0 : i32
    %c0_i32_1 = arith.constant 0 : i32
    return %arg0, %c0_i32, %c0_i32_0 : i32, i32, i32
  }
  func.func @transform_10(%arg0: i32, %arg1: i32) -> (i32, i32, i32) {
    %c0_i32 = arith.constant 0 : i32
    %c0_i32_0 = arith.constant 0 : i32
    %c0_i32_1 = arith.constant 0 : i32
    return %arg0, %c0_i32, %c0_i32_0 : i32, i32, i32
  }
}

</mosaic_0001>

<llo_original>
// kernel: tpu_custom_call.1
$region0: #{tpu_custom_call.1}
  #allocation0 [shape = 'u32[]', space=smem, size = 0x4, offset = 0x4, fixed_abs, tag = 'smem constant byte address 0x4 - core index']
  #allocation1 [shape = 'u32[144,128]{1,0:T(1,128)}', space=vmem, size = 0x12000, scoped, tag = 'internal scratch']
  #allocation2 [shape = 'bf16[2,1024]{1,0:T(2,128)(2,1)}', space=vmem, size = 0x1000, scoped, tag = 'scratch operand']
  #allocation3 [shape = 'f32[2,8]{1,0:T(2,128)}', space=vmem, size = 0x400, scoped, tag = 'scratch operand']
  %s0 = inlined_call_operand.vmem [shape: f32[512,14], index: 0, kind: input, shape index: {}]
  %s1 = inlined_call_operand.hbm [shape: f32[2,512], index: 1, kind: input, shape index: {}]
  %s2 = inlined_call_operand.hbm [shape: f32[14,64], index: 2, kind: input, shape index: {}]
  %s3 = inlined_call_operand.hbm [shape: f32[1,64], index: 3, kind: input, shape index: {}]
  %s4 = inlined_call_operand.hbm [shape: f32[64,1024], index: 4, kind: input, shape index: {}]
  %s5 = inlined_call_operand.hbm [shape: f32[1,1024], index: 5, kind: input, shape index: {}]
  %s6 = inlined_call_operand.hbm [shape: bf16[2,1024,2048], index: 6, kind: input, shape index: {}]
  %s7 = inlined_call_operand.hbm [shape: f32[2,1,2048], index: 7, kind: input, shape index: {}]
  %s8 = inlined_call_operand.vmem [shape: bf16[2,2048,8], index: 8, kind: input, shape index: {}]
  %s9 = inlined_call_operand.hbm [shape: f32[2,1,8], index: 9, kind: input, shape index: {}]
  %s10 = inlined_call_operand.hbm [shape: f32[2,2,8], index: 10, kind: output, shape index: {}]
  %s11 = sld [smem:[#allocation0]]
  $region113: #{tpu_custom_call.1} parent=0
    _
  %s13 = ssub.s32 1, %s11
  %s14 = scalar_select 0, %s13, %s11
  $region1: #{tpu_custom_call.1} parent=0
    #allocation4 [shape = 'u8[4096]{0}', space=vmem, size = 0x1000, scoped, tag = 'input window, operand 1, single buffered']
    #allocation5 [shape = 's32[2]{0}', space=sflag, size = 0x8, scoped, tag = 'scoped memory for tpu_custom_call.1']
    #allocation6 [shape = 's32[2]{0}', space=sflag, size = 0x8, scoped, tag = 'scoped memory for tpu_custom_call.1']
    #allocation7 [shape = 'u8[8192]{0}', space=vmem, size = 0x2000, scoped, tag = 'input window, operand 2, single buffered']
    #allocation8 [shape = 's32[1]{0}', space=sflag, size = 0x4, scoped, tag = 'scoped memory for tpu_custom_call.1']
    #allocation9 [shape = 'u8[512]{0}', space=vmem, size = 0x400, scoped, tag = 'input window, operand 3, single buffered']
    #allocation10 [shape = 'u8[262144]{0}', space=vmem, size = 0x40000, scoped, tag = 'input window, operand 4, single buffered']
    #allocation11 [shape = 's32[1]{0}', space=sflag, size = 0x4, scoped, tag = 'scoped memory for tpu_custom_call.1']
    #allocation12 [shape = 'u8[4096]{0}', space=vmem, size = 0x1000, scoped, tag = 'input window, operand 5, single buffered']
    #allocation13 [shape = 'u8[2097152]{0}', space=vmem, size = 0x200000, scoped, tag = 'input window, operand 6']
    #allocation14 [shape = 's32[2]{0}', space=sflag, size = 0x8, scoped, tag = 'scoped memory for tpu_custom_call.1']
    #allocation15 [shape = 'u8[4096]{0}', space=vmem, size = 0x1000, scoped, tag = 'input window, operand 7']
    #allocation16 [shape = 'u8[1024]{0}', space=vmem, size = 0x400, scoped, tag = 'input window, operand 9']
    #allocation17 [shape = 's32[2]{0}', space=sflag, size = 0x8, scoped, tag = 'scoped memory for tpu_custom_call.1']
    #allocation18 [shape = 'u8[2048]{0}', space=vmem, size = 0x800, scoped, tag = 'output window, operand 0']
    %15 = vsyncpa [#allocation5], 0
    %16 = vsyncpa [#allocation8], 0
    %17 = vsyncpa [#allocation11], 0
    %18 = vsyncpa [#allocation14], 0
    %s19 = scalar_lea.sflag [#allocation14], 1
    %20 = vsyncpa %s19, 0
    %21 = vsyncpa [#allocation17], 0
    %s22 = scalar_lea.sflag [#allocation17], 1
    %23 = vsyncpa %s22, 0
    %24 = vsyncpa [#allocation6], 0
    %s25 = scalar_lea.sflag [#allocation6], 1
    %26 = vsyncpa %s25, 0
    loop: start=0, step=1, limit=10
    $region2: #{tpu_custom_call.1} parent=1 // loop_pre_header
      _
    $region3: #{tpu_custom_call.1} parent=1 // loop_header
      %s28 = sphi 0, %s32
      %p29 = scmp.ge.s32.totalorder %s28, 10
      %s35 = sphi 0, %s47
      %s36 = sphi 0, %s43
      %s37 = sphi 0, %s35
      %s38 = sphi 0, %s36
      %s39 = sphi 0, %s37
      %s40 = sphi 0, %s38
      %s48 = sphi 0, %s48
      %s50 = sphi 0, %s48
      %s51 = sphi 0, %s50
      %s65 = sphi 0, %s51
      %s69 = sphi 0, %s69
      %s71 = sphi 0, %s69
      %s72 = sphi 0, %s71
      %s86 = sphi 0, %s72
      %s90 = sphi 0, %s90
      %s92 = sphi 0, %s90
      %s93 = sphi 0, %s92
      %s107 = sphi 0, %s93
      %s111 = sphi 0, %s111
      %s113 = sphi 0, %s111
      %s114 = sphi 0, %s113
      %s128 = sphi 0, %s114
      %s132 = sphi 0, %s132
      %s134 = sphi 0, %s132
      %s135 = sphi 0, %s134
      %s149 = sphi 0, %s135
      %s153 = sphi 0, %s153
      %s155 = sphi 0, %s153
      %s156 = sphi 0, %s155
      %s170 = sphi 0, %s156
      %s178 = sphi 0, %s180
      %s181 = sphi 0, %s178
      %s182 = sphi 0, %s181
      %s198 = sphi 0, %s182
      %s206 = sphi 0, %s208
      %s209 = sphi 0, %s206
      %s210 = sphi 0, %s209
      %s226 = sphi 0, %s210
      %s234 = sphi 0, %s236
      %s237 = sphi 0, %s234
      %s238 = sphi 0, %s237
      %s254 = sphi 0, %s238
      %s260 = sphi 0, %s262
      %s263 = sphi 0, %s260
      %s264 = sphi 0, %s263
      %s280 = sphi 0, %s264
      %s286 = sphi 0, %s288
      %s289 = sphi 0, %s286
      %s290 = sphi 0, %s289
      %s306 = sphi 0, %s290
    $region4: #{tpu_custom_call.1} parent=1 // loop_header_branch
      %31 = sbr.rel (%p29) target = $region8
    $region5: #{tpu_custom_call.1} parent=1 // loop_body
      %s33 = ssub.s32 %s28, 1
      %s34 = ssub.s32 %s28, 2
      %s41 = sadd.s32 1, %s36
      %p42 = scmp.ge.s32.totalorder %s41, 4
      %s43 = scalar_select %p42, 0, %s41
      %s44 = sadd.s32 1, %s35
      %s45 = scalar_select %p42, %s44, %s35
      %p46 = scmp.ge.s32.totalorder %s45, 2
      %s47 = scalar_select %p46, 0, %s45
      %s49 = sadd.s32 %s48, 1
      %p52 = scmp.eq.s32.totalorder %s28, 7
      %p53 = scmp.ne.s32.totalorder %s48, %s50
      %p54 = scmp.eq.s32.totalorder %s28, 0
      %p55 = por %p53, %p54
      %p56 = scmp.ne.s32.totalorder %s48, %s50
      %p57 = scmp.eq.s32.totalorder %s33, 7
      %p58 = por %p56, %p57
      %p59 = scmp.ne.s32.totalorder %s50, %s51
      %p60 = scmp.eq.s32.totalorder %s33, 0
      %p61 = por %p59, %p60
      %p62 = scmp.ne.s32.totalorder %s50, %s51
      %p63 = scmp.eq.s32.totalorder %s34, 7
      %p64 = por %p62, %p63
      %p66 = scmp.ne.s32.totalorder %s51, %s65
      %p67 = scmp.eq.s32.totalorder %s34, 0
      %p68 = por %p66, %p67
      %s70 = sadd.s32 %s69, 1
      %p73 = scmp.eq.s32.totalorder %s28, 7
      %p74 = scmp.ne.s32.totalorder %s69, %s71
      %p75 = scmp.eq.s32.totalorder %s28, 0
      %p76 = por %p74, %p75
      %p77 = scmp.ne.s32.totalorder %s69, %s71
      %p78 = scmp.eq.s32.totalorder %s33, 7
      %p79 = por %p77, %p78
      %p80 = scmp.ne.s32.totalorder %s71, %s72
      %p81 = scmp.eq.s32.totalorder %s33, 0
      %p82 = por %p80, %p81
      %p83 = scmp.ne.s32.totalorder %s71, %s72
      %p84 = scmp.eq.s32.totalorder %s34, 7
      %p85 = por %p83, %p84
      %p87 = scmp.ne.s32.totalorder %s72, %s86
      %p88 = scmp.eq.s32.totalorder %s34, 0
      %p89 = por %p87, %p88
      %s91 = sadd.s32 %s90, 1
      %p94 = scmp.eq.s32.totalorder %s28, 7
      %p95 = scmp.ne.s32.totalorder %s90, %s92
      %p96 = scmp.eq.s32.totalorder %s28, 0
      %p97 = por %p95, %p96
      %p98 = scmp.ne.s32.totalorder %s90, %s92
      %p99 = scmp.eq.s32.totalorder %s33, 7
      %p100 = por %p98, %p99
      %p101 = scmp.ne.s32.totalorder %s92, %s93
      %p102 = scmp.eq.s32.totalorder %s33, 0
      %p103 = por %p101, %p102
      %p104 = scmp.ne.s32.totalorder %s92, %s93
      %p105 = scmp.eq.s32.totalorder %s34, 7
      %p106 = por %p104, %p105
      %p108 = scmp.ne.s32.totalorder %s93, %s107
      %p109 = scmp.eq.s32.totalorder %s34, 0
      %p110 = por %p108, %p109
      %s112 = sadd.s32 %s111, 1
      %p115 = scmp.eq.s32.totalorder %s28, 7
      %p116 = scmp.ne.s32.totalorder %s111, %s113
      %p117 = scmp.eq.s32.totalorder %s28, 0
      %p118 = por %p116, %p117
      %p119 = scmp.ne.s32.totalorder %s111, %s113
      %p120 = scmp.eq.s32.totalorder %s33, 7
      %p121 = por %p119, %p120
      %p122 = scmp.ne.s32.totalorder %s113, %s114
      %p123 = scmp.eq.s32.totalorder %s33, 0
      %p124 = por %p122, %p123
      %p125 = scmp.ne.s32.totalorder %s113, %s114
      %p126 = scmp.eq.s32.totalorder %s34, 7
      %p127 = por %p125, %p126
      %p129 = scmp.ne.s32.totalorder %s114, %s128
      %p130 = scmp.eq.s32.totalorder %s34, 0
      %p131 = por %p129, %p130
      %s133 = sadd.s32 %s132, 1
      %p136 = scmp.eq.s32.totalorder %s28, 7
      %p137 = scmp.ne.s32.totalorder %s132, %s134
      %p138 = scmp.eq.s32.totalorder %s28, 0
      %p139 = por %p137, %p138
      %p140 = scmp.ne.s32.totalorder %s132, %s134
      %p141 = scmp.eq.s32.totalorder %s33, 7
      %p142 = por %p140, %p141
      %p143 = scmp.ne.s32.totalorder %s134, %s135
      %p144 = scmp.eq.s32.totalorder %s33, 0
      %p145 = por %p143, %p144
      %p146 = scmp.ne.s32.totalorder %s134, %s135
      %p147 = scmp.eq.s32.totalorder %s34, 7
      %p148 = por %p146, %p147
      %p150 = scmp.ne.s32.totalorder %s135, %s149
      %p151 = scmp.eq.s32.totalorder %s34, 0
      %p152 = por %p150, %p151
      %s154 = sadd.s32 %s153, 1
      %p157 = scmp.eq.s32.totalorder %s28, 7
      %p158 = scmp.ne.s32.totalorder %s153, %s155
      %p159 = scmp.eq.s32.totalorder %s28, 0
      %p160 = por %p158, %p159
      %p161 = scmp.ne.s32.totalorder %s153, %s155
      %p162 = scmp.eq.s32.totalorder %s33, 7
      %p163 = por %p161, %p162
      %p164 = scmp.ne.s32.totalorder %s155, %s156
      %p165 = scmp.eq.s32.totalorder %s33, 0
      %p166 = por %p164, %p165
      %p167 = scmp.ne.s32.totalorder %s155, %s156
      %p168 = scmp.eq.s32.totalorder %s34, 7
      %p169 = por %p167, %p168
      %p171 = scmp.ne.s32.totalorder %s156, %s170
      %p172 = scmp.eq.s32.totalorder %s34, 0
      %p173 = por %p171, %p172
      %s174 = ssub.s32 %s35, %s47
      %s175 = ssub.s32 %s36, %s43
      %s176 = sor.u32 %s174, %s175
      %p177 = scmp.eq.s32.totalorder %s176, 0
      %s179 = sadd.s32 %s178, 1
      %s180 = scalar_select %p177, %s178, %s179
      %p183 = pneg %p177
      %p184 = scmp.eq.s32.totalorder %s28, 7
      %p185 = por %p183, %p184
      %p186 = scmp.ne.s32.totalorder %s178, %s181
      %p187 = scmp.eq.s32.totalorder %s28, 0
      %p188 = por %p186, %p187
      %p189 = scmp.ne.s32.totalorder %s178, %s181
      %p190 = scmp.eq.s32.totalorder %s33, 7
      %p191 = por %p189, %p190
      %p192 = scmp.ne.s32.totalorder %s181, %s182
      %p193 = scmp.eq.s32.totalorder %s33, 0
      %p194 = por %p192, %p193
      %p195 = scmp.ne.s32.totalorder %s181, %s182
      %p196 = scmp.eq.s32.totalorder %s34, 7
      %p197 = por %p195, %p196
      %p199 = scmp.ne.s32.totalorder %s182, %s198
      %p200 = scmp.eq.s32.totalorder %s34, 0
      %p201 = por %p199, %p200
      %s202 = ssub.s32 %s35, %s47
      %s203 = ssub.s32 %s36, %s43
      %s204 = sor.u32 %s202, %s203
      %p205 = scmp.eq.s32.totalorder %s204, 0
      %s207 = sadd.s32 %s206, 1
      %s208 = scalar_select %p205, %s206, %s207
      %p211 = pneg %p205
      %p212 = scmp.eq.s32.totalorder %s28, 7
      %p213 = por %p211, %p212
      %p214 = scmp.ne.s32.totalorder %s206, %s209
      %p215 = scmp.eq.s32.totalorder %s28, 0
      %p216 = por %p214, %p215
      %p217 = scmp.ne.s32.totalorder %s206, %s209
      %p218 = scmp.eq.s32.totalorder %s33, 7
      %p219 = por %p217, %p218
      %p220 = scmp.ne.s32.totalorder %s209, %s210
      %p221 = scmp.eq.s32.totalorder %s33, 0
      %p222 = por %p220, %p221
      %p223 = scmp.ne.s32.totalorder %s209, %s210
      %p224 = scmp.eq.s32.totalorder %s34, 7
      %p225 = por %p223, %p224
      %p227 = scmp.ne.s32.totalorder %s210, %s226
      %p228 = scmp.eq.s32.totalorder %s34, 0
      %p229 = por %p227, %p228
      %s230 = ssub.s32 %s35, %s47
      %s231 = ssub.s32 %s36, %s43
      %s232 = sor.u32 %s230, %s231
      %p233 = scmp.eq.s32.totalorder %s232, 0
      %s235 = sadd.s32 %s234, 1
      %s236 = scalar_select %p233, %s234, %s235
      %p239 = pneg %p233
      %p240 = scmp.eq.s32.totalorder %s28, 7
      %p241 = por %p239, %p240
      %p242 = scmp.ne.s32.totalorder %s234, %s237
      %p243 = scmp.eq.s32.totalorder %s28, 0
      %p244 = por %p242, %p243
      %p245 = scmp.ne.s32.totalorder %s234, %s237
      %p246 = scmp.eq.s32.totalorder %s33, 7
      %p247 = por %p245, %p246
      %p248 = scmp.ne.s32.totalorder %s237, %s238
      %p249 = scmp.eq.s32.totalorder %s33, 0
      %p250 = por %p248, %p249
      %p251 = scmp.ne.s32.totalorder %s237, %s238
      %p252 = scmp.eq.s32.totalorder %s34, 7
      %p253 = por %p251, %p252
      %p255 = scmp.ne.s32.totalorder %s238, %s254
      %p256 = scmp.eq.s32.totalorder %s34, 0
      %p257 = por %p255, %p256
      %s258 = ssub.s32 %s35, %s47
      %p259 = scmp.eq.s32.totalorder %s258, 0
      %s261 = sadd.s32 %s260, 1
      %s262 = scalar_select %p259, %s260, %s261
      %p265 = pneg %p259
      %p266 = scmp.eq.s32.totalorder %s28, 7
      %p267 = por %p265, %p266
      %p268 = scmp.ne.s32.totalorder %s260, %s263
      %p269 = scmp.eq.s32.totalorder %s28, 0
      %p270 = por %p268, %p269
      %p271 = scmp.ne.s32.totalorder %s260, %s263
      %p272 = scmp.eq.s32.totalorder %s33, 7
      %p273 = por %p271, %p272
      %p274 = scmp.ne.s32.totalorder %s263, %s264
      %p275 = scmp.eq.s32.totalorder %s33, 0
      %p276 = por %p274, %p275
      %p277 = scmp.ne.s32.totalorder %s263, %s264
      %p278 = scmp.eq.s32.totalorder %s34, 7
      %p279 = por %p277, %p278
      %p281 = scmp.ne.s32.totalorder %s264, %s280
      %p282 = scmp.eq.s32.totalorder %s34, 0
      %p283 = por %p281, %p282
      %s284 = ssub.s32 %s35, %s47
      %p285 = scmp.eq.s32.totalorder %s284, 0
      %s287 = sadd.s32 %s286, 1
      %s288 = scalar_select %p285, %s286, %s287
      %p291 = pneg %p285
      %p292 = scmp.eq.s32.totalorder %s28, 7
      %p293 = por %p291, %p292
      %p294 = scmp.ne.s32.totalorder %s286, %s289
      %p295 = scmp.eq.s32.totalorder %s28, 0
      %p296 = por %p294, %p295
      %p297 = scmp.ne.s32.totalorder %s286, %s289
      %p298 = scmp.eq.s32.totalorder %s33, 7
      %p299 = por %p297, %p298
      %p300 = scmp.ne.s32.totalorder %s289, %s290
      %p301 = scmp.eq.s32.totalorder %s33, 0
      %p302 = por %p300, %p301
      %p303 = scmp.ne.s32.totalorder %s289, %s290
      %p304 = scmp.eq.s32.totalorder %s34, 7
      %p305 = por %p303, %p304
      %p307 = scmp.ne.s32.totalorder %s290, %s306
      %p308 = scmp.eq.s32.totalorder %s34, 0
      %p309 = por %p307, %p308
      %p310 = scmp.le.s32.totalorder 1, %s28
      %p311 = scmp.lt.s32.totalorder %s28, 9
      %p312 = pnand %p310, %p311
      %p313 = pneg %p312
      // Predicated region
      $region9: #{tpu_custom_call.1} parent=5 // pred_check
        _
      $region10: #{tpu_custom_call.1} parent=5 // pred_check_branch
        %315 = sbr.rel (%p312) target = $region12
      $region11: #{tpu_custom_call.1} parent=5 // pred_region
        %s316 = ssub.s32 %s28, 1
        // Predicated region
        $region13: #{tpu_custom_call.1} parent=11 // pred_check
          %p317 = pneg %p61
        $region14: #{tpu_custom_call.1} parent=11 // pred_check_branch
          %319 = sbr.rel (%p317) target = $region16
        $region15: #{tpu_custom_call.1} parent=11 // pred_region
          _
        $region16: #{tpu_custom_call.1} parent=11 // pred_fallthru
          _
        // Predicated region
        $region17: #{tpu_custom_call.1} parent=11 // pred_check
          %p320 = pneg %p82
        $region18: #{tpu_custom_call.1} parent=11 // pred_check_branch
          %322 = sbr.rel (%p320) target = $region20
        $region19: #{tpu_custom_call.1} parent=11 // pred_region
          %s324 = ssub.s32 128, 128
          %325 = vsyncadd [#allocation5], %s324
          %s327 = sshll.u32 [#allocation4], 4
          %s328 = int_to_ptr.vmem [resolvable:$true] %s327
          %330 = dma.hbm_to_vmem [thread:$0]  %s1, 128, %s328, [#allocation5]
        $region20: #{tpu_custom_call.1} parent=11 // pred_fallthru
          _
        // Predicated region
        $region21: #{tpu_custom_call.1} parent=11 // pred_check
          %p331 = pneg %p103
        $region22: #{tpu_custom_call.1} parent=11 // pred_check_branch
          %333 = sbr.rel (%p331) target = $region24
        $region23: #{tpu_custom_call.1} parent=11 // pred_region
          %s335 = ssub.s32 256, 256
          %336 = vsyncadd [#allocation8], %s335
          %s337 = sshll.u32 [#allocation7], 4
          %s338 = int_to_ptr.vmem [resolvable:$true] %s337
          %343 = dma.hbm_to_vmem [thread:$0]  %s2, 256, %s338, [#allocation8], 128, 128, 8
        $region24: #{tpu_custom_call.1} parent=11 // pred_fallthru
          _
        // Predicated region
        $region25: #{tpu_custom_call.1} parent=11 // pred_check
          %p344 = pneg %p124
        $region26: #{tpu_custom_call.1} parent=11 // pred_check_branch
          %346 = sbr.rel (%p344) target = $region28
        $region27: #{tpu_custom_call.1} parent=11 // pred_region
          %s348 = ssub.s32 16, 16
          %349 = vsyncadd [#allocation8], %s348
          %s351 = sshll.u32 [#allocation9], 4
          %s352 = int_to_ptr.vmem [resolvable:$true] %s351
          %354 = dma.hbm_to_vmem [thread:$0]  %s3, 16, %s352, [#allocation8]
        $region28: #{tpu_custom_call.1} parent=11 // pred_fallthru
          _
        // Predicated region
        $region29: #{tpu_custom_call.1} parent=11 // pred_check
          %p355 = pneg %p145
        $region30: #{tpu_custom_call.1} parent=11 // pred_check_branch
          %357 = sbr.rel (%p355) target = $region32
        $region31: #{tpu_custom_call.1} parent=11 // pred_region
          %s359 = ssub.s32 8192, 8192
          %360 = vsyncadd [#allocation11], %s359
          %s361 = sshll.u32 [#allocation10], 4
          %s362 = int_to_ptr.vmem [resolvable:$true] %s361
          %367 = dma.hbm_to_vmem [thread:$0]  %s4, 8192, %s362, [#allocation11], 1024, 1024, 64
        $region32: #{tpu_custom_call.1} parent=11 // pred_fallthru
          _
        // Predicated region
        $region33: #{tpu_custom_call.1} parent=11 // pred_check
          %p368 = pneg %p166
        $region34: #{tpu_custom_call.1} parent=11 // pred_check_branch
          %370 = sbr.rel (%p368) target = $region36
        $region35: #{tpu_custom_call.1} parent=11 // pred_region
          %s372 = ssub.s32 128, 128
          %373 = vsyncadd [#allocation11], %s372
          %s375 = sshll.u32 [#allocation12], 4
          %s376 = int_to_ptr.vmem [resolvable:$true] %s375
          %378 = dma.hbm_to_vmem [thread:$0]  %s5, 128, %s376, [#allocation11]
        $region36: #{tpu_custom_call.1} parent=11 // pred_fallthru
          _
      $region12: #{tpu_custom_call.1} parent=5 // pred_fallthru
        _
      %p379 = scmp.lt.s32.totalorder %s28, 8
      // Predicated region
      $region37: #{tpu_custom_call.1} parent=5 // pred_check
        %p380 = pneg %p379
      $region38: #{tpu_custom_call.1} parent=5 // pred_check_branch
        %382 = sbr.rel (%p380) target = $region40
      $region39: #{tpu_custom_call.1} parent=5 // pred_region
        // Predicated region
        $region41: #{tpu_custom_call.1} parent=39 // pred_check
          %p383 = pneg %p188
        $region42: #{tpu_custom_call.1} parent=39 // pred_check_branch
          %385 = sbr.rel (%p383) target = $region44
        $region43: #{tpu_custom_call.1} parent=39 // pred_region
          %s386 = sand.u32 %s28, 1
          %s387 = scalar_lea.sflag [#allocation14], %s386
          %s388 = sand.u32 %s178, 1
          %s389 = smul.addr %s388, 2048
          %s390 = scalar_lea.vmem [#allocation13], %s389
          %s391 = smul.u32 4, %s36
          %s393 = ssub.s32 32768, 32768
          %394 = vsyncadd %s387, %s393
          %s395 = smul.addr %s35, 2048
          %s396 = sadd.s32 %s391, %s395
          %s397 = smul.addr %s396, 64
          %s398 = scalar_lea.hbm %s6, %s397
          %s399 = sshll.u32 %s390, 4
          %s400 = int_to_ptr.vmem [resolvable:$true] %s399
          %405 = dma.hbm_to_vmem [thread:$0]  %s398, 32768, %s400, %s387, 1024, 256, 16
        $region44: #{tpu_custom_call.1} parent=39 // pred_fallthru
          _
        // Predicated region
        $region45: #{tpu_custom_call.1} parent=39 // pred_check
          %p406 = pneg %p216
        $region46: #{tpu_custom_call.1} parent=39 // pred_check_branch
          %408 = sbr.rel (%p406) target = $region48
        $region47: #{tpu_custom_call.1} parent=39 // pred_region
          %s409 = sand.u32 %s28, 1
          %s410 = scalar_lea.sflag [#allocation14], %s409
          %s411 = sand.u32 %s206, 1
          %s412 = smul.addr %s411, 4
          %s413 = scalar_lea.vmem [#allocation15], %s412
          %s414 = smul.u32 4, %s36
          %s416 = ssub.s32 64, 64
          %417 = vsyncadd %s410, %s416
          %s418 = smul.addr %s35, 16
          %s419 = sadd.s32 %s414, %s418
          %s420 = smul.addr %s419, 16
          %s421 = scalar_lea.hbm %s7, %s420
          %s423 = sshll.u32 %s413, 4
          %s424 = int_to_ptr.vmem [resolvable:$true] %s423
          %426 = dma.hbm_to_vmem [thread:$0]  %s421, 64, %s424, %s410
        $region48: #{tpu_custom_call.1} parent=39 // pred_fallthru
          _
        // Predicated region
        $region49: #{tpu_custom_call.1} parent=39 // pred_check
          %p427 = pneg %p244
        $region50: #{tpu_custom_call.1} parent=39 // pred_check_branch
          %429 = sbr.rel (%p427) target = $region52
        $region51: #{tpu_custom_call.1} parent=39 // pred_region
          %s430 = smul.u32 64, %s36
          %p431 = scmp.lt.s32.totalorder %s35, 1
          %s432 = scalar_select %p431, %s35, 1
          %p433 = scmp.lt.s32.totalorder %s430, 255
          %s434 = scalar_select %p433, %s430, 255
          %s435 = smul.addr %s432, 256
          %s436 = sadd.s32 %s434, %s435
          %s437 = smul.addr %s436, 4
          %s438 = scalar_lea.vmem %s8, %s437
          %s439 = smul.u32 64, %s36
        $region52: #{tpu_custom_call.1} parent=39 // pred_fallthru
          _
        // Predicated region
        $region53: #{tpu_custom_call.1} parent=39 // pred_check
          %p440 = pneg %p270
        $region54: #{tpu_custom_call.1} parent=39 // pred_check_branch
          %442 = sbr.rel (%p440) target = $region56
        $region55: #{tpu_custom_call.1} parent=39 // pred_region
          %s443 = sand.u32 %s260, 1
          %s444 = scalar_lea.sflag [#allocation17], %s443
          %s445 = sand.u32 %s260, 1
          %s446 = scalar_lea.vmem [#allocation16], %s445
          %s448 = ssub.s32 16, 16
          %449 = vsyncadd %s444, %s448
          %s450 = smul.addr %s35, 16
          %s451 = scalar_lea.hbm %s9, %s450
          %s453 = sshll.u32 %s446, 4
          %s454 = int_to_ptr.vmem [resolvable:$true] %s453
          %456 = dma.hbm_to_vmem [thread:$0]  %s451, 16, %s454, %s444
        $region56: #{tpu_custom_call.1} parent=39 // pred_fallthru
          _
      $region40: #{tpu_custom_call.1} parent=5 // pred_fallthru
        _
      %p457 = scmp.le.s32.totalorder 1, %s28
      %p458 = scmp.lt.s32.totalorder %s28, 9
      %p459 = pnand %p457, %p458
      %p460 = pneg %p459
      // Predicated region
      $region57: #{tpu_custom_call.1} parent=5 // pred_check
        _
      $region58: #{tpu_custom_call.1} parent=5 // pred_check_branch
        %462 = sbr.rel (%p459) target = $region60
      $region59: #{tpu_custom_call.1} parent=5 // pred_region
        %s463 = ssub.s32 %s28, 1
        // Predicated region
        $region61: #{tpu_custom_call.1} parent=59 // pred_check
          %p464 = pneg %p82
        $region62: #{tpu_custom_call.1} parent=59 // pred_check_branch
          %466 = sbr.rel (%p464) target = $region64
        $region63: #{tpu_custom_call.1} parent=59 // pred_region
          %467 = dma.done [#allocation5], 128
        $region64: #{tpu_custom_call.1} parent=59 // pred_fallthru
          _
        // Predicated region
        $region65: #{tpu_custom_call.1} parent=59 // pred_check
          %p468 = pneg %p103
        $region66: #{tpu_custom_call.1} parent=59 // pred_check_branch
          %470 = sbr.rel (%p468) target = $region68
        $region67: #{tpu_custom_call.1} parent=59 // pred_region
          %471 = dma.done [#allocation8], 256
        $region68: #{tpu_custom_call.1} parent=59 // pred_fallthru
          _
        // Predicated region
        $region69: #{tpu_custom_call.1} parent=59 // pred_check
          %p472 = pneg %p124
        $region70: #{tpu_custom_call.1} parent=59 // pred_check_branch
          %474 = sbr.rel (%p472) target = $region72
        $region71: #{tpu_custom_call.1} parent=59 // pred_region
          %475 = dma.done [#allocation8], 16
        $region72: #{tpu_custom_call.1} parent=59 // pred_fallthru
          _
        // Predicated region
        $region73: #{tpu_custom_call.1} parent=59 // pred_check
          %p476 = pneg %p145
        $region74: #{tpu_custom_call.1} parent=59 // pred_check_branch
          %478 = sbr.rel (%p476) target = $region76
        $region75: #{tpu_custom_call.1} parent=59 // pred_region
          %479 = dma.done [#allocation11], 8192
        $region76: #{tpu_custom_call.1} parent=59 // pred_fallthru
          _
        // Predicated region
        $region77: #{tpu_custom_call.1} parent=59 // pred_check
          %p480 = pneg %p166
        $region78: #{tpu_custom_call.1} parent=59 // pred_check_branch
          %482 = sbr.rel (%p480) target = $region80
        $region79: #{tpu_custom_call.1} parent=59 // pred_region
          %483 = dma.done [#allocation11], 128
        $region80: #{tpu_custom_call.1} parent=59 // pred_fallthru
          _
        %s484 = sand.u32 %s33, 1
        %s485 = scalar_lea.sflag [#allocation14], %s484
        %s486 = sand.u32 %s181, 1
        %s487 = smul.addr %s486, 2048
        %s488 = scalar_lea.vmem [#allocation13], %s487
        // Predicated region
        $region81: #{tpu_custom_call.1} parent=59 // pred_check
          %p489 = pneg %p194
        $region82: #{tpu_custom_call.1} parent=59 // pred_check_branch
          %491 = sbr.rel (%p489) target = $region84
        $region83: #{tpu_custom_call.1} parent=59 // pred_region
          %492 = dma.done %s485, 32768
        $region84: #{tpu_custom_call.1} parent=59 // pred_fallthru
          _
        %s493 = sand.u32 %s33, 1
        %s494 = scalar_lea.sflag [#allocation14], %s493
        %s495 = sand.u32 %s209, 1
        %s496 = smul.addr %s495, 4
        %s497 = scalar_lea.vmem [#allocation15], %s496
        // Predicated region
        $region85: #{tpu_custom_call.1} parent=59 // pred_check
          %p498 = pneg %p222
        $region86: #{tpu_custom_call.1} parent=59 // pred_check_branch
          %500 = sbr.rel (%p498) target = $region88
        $region87: #{tpu_custom_call.1} parent=59 // pred_region
          %501 = dma.done %s494, 64
        $region88: #{tpu_custom_call.1} parent=59 // pred_fallthru
          _
        %s502 = sand.u32 %s263, 1
        %s503 = scalar_lea.sflag [#allocation17], %s502
        %s504 = sand.u32 %s263, 1
        %s505 = scalar_lea.vmem [#allocation16], %s504
        // Predicated region
        $region89: #{tpu_custom_call.1} parent=59 // pred_check
          %p506 = pneg %p276
        $region90: #{tpu_custom_call.1} parent=59 // pred_check_branch
          %508 = sbr.rel (%p506) target = $region92
        $region91: #{tpu_custom_call.1} parent=59 // pred_region
          %509 = dma.done %s503, 16
        $region92: #{tpu_custom_call.1} parent=59 // pred_fallthru
          _
        %p510 = pneg %p61
        %p511 = pneg %p58
        %p512 = pneg %p82
        %p513 = pneg %p79
        %p514 = pneg %p103
        %p515 = pneg %p100
        %p516 = pneg %p124
        %p517 = pneg %p121
        %p518 = pneg %p145
        %p519 = pneg %p142
        %p520 = pneg %p166
        %p521 = pneg %p163
        %s522 = sand.u32 %s33, 1
        %s523 = scalar_lea.sflag [#allocation14], %s522
        %s524 = sand.u32 %s181, 1
        %s525 = smul.addr %s524, 2048
        %s526 = scalar_lea.vmem [#allocation13], %s525
        %p527 = pneg %p194
        %p528 = pneg %p191
        %s529 = sand.u32 %s33, 1
        %s530 = scalar_lea.sflag [#allocation14], %s529
        %s531 = sand.u32 %s209, 1
        %s532 = smul.addr %s531, 4
        %s533 = scalar_lea.vmem [#allocation15], %s532
        %p534 = pneg %p222
        %p535 = pneg %p219
        %s536 = smul.u32 64, %s38
        %p537 = scmp.lt.s32.totalorder %s37, 1
        %s538 = scalar_select %p537, %s37, 1
        %p539 = scmp.lt.s32.totalorder %s536, 255
        %s540 = scalar_select %p539, %s536, 255
        %s541 = smul.addr %s538, 256
        %s542 = sadd.s32 %s540, %s541
        %s543 = smul.addr %s542, 4
        %s544 = scalar_lea.vmem %s8, %s543
        %p545 = pneg %p250
        %p546 = pneg %p247
        %s547 = sand.u32 %s263, 1
        %s548 = scalar_lea.sflag [#allocation17], %s547
        %s549 = sand.u32 %s263, 1
        %s550 = scalar_lea.vmem [#allocation16], %s549
        %p551 = pneg %p276
        %p552 = pneg %p273
        %p553 = pneg %p302
        %p554 = pneg %p299
        %s555 = sand.u32 %s289, 1
        %s556 = scalar_lea.sflag [#allocation6], %s555
        %s557 = sand.u32 %s289, 1
        %s558 = smul.addr %s557, 2
        %s559 = scalar_lea.vmem [#allocation18], %s558
        %s560 = smul.u32 4, %s38
        %s561 = smul.u32 4, %s38
        %s562 = smul.u32 64, %s38
        %p563 = scmp.lt.s32.totalorder %s37, 1
        %s564 = scalar_select %p563, %s37, 1
        %p565 = scmp.lt.s32.totalorder %s562, 255
        %s566 = scalar_select %p565, %s562, 255
        %s567 = smul.addr %s564, 256
        %s568 = sadd.s32 %s566, %s567
        %s569 = smul.addr %s568, 4
        %s570 = scalar_lea.vmem %s8, %s569
        %s571 = smul.u32 64, %s38
        %p573 = scmp.eq.s32.totalorder %s38, 0
        // Predicated region
        $region93: #{tpu_custom_call.1} parent=59 // pred_check
          %p574 = pneg %p573
        $region94: #{tpu_custom_call.1} parent=59 // pred_check_branch
          %576 = sbr.rel (%p574) target = $region96
        $region95: #{tpu_custom_call.1} parent=59 // pred_region
          %v577 = vld [vmem:[%s0] sm:$0xff]
          %v578 = vld [vmem:[%s0 + $0x8] sm:$0xff]
          %v579 = vld [vmem:[%s0 + $0x10] sm:$0xff]
          %v580 = vld [vmem:[%s0 + $0x18] sm:$0xff]
          %v581 = vld [vmem:[%s0 + $0x20] sm:$0xff]
          %v582 = vld [vmem:[%s0 + $0x28] sm:$0xff]
          %v583 = vld [vmem:[%s0 + $0x30] sm:$0xff]
          %v584 = vld [vmem:[%s0 + $0x38] sm:$0xff]
          %v585 = vld [vmem:[%s0 + $0x40] sm:$0xff]
          %v586 = vld [vmem:[%s0 + $0x48] sm:$0xff]
          %v587 = vld [vmem:[%s0 + $0x50] sm:$0xff]
          %v588 = vld [vmem:[%s0 + $0x58] sm:$0xff]
          %v589 = vld [vmem:[%s0 + $0x60] sm:$0xff]
          %v590 = vld [vmem:[%s0 + $0x68] sm:$0xff]
          %v591 = vld [vmem:[%s0 + $0x70] sm:$0xff]
          %v592 = vld [vmem:[%s0 + $0x78] sm:$0xff]
          %v593 = vld [vmem:[%s0 + $0x80] sm:$0xff]
          %v594 = vld [vmem:[%s0 + $0x88] sm:$0xff]
          %v595 = vld [vmem:[%s0 + $0x90] sm:$0xff]
          %v596 = vld [vmem:[%s0 + $0x98] sm:$0xff]
          %v597 = vld [vmem:[%s0 + $0xa0] sm:$0xff]
          %v598 = vld [vmem:[%s0 + $0xa8] sm:$0xff]
          %v599 = vld [vmem:[%s0 + $0xb0] sm:$0xff]
          %v600 = vld [vmem:[%s0 + $0xb8] sm:$0xff]
          %v601 = vld [vmem:[%s0 + $0xc0] sm:$0xff]
          %v602 = vld [vmem:[%s0 + $0xc8] sm:$0xff]
          %v603 = vld [vmem:[%s0 + $0xd0] sm:$0xff]
          %v604 = vld [vmem:[%s0 + $0xd8] sm:$0xff]
          %v605 = vld [vmem:[%s0 + $0xe0] sm:$0xff]
          %v606 = vld [vmem:[%s0 + $0xe8] sm:$0xff]
          %v607 = vld [vmem:[%s0 + $0xf0] sm:$0xff]
          %v608 = vld [vmem:[%s0 + $0xf8] sm:$0xff]
          %v609 = vld [vmem:[%s0 + $0x100] sm:$0xff]
          %v610 = vld [vmem:[%s0 + $0x108] sm:$0xff]
          %v611 = vld [vmem:[%s0 + $0x110] sm:$0xff]
          %v612 = vld [vmem:[%s0 + $0x118] sm:$0xff]
          %v613 = vld [vmem:[%s0 + $0x120] sm:$0xff]
          %v614 = vld [vmem:[%s0 + $0x128] sm:$0xff]
          %v615 = vld [vmem:[%s0 + $0x130] sm:$0xff]
          %v616 = vld [vmem:[%s0 + $0x138] sm:$0xff]
          %v617 = vld [vmem:[%s0 + $0x140] sm:$0xff]
          %v618 = vld [vmem:[%s0 + $0x148] sm:$0xff]
          %v619 = vld [vmem:[%s0 + $0x150] sm:$0xff]
          %v620 = vld [vmem:[%s0 + $0x158] sm:$0xff]
          %v621 = vld [vmem:[%s0 + $0x160] sm:$0xff]
          %v622 = vld [vmem:[%s0 + $0x168] sm:$0xff]
          %v623 = vld [vmem:[%s0 + $0x170] sm:$0xff]
          %v624 = vld [vmem:[%s0 + $0x178] sm:$0xff]
          %v625 = vld [vmem:[%s0 + $0x180] sm:$0xff]
          %v626 = vld [vmem:[%s0 + $0x188] sm:$0xff]
          %v627 = vld [vmem:[%s0 + $0x190] sm:$0xff]
          %v628 = vld [vmem:[%s0 + $0x198] sm:$0xff]
          %v629 = vld [vmem:[%s0 + $0x1a0] sm:$0xff]
          %v630 = vld [vmem:[%s0 + $0x1a8] sm:$0xff]
          %v631 = vld [vmem:[%s0 + $0x1b0] sm:$0xff]
          %v632 = vld [vmem:[%s0 + $0x1b8] sm:$0xff]
          %v633 = vld [vmem:[%s0 + $0x1c0] sm:$0xff]
          %v634 = vld [vmem:[%s0 + $0x1c8] sm:$0xff]
          %v635 = vld [vmem:[%s0 + $0x1d0] sm:$0xff]
          %v636 = vld [vmem:[%s0 + $0x1d8] sm:$0xff]
          %v637 = vld [vmem:[%s0 + $0x1e0] sm:$0xff]
          %v638 = vld [vmem:[%s0 + $0x1e8] sm:$0xff]
          %v639 = vld [vmem:[%s0 + $0x1f0] sm:$0xff]
          %v640 = vld [vmem:[%s0 + $0x1f8] sm:$0xff]
          %v641 = vld [vmem:[#allocation7] sm:$0xff]
          %v642 = vld [vmem:[#allocation7 + $0x8] sm:$0x3f]
          %v643 = vld [vmem:[#allocation9] sm:$0x1]
          %v645 = vlaneseq
          %v646 = vshrl.u32 %v645, 7
          %v647 = vsub.s32 0, %v646
          %v648 = vrot.slane %v643, %v647
          %vm650 = vcmask 113664
          %v652 = vsel %vm650, %v577, 0
          %v655 = vsel %vm650, %v578, 0
          %v658 = vsel %vm650, %v579, 0
          %v661 = vsel %vm650, %v580, 0
          %v664 = vsel %vm650, %v581, 0
          %v667 = vsel %vm650, %v582, 0
          %v670 = vsel %vm650, %v583, 0
          %v673 = vsel %vm650, %v584, 0
          %v676 = vsel %vm650, %v585, 0
          %v679 = vsel %vm650, %v586, 0
          %v682 = vsel %vm650, %v587, 0
          %v685 = vsel %vm650, %v588, 0
          %v688 = vsel %vm650, %v589, 0
          %v691 = vsel %vm650, %v590, 0
          %v694 = vsel %vm650, %v591, 0
          %v697 = vsel %vm650, %v592, 0
          %v700 = vsel %vm650, %v593, 0
          %v703 = vsel %vm650, %v594, 0
          %v706 = vsel %vm650, %v595, 0
          %v709 = vsel %vm650, %v596, 0
          %v712 = vsel %vm650, %v597, 0
          %v715 = vsel %vm650, %v598, 0
          %v718 = vsel %vm650, %v599, 0
          %v721 = vsel %vm650, %v600, 0
          %v724 = vsel %vm650, %v601, 0
          %v727 = vsel %vm650, %v602, 0
          %v730 = vsel %vm650, %v603, 0
          %v733 = vsel %vm650, %v604, 0
          %v736 = vsel %vm650, %v605, 0
          %v739 = vsel %vm650, %v606, 0
          %v742 = vsel %vm650, %v607, 0
          %v745 = vsel %vm650, %v608, 0
          %v748 = vsel %vm650, %v609, 0
          %v751 = vsel %vm650, %v610, 0
          %v754 = vsel %vm650, %v611, 0
          %v757 = vsel %vm650, %v612, 0
          %v760 = vsel %vm650, %v613, 0
          %v763 = vsel %vm650, %v614, 0
          %v766 = vsel %vm650, %v615, 0
          %v769 = vsel %vm650, %v616, 0
          %v772 = vsel %vm650, %v617, 0
          %v775 = vsel %vm650, %v618, 0
          %v778 = vsel %vm650, %v619, 0
          %v781 = vsel %vm650, %v620, 0
          %v784 = vsel %vm650, %v621, 0
          %v787 = vsel %vm650, %v622, 0
          %v790 = vsel %vm650, %v623, 0
          %v793 = vsel %vm650, %v624, 0
          %v796 = vsel %vm650, %v625, 0
          %v799 = vsel %vm650, %v626, 0
          %v802 = vsel %vm650, %v627, 0
          %v805 = vsel %vm650, %v628, 0
          %v808 = vsel %vm650, %v629, 0
          %v811 = vsel %vm650, %v630, 0
          %v814 = vsel %vm650, %v631, 0
          %v817 = vsel %vm650, %v632, 0
          %v820 = vsel %vm650, %v633, 0
          %v823 = vsel %vm650, %v634, 0
          %v826 = vsel %vm650, %v635, 0
          %v829 = vsel %vm650, %v636, 0
          %v832 = vsel %vm650, %v637, 0
          %v835 = vsel %vm650, %v638, 0
          %v838 = vsel %vm650, %v639, 0
          %v841 = vsel %vm650, %v640, 0
          %vm843 = vcmask 1045504
          %v845 = vsel %vm843, %v642, 0
          %847 = vmatprep.subr.mxu0 0.0
          %848 = vmatpush1.msra.mxu0 0.0
          %849 = vmatprep.subr.mxu0 0.0
          %850 = vmatpush1.msra.mxu0 0.0
          %851 = vmatprep.subr.mxu0 0.0
          %852 = vmatpush1.msra.mxu0 0.0
          %853 = vmatprep.subr.mxu0 0.0
          %854 = vmatpush1.msra.mxu0 0.0
          %855 = vmatprep.subr.mxu0 0.0
          %856 = vmatpush1.msra.mxu0 0.0
          %857 = vmatprep.subr.mxu0 0.0
          %858 = vmatpush1.msra.mxu0 0.0
          %859 = vmatprep.subr.mxu0 0.0
          %860 = vmatpush1.msra.mxu0 0.0
          %861 = vmatprep.subr.mxu0 0.0
          %862 = vmatpush1.msra.mxu0 0.0
          %863 = vmatprep.subr.mxu0 0.0
          %864 = vmatpush1.msra.mxu0 0.0
          %865 = vmatprep.subr.mxu0 0.0
          %866 = vmatpush1.msra.mxu0 0.0
          %867 = vmatprep.subr.mxu0 0.0
          %868 = vmatpush1.msra.mxu0 0.0
          %869 = vmatprep.subr.mxu0 0.0
          %870 = vmatpush1.msra.mxu0 0.0
          %871 = vmatprep.subr.mxu0 0.0
          %872 = vmatpush1.msra.mxu0 0.0
          %873 = vmatprep.subr.mxu0 0.0
          %874 = vmatpush1.msra.mxu0 0.0
          %875 = vmatprep.subr.mxu0 0.0
          %876 = vmatpush1.msra.mxu0 %v845
          %877 = vmatprep.subr.mxu0 0.0
          %878 = vmatpush1.msra.mxu0 %v641
          %879 = vmatprep.subr.mxu0 0.0
          %880 = vmatpush2.msra.mxu0 0.0
          %881 = vmatprep.subr.mxu0 0.0
          %882 = vmatpush2.msra.mxu0 0.0
          %883 = vmatprep.subr.mxu0 0.0
          %884 = vmatpush2.msra.mxu0 0.0
          %885 = vmatprep.subr.mxu0 0.0
          %886 = vmatpush2.msra.mxu0 0.0
          %887 = vmatprep.subr.mxu0 0.0
          %888 = vmatpush2.msra.mxu0 0.0
          %889 = vmatprep.subr.mxu0 0.0
          %890 = vmatpush2.msra.mxu0 0.0
          %891 = vmatprep.subr.mxu0 0.0
          %892 = vmatpush2.msra.mxu0 0.0
          %893 = vmatprep.subr.mxu0 0.0
          %894 = vmatpush2.msra.mxu0 0.0
          %895 = vmatprep.subr.mxu0 0.0
          %896 = vmatpush2.msra.mxu0 0.0
          %897 = vmatprep.subr.mxu0 0.0
          %898 = vmatpush2.msra.mxu0 0.0
          %899 = vmatprep.subr.mxu0 0.0
          %900 = vmatpush2.msra.mxu0 0.0
          %901 = vmatprep.subr.mxu0 0.0
          %902 = vmatpush2.msra.mxu0 0.0
          %903 = vmatprep.subr.mxu0 0.0
          %904 = vmatpush2.msra.mxu0 0.0
          %905 = vmatprep.subr.mxu0 0.0
          %906 = vmatpush2.msra.mxu0 0.0
          %907 = vmatprep.subr.mxu0 0.0
          %908 = vmatpush2.msra.mxu0 0.0
          %909 = vmatprep.subr.mxu0 0.0
          %910 = vmatpush2.msra.mxu0 0.0
          %911 = vmatprep.mubr.f32.mxu0 0.0
          %912 = vmatmul.mubr.f32.gmra.mxu0 %v652
          %v913 = vpop.f32.mrf.mxu0
          %v914 = vadd.f32 %v648, %v913
          %v915 = vpop.f32.mrf.mxu0
          %916 = vmatprep.mubr.f32.mxu0 0.0
          %917 = vmatmul.mubr.f32.gmra.mxu0 %v655
          %v918 = vpop.f32.mrf.mxu0
          %v919 = vadd.f32 %v648, %v918
          %v920 = vpop.f32.mrf.mxu0
          %921 = vmatprep.mubr.f32.mxu0 0.0
          %922 = vmatmul.mubr.f32.gmra.mxu0 %v658
          %v923 = vpop.f32.mrf.mxu0
          %v924 = vadd.f32 %v648, %v923
          %v925 = vpop.f32.mrf.mxu0
          %926 = vmatprep.mubr.f32.mxu0 0.0
          %927 = vmatmul.mubr.f32.gmra.mxu0 %v661
          %v928 = vpop.f32.mrf.mxu0
          %v929 = vadd.f32 %v648, %v928
          %v930 = vpop.f32.mrf.mxu0
          %931 = vmatprep.mubr.f32.mxu0 0.0
          %932 = vmatmul.mubr.f32.gmra.mxu0 %v664
          %v933 = vpop.f32.mrf.mxu0
          %v934 = vadd.f32 %v648, %v933
          %v935 = vpop.f32.mrf.mxu0
          %936 = vmatprep.mubr.f32.mxu0 0.0
          %937 = vmatmul.mubr.f32.gmra.mxu0 %v667
          %v938 = vpop.f32.mrf.mxu0
          %v939 = vadd.f32 %v648, %v938
          %v940 = vpop.f32.mrf.mxu0
          %941 = vmatprep.mubr.f32.mxu0 0.0
          %942 = vmatmul.mubr.f32.gmra.mxu0 %v670
          %v943 = vpop.f32.mrf.mxu0
          %v944 = vadd.f32 %v648, %v943
          %v945 = vpop.f32.mrf.mxu0
          %946 = vmatprep.mubr.f32.mxu0 0.0
          %947 = vmatmul.mubr.f32.gmra.mxu0 %v673
          %v948 = vpop.f32.mrf.mxu0
          %v949 = vadd.f32 %v648, %v948
          %v950 = vpop.f32.mrf.mxu0
          %951 = vmatprep.mubr.f32.mxu0 0.0
          %952 = vmatmul.mubr.f32.gmra.mxu0 %v676
          %v953 = vpop.f32.mrf.mxu0
          %v954 = vadd.f32 %v648, %v953
          %v955 = vpop.f32.mrf.mxu0
          %956 = vmatprep.mubr.f32.mxu0 0.0
          %957 = vmatmul.mubr.f32.gmra.mxu0 %v679
          %v958 = vpop.f32.mrf.mxu0
          %v959 = vadd.f32 %v648, %v958
          %v960 = vpop.f32.mrf.mxu0
          %961 = vmatprep.mubr.f32.mxu0 0.0
          %962 = vmatmul.mubr.f32.gmra.mxu0 %v682
          %v963 = vpop.f32.mrf.mxu0
          %v964 = vadd.f32 %v648, %v963
          %v965 = vpop.f32.mrf.mxu0
          %966 = vmatprep.mubr.f32.mxu0 0.0
          %967 = vmatmul.mubr.f32.gmra.mxu0 %v685
          %v968 = vpop.f32.mrf.mxu0
          %v969 = vadd.f32 %v648, %v968
          %v970 = vpop.f32.mrf.mxu0
          %971 = vmatprep.mubr.f32.mxu0 0.0
          %972 = vmatmul.mubr.f32.gmra.mxu0 %v688
          %v973 = vpop.f32.mrf.mxu0
          %v974 = vadd.f32 %v648, %v973
          %v975 = vpop.f32.mrf.mxu0
          %976 = vmatprep.mubr.f32.mxu0 0.0
          %977 = vmatmul.mubr.f32.gmra.mxu0 %v691
          %v978 = vpop.f32.mrf.mxu0
          %v979 = vadd.f32 %v648, %v978
          %v980 = vpop.f32.mrf.mxu0
          %981 = vmatprep.mubr.f32.mxu0 0.0
          %982 = vmatmul.mubr.f32.gmra.mxu0 %v694
          %v983 = vpop.f32.mrf.mxu0
          %v984 = vadd.f32 %v648, %v983
          %v985 = vpop.f32.mrf.mxu0
          %986 = vmatprep.mubr.f32.mxu0 0.0
          %987 = vmatmul.mubr.f32.gmra.mxu0 %v697
          %v988 = vpop.f32.mrf.mxu0
          %v989 = vadd.f32 %v648, %v988
          %v990 = vpop.f32.mrf.mxu0
          %991 = vmatprep.mubr.f32.mxu0 0.0
          %992 = vmatmul.mubr.f32.gmra.mxu0 %v700
          %v993 = vpop.f32.mrf.mxu0
          %v994 = vadd.f32 %v648, %v993
          %v995 = vpop.f32.mrf.mxu0
          %996 = vmatprep.mubr.f32.mxu0 0.0
          %997 = vmatmul.mubr.f32.gmra.mxu0 %v703
          %v998 = vpop.f32.mrf.mxu0
          %v999 = vadd.f32 %v648, %v998
          %v1000 = vpop.f32.mrf.mxu0
          %1001 = vmatprep.mubr.f32.mxu0 0.0
          %1002 = vmatmul.mubr.f32.gmra.mxu0 %v706
          %v1003 = vpop.f32.mrf.mxu0
          %v1004 = vadd.f32 %v648, %v1003
          %v1005 = vpop.f32.mrf.mxu0
          %1006 = vmatprep.mubr.f32.mxu0 0.0
          %1007 = vmatmul.mubr.f32.gmra.mxu0 %v709
          %v1008 = vpop.f32.mrf.mxu0
          %v1009 = vadd.f32 %v648, %v1008
          %v1010 = vpop.f32.mrf.mxu0
          %1011 = vmatprep.mubr.f32.mxu0 0.0
          %1012 = vmatmul.mubr.f32.gmra.mxu0 %v712
          %v1013 = vpop.f32.mrf.mxu0
          %v1014 = vadd.f32 %v648, %v1013
          %v1015 = vpop.f32.mrf.mxu0
          %1016 = vmatprep.mubr.f32.mxu0 0.0
          %1017 = vmatmul.mubr.f32.gmra.mxu0 %v715
          %v1018 = vpop.f32.mrf.mxu0
          %v1019 = vadd.f32 %v648, %v1018
          %v1020 = vpop.f32.mrf.mxu0
          %1021 = vmatprep.mubr.f32.mxu0 0.0
          %1022 = vmatmul.mubr.f32.gmra.mxu0 %v718
          %v1023 = vpop.f32.mrf.mxu0
          %v1024 = vadd.f32 %v648, %v1023
          %v1025 = vpop.f32.mrf.mxu0
          %1026 = vmatprep.mubr.f32.mxu0 0.0
          %1027 = vmatmul.mubr.f32.gmra.mxu0 %v721
          %v1028 = vpop.f32.mrf.mxu0
          %v1029 = vadd.f32 %v648, %v1028
          %v1030 = vpop.f32.mrf.mxu0
          %1031 = vmatprep.mubr.f32.mxu0 0.0
          %1032 = vmatmul.mubr.f32.gmra.mxu0 %v724
          %v1033 = vpop.f32.mrf.mxu0
          %v1034 = vadd.f32 %v648, %v1033
          %v1035 = vpop.f32.mrf.mxu0
          %1036 = vmatprep.mubr.f32.mxu0 0.0
          %1037 = vmatmul.mubr.f32.gmra.mxu0 %v727
          %v1038 = vpop.f32.mrf.mxu0
          %v1039 = vadd.f32 %v648, %v1038
          %v1040 = vpop.f32.mrf.mxu0
          %1041 = vmatprep.mubr.f32.mxu0 0.0
          %1042 = vmatmul.mubr.f32.gmra.mxu0 %v730
          %v1043 = vpop.f32.mrf.mxu0
          %v1044 = vadd.f32 %v648, %v1043
          %v1045 = vpop.f32.mrf.mxu0
          %1046 = vmatprep.mubr.f32.mxu0 0.0
          %1047 = vmatmul.mubr.f32.gmra.mxu0 %v733
          %v1048 = vpop.f32.mrf.mxu0
          %v1049 = vadd.f32 %v648, %v1048
          %v1050 = vpop.f32.mrf.mxu0
          %1051 = vmatprep.mubr.f32.mxu0 0.0
          %1052 = vmatmul.mubr.f32.gmra.mxu0 %v736
          %v1053 = vpop.f32.mrf.mxu0
          %v1054 = vadd.f32 %v648, %v1053
          %v1055 = vpop.f32.mrf.mxu0
          %1056 = vmatprep.mubr.f32.mxu0 0.0
          %1057 = vmatmul.mubr.f32.gmra.mxu0 %v739
          %v1058 = vpop.f32.mrf.mxu0
          %v1059 = vadd.f32 %v648, %v1058
          %v1060 = vpop.f32.mrf.mxu0
          %1061 = vmatprep.mubr.f32.mxu0 0.0
          %1062 = vmatmul.mubr.f32.gmra.mxu0 %v742
          %v1063 = vpop.f32.mrf.mxu0
          %v1064 = vadd.f32 %v648, %v1063
          %v1065 = vpop.f32.mrf.mxu0
          %1066 = vmatprep.mubr.f32.mxu0 0.0
          %1067 = vmatmul.mubr.f32.gmra.mxu0 %v745
          %v1068 = vpop.f32.mrf.mxu0
          %v1069 = vadd.f32 %v648, %v1068
          %v1070 = vpop.f32.mrf.mxu0
          %1071 = vmatprep.mubr.f32.mxu0 0.0
          %1072 = vmatmul.mubr.f32.gmra.mxu0 %v748
          %v1073 = vpop.f32.mrf.mxu0
          %v1074 = vadd.f32 %v648, %v1073
          %v1075 = vpop.f32.mrf.mxu0
          %1076 = vmatprep.mubr.f32.mxu0 0.0
          %1077 = vmatmul.mubr.f32.gmra.mxu0 %v751
          %v1078 = vpop.f32.mrf.mxu0
          %v1079 = vadd.f32 %v648, %v1078
          %v1080 = vpop.f32.mrf.mxu0
          %1081 = vmatprep.mubr.f32.mxu0 0.0
          %1082 = vmatmul.mubr.f32.gmra.mxu0 %v754
          %v1083 = vpop.f32.mrf.mxu0
          %v1084 = vadd.f32 %v648, %v1083
          %v1085 = vpop.f32.mrf.mxu0
          %1086 = vmatprep.mubr.f32.mxu0 0.0
          %1087 = vmatmul.mubr.f32.gmra.mxu0 %v757
          %v1088 = vpop.f32.mrf.mxu0
          %v1089 = vadd.f32 %v648, %v1088
          %v1090 = vpop.f32.mrf.mxu0
          %1091 = vmatprep.mubr.f32.mxu0 0.0
          %1092 = vmatmul.mubr.f32.gmra.mxu0 %v760
          %v1093 = vpop.f32.mrf.mxu0
          %v1094 = vadd.f32 %v648, %v1093
          %v1095 = vpop.f32.mrf.mxu0
          %1096 = vmatprep.mubr.f32.mxu0 0.0
          %1097 = vmatmul.mubr.f32.gmra.mxu0 %v763
          %v1098 = vpop.f32.mrf.mxu0
          %v1099 = vadd.f32 %v648, %v1098
          %v1100 = vpop.f32.mrf.mxu0
          %1101 = vmatprep.mubr.f32.mxu0 0.0
          %1102 = vmatmul.mubr.f32.gmra.mxu0 %v766
          %v1103 = vpop.f32.mrf.mxu0
          %v1104 = vadd.f32 %v648, %v1103
          %v1105 = vpop.f32.mrf.mxu0
          %1106 = vmatprep.mubr.f32.mxu0 0.0
          %1107 = vmatmul.mubr.f32.gmra.mxu0 %v769
          %v1108 = vpop.f32.mrf.mxu0
          %v1109 = vadd.f32 %v648, %v1108
          %v1110 = vpop.f32.mrf.mxu0
          %1111 = vmatprep.mubr.f32.mxu0 0.0
          %1112 = vmatmul.mubr.f32.gmra.mxu0 %v772
          %v1113 = vpop.f32.mrf.mxu0
          %v1114 = vadd.f32 %v648, %v1113
          %v1115 = vpop.f32.mrf.mxu0
          %1116 = vmatprep.mubr.f32.mxu0 0.0
          %1117 = vmatmul.mubr.f32.gmra.mxu0 %v775
          %v1118 = vpop.f32.mrf.mxu0
          %v1119 = vadd.f32 %v648, %v1118
          %v1120 = vpop.f32.mrf.mxu0
          %1121 = vmatprep.mubr.f32.mxu0 0.0
          %1122 = vmatmul.mubr.f32.gmra.mxu0 %v778
          %v1123 = vpop.f32.mrf.mxu0
          %v1124 = vadd.f32 %v648, %v1123
          %v1125 = vpop.f32.mrf.mxu0
          %1126 = vmatprep.mubr.f32.mxu0 0.0
          %1127 = vmatmul.mubr.f32.gmra.mxu0 %v781
          %v1128 = vpop.f32.mrf.mxu0
          %v1129 = vadd.f32 %v648, %v1128
          %v1130 = vpop.f32.mrf.mxu0
          %1131 = vmatprep.mubr.f32.mxu0 0.0
          %1132 = vmatmul.mubr.f32.gmra.mxu0 %v784
          %v1133 = vpop.f32.mrf.mxu0
          %v1134 = vadd.f32 %v648, %v1133
          %v1135 = vpop.f32.mrf.mxu0
          %1136 = vmatprep.mubr.f32.mxu0 0.0
          %1137 = vmatmul.mubr.f32.gmra.mxu0 %v787
          %v1138 = vpop.f32.mrf.mxu0
          %v1139 = vadd.f32 %v648, %v1138
          %v1140 = vpop.f32.mrf.mxu0
          %1141 = vmatprep.mubr.f32.mxu0 0.0
          %1142 = vmatmul.mubr.f32.gmra.mxu0 %v790
          %v1143 = vpop.f32.mrf.mxu0
          %v1144 = vadd.f32 %v648, %v1143
          %v1145 = vpop.f32.mrf.mxu0
          %1146 = vmatprep.mubr.f32.mxu0 0.0
          %1147 = vmatmul.mubr.f32.gmra.mxu0 %v793
          %v1148 = vpop.f32.mrf.mxu0
          %v1149 = vadd.f32 %v648, %v1148
          %v1150 = vpop.f32.mrf.mxu0
          %1151 = vmatprep.mubr.f32.mxu0 0.0
          %1152 = vmatmul.mubr.f32.gmra.mxu0 %v796
          %v1153 = vpop.f32.mrf.mxu0
          %v1154 = vadd.f32 %v648, %v1153
          %v1155 = vpop.f32.mrf.mxu0
          %1156 = vmatprep.mubr.f32.mxu0 0.0
          %1157 = vmatmul.mubr.f32.gmra.mxu0 %v799
          %v1158 = vpop.f32.mrf.mxu0
          %v1159 = vadd.f32 %v648, %v1158
          %v1160 = vpop.f32.mrf.mxu0
          %1161 = vmatprep.mubr.f32.mxu0 0.0
          %1162 = vmatmul.mubr.f32.gmra.mxu0 %v802
          %v1163 = vpop.f32.mrf.mxu0
          %v1164 = vadd.f32 %v648, %v1163
          %v1165 = vpop.f32.mrf.mxu0
          %1166 = vmatprep.mubr.f32.mxu0 0.0
          %1167 = vmatmul.mubr.f32.gmra.mxu0 %v805
          %v1168 = vpop.f32.mrf.mxu0
          %v1169 = vadd.f32 %v648, %v1168
          %v1170 = vpop.f32.mrf.mxu0
          %1171 = vmatprep.mubr.f32.mxu0 0.0
          %1172 = vmatmul.mubr.f32.gmra.mxu0 %v808
          %v1173 = vpop.f32.mrf.mxu0
          %v1174 = vadd.f32 %v648, %v1173
          %v1175 = vpop.f32.mrf.mxu0
          %1176 = vmatprep.mubr.f32.mxu0 0.0
          %1177 = vmatmul.mubr.f32.gmra.mxu0 %v811
          %v1178 = vpop.f32.mrf.mxu0
          %v1179 = vadd.f32 %v648, %v1178
          %v1180 = vpop.f32.mrf.mxu0
          %1181 = vmatprep.mubr.f32.mxu0 0.0
          %1182 = vmatmul.mubr.f32.gmra.mxu0 %v814
          %v1183 = vpop.f32.mrf.mxu0
          %v1184 = vadd.f32 %v648, %v1183
          %v1185 = vpop.f32.mrf.mxu0
          %1186 = vmatprep.mubr.f32.mxu0 0.0
          %1187 = vmatmul.mubr.f32.gmra.mxu0 %v817
          %v1188 = vpop.f32.mrf.mxu0
          %v1189 = vadd.f32 %v648, %v1188
          %v1190 = vpop.f32.mrf.mxu0
          %1191 = vmatprep.mubr.f32.mxu0 0.0
          %1192 = vmatmul.mubr.f32.gmra.mxu0 %v820
          %v1193 = vpop.f32.mrf.mxu0
          %v1194 = vadd.f32 %v648, %v1193
          %v1195 = vpop.f32.mrf.mxu0
          %1196 = vmatprep.mubr.f32.mxu0 0.0
          %1197 = vmatmul.mubr.f32.gmra.mxu0 %v823
          %v1198 = vpop.f32.mrf.mxu0
          %v1199 = vadd.f32 %v648, %v1198
          %v1200 = vpop.f32.mrf.mxu0
          %1201 = vmatprep.mubr.f32.mxu0 0.0
          %1202 = vmatmul.mubr.f32.gmra.mxu0 %v826
          %v1203 = vpop.f32.mrf.mxu0
          %v1204 = vadd.f32 %v648, %v1203
          %v1205 = vpop.f32.mrf.mxu0
          %1206 = vmatprep.mubr.f32.mxu0 0.0
          %1207 = vmatmul.mubr.f32.gmra.mxu0 %v829
          %v1208 = vpop.f32.mrf.mxu0
          %v1209 = vadd.f32 %v648, %v1208
          %v1210 = vpop.f32.mrf.mxu0
          %1211 = vmatprep.mubr.f32.mxu0 0.0
          %1212 = vmatmul.mubr.f32.gmra.mxu0 %v832
          %v1213 = vpop.f32.mrf.mxu0
          %v1214 = vadd.f32 %v648, %v1213
          %v1215 = vpop.f32.mrf.mxu0
          %1216 = vmatprep.mubr.f32.mxu0 0.0
          %1217 = vmatmul.mubr.f32.gmra.mxu0 %v835
          %v1218 = vpop.f32.mrf.mxu0
          %v1219 = vadd.f32 %v648, %v1218
          %v1220 = vpop.f32.mrf.mxu0
          %1221 = vmatprep.mubr.f32.mxu0 0.0
          %1222 = vmatmul.mubr.f32.gmra.mxu0 %v838
          %v1223 = vpop.f32.mrf.mxu0
          %v1224 = vadd.f32 %v648, %v1223
          %v1225 = vpop.f32.mrf.mxu0
          %1226 = vmatprep.mubr.f32.mxu0 0.0
          %1227 = vmatmul.mubr.f32.gmra.mxu0 %v841
          %v1228 = vpop.f32.mrf.mxu0
          %v1229 = vadd.f32 %v648, %v1228
          %v1230 = vpop.f32.mrf.mxu0
          %1231 = vdwg.mxu0
          %v1232 = vmax.f32 %v914, 0.0
          %v1233 = vmax.f32 %v919, 0.0
          %v1234 = vmax.f32 %v924, 0.0
          %v1235 = vmax.f32 %v929, 0.0
          %v1236 = vmax.f32 %v934, 0.0
          %v1237 = vmax.f32 %v939, 0.0
          %v1238 = vmax.f32 %v944, 0.0
          %v1239 = vmax.f32 %v949, 0.0
          %v1240 = vmax.f32 %v954, 0.0
          %v1241 = vmax.f32 %v959, 0.0
          %v1242 = vmax.f32 %v964, 0.0
          %v1243 = vmax.f32 %v969, 0.0
          %v1244 = vmax.f32 %v974, 0.0
          %v1245 = vmax.f32 %v979, 0.0
          %v1246 = vmax.f32 %v984, 0.0
          %v1247 = vmax.f32 %v989, 0.0
          %v1248 = vmax.f32 %v994, 0.0
          %v1249 = vmax.f32 %v999, 0.0
          %v1250 = vmax.f32 %v1004, 0.0
          %v1251 = vmax.f32 %v1009, 0.0
          %v1252 = vmax.f32 %v1014, 0.0
          %v1253 = vmax.f32 %v1019, 0.0
          %v1254 = vmax.f32 %v1024, 0.0
          %v1255 = vmax.f32 %v1029, 0.0
          %v1256 = vmax.f32 %v1034, 0.0
          %v1257 = vmax.f32 %v1039, 0.0
          %v1258 = vmax.f32 %v1044, 0.0
          %v1259 = vmax.f32 %v1049, 0.0
          %v1260 = vmax.f32 %v1054, 0.0
          %v1261 = vmax.f32 %v1059, 0.0
          %v1262 = vmax.f32 %v1064, 0.0
          %v1263 = vmax.f32 %v1069, 0.0
          %v1264 = vmax.f32 %v1074, 0.0
          %v1265 = vmax.f32 %v1079, 0.0
          %v1266 = vmax.f32 %v1084, 0.0
          %v1267 = vmax.f32 %v1089, 0.0
          %v1268 = vmax.f32 %v1094, 0.0
          %v1269 = vmax.f32 %v1099, 0.0
          %v1270 = vmax.f32 %v1104, 0.0
          %v1271 = vmax.f32 %v1109, 0.0
          %v1272 = vmax.f32 %v1114, 0.0
          %v1273 = vmax.f32 %v1119, 0.0
          %v1274 = vmax.f32 %v1124, 0.0
          %v1275 = vmax.f32 %v1129, 0.0
          %v1276 = vmax.f32 %v1134, 0.0
          %v1277 = vmax.f32 %v1139, 0.0
          %v1278 = vmax.f32 %v1144, 0.0
          %v1279 = vmax.f32 %v1149, 0.0
          %v1280 = vmax.f32 %v1154, 0.0
          %v1281 = vmax.f32 %v1159, 0.0
          %v1282 = vmax.f32 %v1164, 0.0
          %v1283 = vmax.f32 %v1169, 0.0
          %v1284 = vmax.f32 %v1174, 0.0
          %v1285 = vmax.f32 %v1179, 0.0
          %v1286 = vmax.f32 %v1184, 0.0
          %v1287 = vmax.f32 %v1189, 0.0
          %v1288 = vmax.f32 %v1194, 0.0
          %v1289 = vmax.f32 %v1199, 0.0
          %v1290 = vmax.f32 %v1204, 0.0
          %v1291 = vmax.f32 %v1209, 0.0
          %v1292 = vmax.f32 %v1214, 0.0
          %v1293 = vmax.f32 %v1219, 0.0
          %v1294 = vmax.f32 %v1224, 0.0
          %v1295 = vmax.f32 %v1229, 0.0
          %v1296 = vld [vmem:[#allocation4] sm:$0xff]
          %v1298 = vcombine.high %v1296, %v1296
          %v1300 = vunpack.c.l.s4 1983009808
          %v1301 = vunpack.c.0.s8 %v1300
          %v1302 = vlaneseq
          %v1303 = vshrl.u32 %v1302, 7
          %v1304 = vsub.s32 %v1301, %v1303
          %v1305 = vrot.slane %v1296, %v1304
          %v1307 = vunpack.c.l.s4 1983009808
          %v1308 = vunpack.c.0.s8 %v1307
          %v1309 = vlaneseq
          %v1310 = vshrl.u32 %v1309, 7
          %v1311 = vsub.s32 %v1308, %v1310
          %v1312 = vrot.slane %v1298, %v1311
          %v1313 = vcombine.high %v1305, %v1305
          %v1314 = vcombine.high %v1312, %v1312
          %1319 = vmatprep.subr.mxu0 0.0
          %1320 = vmatpush1.msra.mxu0 %v1247
          %1321 = vmatprep.subr.mxu0 0.0
          %1322 = vmatpush1.msra.mxu0 %v1246
          %1323 = vmatprep.subr.mxu0 0.0
          %1324 = vmatpush1.msra.mxu0 %v1245
          %1325 = vmatprep.subr.mxu0 0.0
          %1326 = vmatpush1.msra.mxu0 %v1244
          %1327 = vmatprep.subr.mxu0 0.0
          %1328 = vmatpush1.msra.mxu0 %v1243
          %1329 = vmatprep.subr.mxu0 0.0
          %1330 = vmatpush1.msra.mxu0 %v1242
          %1331 = vmatprep.subr.mxu0 0.0
          %1332 = vmatpush1.msra.mxu0 %v1241
          %1333 = vmatprep.subr.mxu0 0.0
          %1334 = vmatpush1.msra.mxu0 %v1240
          %1335 = vmatprep.subr.mxu0 0.0
          %1336 = vmatpush1.msra.mxu0 %v1239
          %1337 = vmatprep.subr.mxu0 0.0
          %1338 = vmatpush1.msra.mxu0 %v1238
          %1339 = vmatprep.subr.mxu0 0.0
          %1340 = vmatpush1.msra.mxu0 %v1237
          %1341 = vmatprep.subr.mxu0 0.0
          %1342 = vmatpush1.msra.mxu0 %v1236
          %1343 = vmatprep.subr.mxu0 0.0
          %1344 = vmatpush1.msra.mxu0 %v1235
          %1345 = vmatprep.subr.mxu0 0.0
          %1346 = vmatpush1.msra.mxu0 %v1234
          %1347 = vmatprep.subr.mxu0 0.0
          %1348 = vmatpush1.msra.mxu0 %v1233
          %1349 = vmatprep.subr.mxu0 0.0
          %1350 = vmatpush1.msra.mxu0 %v1232
          %1351 = vmatprep.subr.mxu0 0.0
          %1352 = vmatpush2.msra.mxu0 %v1263
          %1353 = vmatprep.subr.mxu0 0.0
          %1354 = vmatpush2.msra.mxu0 %v1262
          %1355 = vmatprep.subr.mxu0 0.0
          %1356 = vmatpush2.msra.mxu0 %v1261
          %1357 = vmatprep.subr.mxu0 0.0
          %1358 = vmatpush2.msra.mxu0 %v1260
          %1359 = vmatprep.subr.mxu0 0.0
          %1360 = vmatpush2.msra.mxu0 %v1259
          %1361 = vmatprep.subr.mxu0 0.0
          %1362 = vmatpush2.msra.mxu0 %v1258
          %1363 = vmatprep.subr.mxu0 0.0
          %1364 = vmatpush2.msra.mxu0 %v1257
          %1365 = vmatprep.subr.mxu0 0.0
          %1366 = vmatpush2.msra.mxu0 %v1256
          %1367 = vmatprep.subr.mxu0 0.0
          %1368 = vmatpush2.msra.mxu0 %v1255
          %1369 = vmatprep.subr.mxu0 0.0
          %1370 = vmatpush2.msra.mxu0 %v1254
          %1371 = vmatprep.subr.mxu0 0.0
          %1372 = vmatpush2.msra.mxu0 %v1253
          %1373 = vmatprep.subr.mxu0 0.0
          %1374 = vmatpush2.msra.mxu0 %v1252
          %1375 = vmatprep.subr.mxu0 0.0
          %1376 = vmatpush2.msra.mxu0 %v1251
          %1377 = vmatprep.subr.mxu0 0.0
          %1378 = vmatpush2.msra.mxu0 %v1250
          %1379 = vmatprep.subr.mxu0 0.0
          %1380 = vmatpush2.msra.mxu0 %v1249
          %1381 = vmatprep.subr.mxu0 0.0
          %1382 = vmatpush2.msra.mxu0 %v1248
          %1383 = vmatprep.mubr.f32.mxu0 %v1313
          %1384 = vmatmul.mubr.f32.gmra.mxu0 %v1305
          %v1385 = vpop.f32.mrf.mxu0
          %v1386 = vadd.f32 0.0, %v1385
          %v1387 = vpop.f32.mrf.mxu0
          %1388 = vdwg.mxu0
          %1389 = vmatprep.subr.mxu0 0.0
          %1390 = vmatpush1.msra.mxu0 %v1279
          %1391 = vmatprep.subr.mxu0 0.0
          %1392 = vmatpush1.msra.mxu0 %v1278
          %1393 = vmatprep.subr.mxu0 0.0
          %1394 = vmatpush1.msra.mxu0 %v1277
          %1395 = vmatprep.subr.mxu0 0.0
          %1396 = vmatpush1.msra.mxu0 %v1276
          %1397 = vmatprep.subr.mxu0 0.0
          %1398 = vmatpush1.msra.mxu0 %v1275
          %1399 = vmatprep.subr.mxu0 0.0
          %1400 = vmatpush1.msra.mxu0 %v1274
          %1401 = vmatprep.subr.mxu0 0.0
          %1402 = vmatpush1.msra.mxu0 %v1273
          %1403 = vmatprep.subr.mxu0 0.0
          %1404 = vmatpush1.msra.mxu0 %v1272
          %1405 = vmatprep.subr.mxu0 0.0
          %1406 = vmatpush1.msra.mxu0 %v1271
          %1407 = vmatprep.subr.mxu0 0.0
          %1408 = vmatpush1.msra.mxu0 %v1270
          %1409 = vmatprep.subr.mxu0 0.0
          %1410 = vmatpush1.msra.mxu0 %v1269
          %1411 = vmatprep.subr.mxu0 0.0
          %1412 = vmatpush1.msra.mxu0 %v1268
          %1413 = vmatprep.subr.mxu0 0.0
          %1414 = vmatpush1.msra.mxu0 %v1267
          %1415 = vmatprep.subr.mxu0 0.0
          %1416 = vmatpush1.msra.mxu0 %v1266
          %1417 = vmatprep.subr.mxu0 0.0
          %1418 = vmatpush1.msra.mxu0 %v1265
          %1419 = vmatprep.subr.mxu0 0.0
          %1420 = vmatpush1.msra.mxu0 %v1264
          %1421 = vmatprep.subr.mxu0 0.0
          %1422 = vmatpush2.msra.mxu0 %v1295
          %1423 = vmatprep.subr.mxu0 0.0
          %1424 = vmatpush2.msra.mxu0 %v1294
          %1425 = vmatprep.subr.mxu0 0.0
          %1426 = vmatpush2.msra.mxu0 %v1293
          %1427 = vmatprep.subr.mxu0 0.0
          %1428 = vmatpush2.msra.mxu0 %v1292
          %1429 = vmatprep.subr.mxu0 0.0
          %1430 = vmatpush2.msra.mxu0 %v1291
          %1431 = vmatprep.subr.mxu0 0.0
          %1432 = vmatpush2.msra.mxu0 %v1290
          %1433 = vmatprep.subr.mxu0 0.0
          %1434 = vmatpush2.msra.mxu0 %v1289
          %1435 = vmatprep.subr.mxu0 0.0
          %1436 = vmatpush2.msra.mxu0 %v1288
          %1437 = vmatprep.subr.mxu0 0.0
          %1438 = vmatpush2.msra.mxu0 %v1287
          %1439 = vmatprep.subr.mxu0 0.0
          %1440 = vmatpush2.msra.mxu0 %v1286
          %1441 = vmatprep.subr.mxu0 0.0
          %1442 = vmatpush2.msra.mxu0 %v1285
          %1443 = vmatprep.subr.mxu0 0.0
          %1444 = vmatpush2.msra.mxu0 %v1284
          %1445 = vmatprep.subr.mxu0 0.0
          %1446 = vmatpush2.msra.mxu0 %v1283
          %1447 = vmatprep.subr.mxu0 0.0
          %1448 = vmatpush2.msra.mxu0 %v1282
          %1449 = vmatprep.subr.mxu0 0.0
          %1450 = vmatpush2.msra.mxu0 %v1281
          %1451 = vmatprep.subr.mxu0 0.0
          %1452 = vmatpush2.msra.mxu0 %v1280
          %1453 = vmatprep.mubr.f32.mxu0 %v1314
          %1454 = vmatmul.mubr.f32.gmra.mxu0 %v1312
          %v1455 = vpop.f32.mrf.mxu0
          %v1456 = vadd.f32 %v1386, %v1455
          %v1457 = vpop.f32.mrf.mxu0
          %1458 = vdwg.mxu0
          %v1459 = vld [vmem:[#allocation10] sm:$0xff]
          %v1460 = vld [vmem:[#allocation10 + $0x8] sm:$0xff]
          %v1461 = vld [vmem:[#allocation10 + $0x10] sm:$0xff]
          %v1462 = vld [vmem:[#allocation10 + $0x18] sm:$0xff]
          %v1463 = vld [vmem:[#allocation10 + $0x20] sm:$0xff]
          %v1464 = vld [vmem:[#allocation10 + $0x28] sm:$0xff]
          %v1465 = vld [vmem:[#allocation10 + $0x30] sm:$0xff]
          %v1466 = vld [vmem:[#allocation10 + $0x38] sm:$0xff]
          %v1467 = vld [vmem:[#allocation10 + $0x40] sm:$0xff]
          %v1468 = vld [vmem:[#allocation10 + $0x48] sm:$0xff]
          %v1469 = vld [vmem:[#allocation10 + $0x50] sm:$0xff]
          %v1470 = vld [vmem:[#allocation10 + $0x58] sm:$0xff]
          %v1471 = vld [vmem:[#allocation10 + $0x60] sm:$0xff]
          %v1472 = vld [vmem:[#allocation10 + $0x68] sm:$0xff]
          %v1473 = vld [vmem:[#allocation10 + $0x70] sm:$0xff]
          %v1474 = vld [vmem:[#allocation10 + $0x78] sm:$0xff]
          %v1475 = vld [vmem:[#allocation10 + $0x80] sm:$0xff]
          %v1476 = vld [vmem:[#allocation10 + $0x88] sm:$0xff]
          %v1477 = vld [vmem:[#allocation10 + $0x90] sm:$0xff]
          %v1478 = vld [vmem:[#allocation10 + $0x98] sm:$0xff]
          %v1479 = vld [vmem:[#allocation10 + $0xa0] sm:$0xff]
          %v1480 = vld [vmem:[#allocation10 + $0xa8] sm:$0xff]
          %v1481 = vld [vmem:[#allocation10 + $0xb0] sm:$0xff]
          %v1482 = vld [vmem:[#allocation10 + $0xb8] sm:$0xff]
          %v1483 = vld [vmem:[#allocation10 + $0xc0] sm:$0xff]
          %v1484 = vld [vmem:[#allocation10 + $0xc8] sm:$0xff]
          %v1485 = vld [vmem:[#allocation10 + $0xd0] sm:$0xff]
          %v1486 = vld [vmem:[#allocation10 + $0xd8] sm:$0xff]
          %v1487 = vld [vmem:[#allocation10 + $0xe0] sm:$0xff]
          %v1488 = vld [vmem:[#allocation10 + $0xe8] sm:$0xff]
          %v1489 = vld [vmem:[#allocation10 + $0xf0] sm:$0xff]
          %v1490 = vld [vmem:[#allocation10 + $0xf8] sm:$0xff]
          %v1491 = vld [vmem:[#allocation10 + $0x100] sm:$0xff]
          %v1492 = vld [vmem:[#allocation10 + $0x108] sm:$0xff]
          %v1493 = vld [vmem:[#allocation10 + $0x110] sm:$0xff]
          %v1494 = vld [vmem:[#allocation10 + $0x118] sm:$0xff]
          %v1495 = vld [vmem:[#allocation10 + $0x120] sm:$0xff]
          %v1496 = vld [vmem:[#allocation10 + $0x128] sm:$0xff]
          %v1497 = vld [vmem:[#allocation10 + $0x130] sm:$0xff]
          %v1498 = vld [vmem:[#allocation10 + $0x138] sm:$0xff]
          %v1499 = vld [vmem:[#allocation10 + $0x140] sm:$0xff]
          %v1500 = vld [vmem:[#allocation10 + $0x148] sm:$0xff]
          %v1501 = vld [vmem:[#allocation10 + $0x150] sm:$0xff]
          %v1502 = vld [vmem:[#allocation10 + $0x158] sm:$0xff]
          %v1503 = vld [vmem:[#allocation10 + $0x160] sm:$0xff]
          %v1504 = vld [vmem:[#allocation10 + $0x168] sm:$0xff]
          %v1505 = vld [vmem:[#allocation10 + $0x170] sm:$0xff]
          %v1506 = vld [vmem:[#allocation10 + $0x178] sm:$0xff]
          %v1507 = vld [vmem:[#allocation10 + $0x180] sm:$0xff]
          %v1508 = vld [vmem:[#allocation10 + $0x188] sm:$0xff]
          %v1509 = vld [vmem:[#allocation10 + $0x190] sm:$0xff]
          %v1510 = vld [vmem:[#allocation10 + $0x198] sm:$0xff]
          %v1511 = vld [vmem:[#allocation10 + $0x1a0] sm:$0xff]
          %v1512 = vld [vmem:[#allocation10 + $0x1a8] sm:$0xff]
          %v1513 = vld [vmem:[#allocation10 + $0x1b0] sm:$0xff]
          %v1514 = vld [vmem:[#allocation10 + $0x1b8] sm:$0xff]
          %v1515 = vld [vmem:[#allocation10 + $0x1c0] sm:$0xff]
          %v1516 = vld [vmem:[#allocation10 + $0x1c8] sm:$0xff]
          %v1517 = vld [vmem:[#allocation10 + $0x1d0] sm:$0xff]
          %v1518 = vld [vmem:[#allocation10 + $0x1d8] sm:$0xff]
          %v1519 = vld [vmem:[#allocation10 + $0x1e0] sm:$0xff]
          %v1520 = vld [vmem:[#allocation10 + $0x1e8] sm:$0xff]
          %v1521 = vld [vmem:[#allocation10 + $0x1f0] sm:$0xff]
          %v1522 = vld [vmem:[#allocation10 + $0x1f8] sm:$0xff]
          %v1523 = vld [vmem:[#allocation12] sm:$0xff]
          %v1525 = vlaneseq
          %v1526 = vshrl.u32 %v1525, 7
          %v1527 = vsub.s32 0, %v1526
          %v1528 = vrot.slane %v1523, %v1527
          %v1529 = vlaneseq
          %v1530 = vshrl.u32 %v1529, 7
          %v1531 = vsub.s32 1, %v1530
          %v1532 = vrot.slane %v1523, %v1531
          %v1533 = vlaneseq
          %v1534 = vshrl.u32 %v1533, 7
          %v1535 = vsub.s32 2, %v1534
          %v1536 = vrot.slane %v1523, %v1535
          %v1537 = vlaneseq
          %v1538 = vshrl.u32 %v1537, 7
          %v1539 = vsub.s32 3, %v1538
          %v1540 = vrot.slane %v1523, %v1539
          %v1541 = vlaneseq
          %v1542 = vshrl.u32 %v1541, 7
          %v1543 = vsub.s32 4, %v1542
          %v1544 = vrot.slane %v1523, %v1543
          %v1545 = vlaneseq
          %v1546 = vshrl.u32 %v1545, 7
          %v1547 = vsub.s32 5, %v1546
          %v1548 = vrot.slane %v1523, %v1547
          %v1549 = vlaneseq
          %v1550 = vshrl.u32 %v1549, 7
          %v1551 = vsub.s32 6, %v1550
          %v1552 = vrot.slane %v1523, %v1551
          %v1553 = vlaneseq
          %v1554 = vshrl.u32 %v1553, 7
          %v1555 = vsub.s32 7, %v1554
          %v1556 = vrot.slane %v1523, %v1555
          %vm1565 = vcmask 523264
          %v1567 = vsel %vm1565, %v1456, 0
          %1569 = vmatprep.subr.mxu0 0.0
          %1570 = vmatpush1.msra.mxu0 0.0
          %1571 = vmatprep.subr.mxu0 0.0
          %1572 = vmatpush1.msra.mxu0 0.0
          %1573 = vmatprep.subr.mxu0 0.0
          %1574 = vmatpush1.msra.mxu0 0.0
          %1575 = vmatprep.subr.mxu0 0.0
          %1576 = vmatpush1.msra.mxu0 0.0
          %1577 = vmatprep.subr.mxu0 0.0
          %1578 = vmatpush1.msra.mxu0 0.0
          %1579 = vmatprep.subr.mxu0 0.0
          %1580 = vmatpush1.msra.mxu0 0.0
          %1581 = vmatprep.subr.mxu0 0.0
          %1582 = vmatpush1.msra.mxu0 0.0
          %1583 = vmatprep.subr.mxu0 0.0
          %1584 = vmatpush1.msra.mxu0 0.0
          %1585 = vmatprep.subr.mxu0 %v1516
          %1586 = vmatpush1.msra.mxu0 %v1515
          %1587 = vmatprep.subr.mxu0 %v1508
          %1588 = vmatpush1.msra.mxu0 %v1507
          %1589 = vmatprep.subr.mxu0 %v1500
          %1590 = vmatpush1.msra.mxu0 %v1499
          %1591 = vmatprep.subr.mxu0 %v1492
          %1592 = vmatpush1.msra.mxu0 %v1491
          %1593 = vmatprep.subr.mxu0 %v1484
          %1594 = vmatpush1.msra.mxu0 %v1483
          %1595 = vmatprep.subr.mxu0 %v1476
          %1596 = vmatpush1.msra.mxu0 %v1475
          %1597 = vmatprep.subr.mxu0 %v1468
          %1598 = vmatpush1.msra.mxu0 %v1467
          %1599 = vmatprep.subr.mxu0 %v1460
          %1600 = vmatpush1.msra.mxu0 %v1459
          %1601 = vmatprep.subr.mxu0 0.0
          %1602 = vmatpush2.msra.mxu0 0.0
          %1603 = vmatprep.subr.mxu0 0.0
          %1604 = vmatpush2.msra.mxu0 0.0
          %1605 = vmatprep.subr.mxu0 0.0
          %1606 = vmatpush2.msra.mxu0 0.0
          %1607 = vmatprep.subr.mxu0 0.0
          %1608 = vmatpush2.msra.mxu0 0.0
          %1609 = vmatprep.subr.mxu0 0.0
          %1610 = vmatpush2.msra.mxu0 0.0
          %1611 = vmatprep.subr.mxu0 0.0
          %1612 = vmatpush2.msra.mxu0 0.0
          %1613 = vmatprep.subr.mxu0 0.0
          %1614 = vmatpush2.msra.mxu0 0.0
          %1615 = vmatprep.subr.mxu0 0.0
          %1616 = vmatpush2.msra.mxu0 0.0
          %1617 = vmatprep.subr.mxu0 0.0
          %1618 = vmatpush2.msra.mxu0 0.0
          %1619 = vmatprep.subr.mxu0 0.0
          %1620 = vmatpush2.msra.mxu0 0.0
          %1621 = vmatprep.subr.mxu0 0.0
          %1622 = vmatpush2.msra.mxu0 0.0
          %1623 = vmatprep.subr.mxu0 0.0
          %1624 = vmatpush2.msra.mxu0 0.0
          %1625 = vmatprep.subr.mxu0 0.0
          %1626 = vmatpush2.msra.mxu0 0.0
          %1627 = vmatprep.subr.mxu0 0.0
          %1628 = vmatpush2.msra.mxu0 0.0
          %1629 = vmatprep.subr.mxu0 0.0
          %1630 = vmatpush2.msra.mxu0 0.0
          %1631 = vmatprep.subr.mxu0 0.0
          %1632 = vmatpush2.msra.mxu0 0.0
          %1633 = vmatprep.mubr.f32.mxu0 0.0
          %1634 = vmatmul.mubr.f32.gmra.mxu0 %v1567
          %v1635 = vpop.f32.mrf.mxu0
          %v1636 = vadd.f32 %v1528, %v1635
          %v1637 = vpop.f32.mrf.mxu0
          %v1638 = vadd.f32 %v1532, %v1637
          %1639 = vdwg.mxu0
          %1640 = vmatprep.subr.mxu0 0.0
          %1641 = vmatpush1.msra.mxu0 0.0
          %1642 = vmatprep.subr.mxu0 0.0
          %1643 = vmatpush1.msra.mxu0 0.0
          %1644 = vmatprep.subr.mxu0 0.0
          %1645 = vmatpush1.msra.mxu0 0.0
          %1646 = vmatprep.subr.mxu0 0.0
          %1647 = vmatpush1.msra.mxu0 0.0
          %1648 = vmatprep.subr.mxu0 0.0
          %1649 = vmatpush1.msra.mxu0 0.0
          %1650 = vmatprep.subr.mxu0 0.0
          %1651 = vmatpush1.msra.mxu0 0.0
          %1652 = vmatprep.subr.mxu0 0.0
          %1653 = vmatpush1.msra.mxu0 0.0
          %1654 = vmatprep.subr.mxu0 0.0
          %1655 = vmatpush1.msra.mxu0 0.0
          %1656 = vmatprep.subr.mxu0 %v1518
          %1657 = vmatpush1.msra.mxu0 %v1517
          %1658 = vmatprep.subr.mxu0 %v1510
          %1659 = vmatpush1.msra.mxu0 %v1509
          %1660 = vmatprep.subr.mxu0 %v1502
          %1661 = vmatpush1.msra.mxu0 %v1501
          %1662 = vmatprep.subr.mxu0 %v1494
          %1663 = vmatpush1.msra.mxu0 %v1493
          %1664 = vmatprep.subr.mxu0 %v1486
          %1665 = vmatpush1.msra.mxu0 %v1485
          %1666 = vmatprep.subr.mxu0 %v1478
          %1667 = vmatpush1.msra.mxu0 %v1477
          %1668 = vmatprep.subr.mxu0 %v1470
          %1669 = vmatpush1.msra.mxu0 %v1469
          %1670 = vmatprep.subr.mxu0 %v1462
          %1671 = vmatpush1.msra.mxu0 %v1461
          %1672 = vmatprep.subr.mxu0 0.0
          %1673 = vmatpush2.msra.mxu0 0.0
          %1674 = vmatprep.subr.mxu0 0.0
          %1675 = vmatpush2.msra.mxu0 0.0
          %1676 = vmatprep.subr.mxu0 0.0
          %1677 = vmatpush2.msra.mxu0 0.0
          %1678 = vmatprep.subr.mxu0 0.0
          %1679 = vmatpush2.msra.mxu0 0.0
          %1680 = vmatprep.subr.mxu0 0.0
          %1681 = vmatpush2.msra.mxu0 0.0
          %1682 = vmatprep.subr.mxu0 0.0
          %1683 = vmatpush2.msra.mxu0 0.0
          %1684 = vmatprep.subr.mxu0 0.0
          %1685 = vmatpush2.msra.mxu0 0.0
          %1686 = vmatprep.subr.mxu0 0.0
          %1687 = vmatpush2.msra.mxu0 0.0
          %1688 = vmatprep.subr.mxu0 0.0
          %1689 = vmatpush2.msra.mxu0 0.0
          %1690 = vmatprep.subr.mxu0 0.0
          %1691 = vmatpush2.msra.mxu0 0.0
          %1692 = vmatprep.subr.mxu0 0.0
          %1693 = vmatpush2.msra.mxu0 0.0
          %1694 = vmatprep.subr.mxu0 0.0
          %1695 = vmatpush2.msra.mxu0 0.0
          %1696 = vmatprep.subr.mxu0 0.0
          %1697 = vmatpush2.msra.mxu0 0.0
          %1698 = vmatprep.subr.mxu0 0.0
          %1699 = vmatpush2.msra.mxu0 0.0
          %1700 = vmatprep.subr.mxu0 0.0
          %1701 = vmatpush2.msra.mxu0 0.0
          %1702 = vmatprep.subr.mxu0 0.0
          %1703 = vmatpush2.msra.mxu0 0.0
          %1704 = vmatprep.mubr.f32.mxu0 0.0
          %1705 = vmatmul.mubr.f32.gmra.mxu0 %v1567
          %v1706 = vpop.f32.mrf.mxu0
          %v1707 = vadd.f32 %v1536, %v1706
          %v1708 = vpop.f32.mrf.mxu0
          %v1709 = vadd.f32 %v1540, %v1708
          %1710 = vdwg.mxu0
          %1711 = vmatprep.subr.mxu0 0.0
          %1712 = vmatpush1.msra.mxu0 0.0
          %1713 = vmatprep.subr.mxu0 0.0
          %1714 = vmatpush1.msra.mxu0 0.0
          %1715 = vmatprep.subr.mxu0 0.0
          %1716 = vmatpush1.msra.mxu0 0.0
          %1717 = vmatprep.subr.mxu0 0.0
          %1718 = vmatpush1.msra.mxu0 0.0
          %1719 = vmatprep.subr.mxu0 0.0
          %1720 = vmatpush1.msra.mxu0 0.0
          %1721 = vmatprep.subr.mxu0 0.0
          %1722 = vmatpush1.msra.mxu0 0.0
          %1723 = vmatprep.subr.mxu0 0.0
          %1724 = vmatpush1.msra.mxu0 0.0
          %1725 = vmatprep.subr.mxu0 0.0
          %1726 = vmatpush1.msra.mxu0 0.0
          %1727 = vmatprep.subr.mxu0 %v1520
          %1728 = vmatpush1.msra.mxu0 %v1519
          %1729 = vmatprep.subr.mxu0 %v1512
          %1730 = vmatpush1.msra.mxu0 %v1511
          %1731 = vmatprep.subr.mxu0 %v1504
          %1732 = vmatpush1.msra.mxu0 %v1503
          %1733 = vmatprep.subr.mxu0 %v1496
          %1734 = vmatpush1.msra.mxu0 %v1495
          %1735 = vmatprep.subr.mxu0 %v1488
          %1736 = vmatpush1.msra.mxu0 %v1487
          %1737 = vmatprep.subr.mxu0 %v1480
          %1738 = vmatpush1.msra.mxu0 %v1479
          %1739 = vmatprep.subr.mxu0 %v1472
          %1740 = vmatpush1.msra.mxu0 %v1471
          %1741 = vmatprep.subr.mxu0 %v1464
          %1742 = vmatpush1.msra.mxu0 %v1463
          %1743 = vmatprep.subr.mxu0 0.0
          %1744 = vmatpush2.msra.mxu0 0.0
          %1745 = vmatprep.subr.mxu0 0.0
          %1746 = vmatpush2.msra.mxu0 0.0
          %1747 = vmatprep.subr.mxu0 0.0
          %1748 = vmatpush2.msra.mxu0 0.0
          %1749 = vmatprep.subr.mxu0 0.0
          %1750 = vmatpush2.msra.mxu0 0.0
          %1751 = vmatprep.subr.mxu0 0.0
          %1752 = vmatpush2.msra.mxu0 0.0
          %1753 = vmatprep.subr.mxu0 0.0
          %1754 = vmatpush2.msra.mxu0 0.0
          %1755 = vmatprep.subr.mxu0 0.0
          %1756 = vmatpush2.msra.mxu0 0.0
          %1757 = vmatprep.subr.mxu0 0.0
          %1758 = vmatpush2.msra.mxu0 0.0
          %1759 = vmatprep.subr.mxu0 0.0
          %1760 = vmatpush2.msra.mxu0 0.0
          %1761 = vmatprep.subr.mxu0 0.0
          %1762 = vmatpush2.msra.mxu0 0.0
          %1763 = vmatprep.subr.mxu0 0.0
          %1764 = vmatpush2.msra.mxu0 0.0
          %1765 = vmatprep.subr.mxu0 0.0
          %1766 = vmatpush2.msra.mxu0 0.0
          %1767 = vmatprep.subr.mxu0 0.0
          %1768 = vmatpush2.msra.mxu0 0.0
          %1769 = vmatprep.subr.mxu0 0.0
          %1770 = vmatpush2.msra.mxu0 0.0
          %1771 = vmatprep.subr.mxu0 0.0
          %1772 = vmatpush2.msra.mxu0 0.0
          %1773 = vmatprep.subr.mxu0 0.0
          %1774 = vmatpush2.msra.mxu0 0.0
          %1775 = vmatprep.mubr.f32.mxu0 0.0
          %1776 = vmatmul.mubr.f32.gmra.mxu0 %v1567
          %v1777 = vpop.f32.mrf.mxu0
          %v1778 = vadd.f32 %v1544, %v1777
          %v1779 = vpop.f32.mrf.mxu0
          %v1780 = vadd.f32 %v1548, %v1779
          %1781 = vdwg.mxu0
          %1782 = vmatprep.subr.mxu0 0.0
          %1783 = vmatpush1.msra.mxu0 0.0
          %1784 = vmatprep.subr.mxu0 0.0
          %1785 = vmatpush1.msra.mxu0 0.0
          %1786 = vmatprep.subr.mxu0 0.0
          %1787 = vmatpush1.msra.mxu0 0.0
          %1788 = vmatprep.subr.mxu0 0.0
          %1789 = vmatpush1.msra.mxu0 0.0
          %1790 = vmatprep.subr.mxu0 0.0
          %1791 = vmatpush1.msra.mxu0 0.0
          %1792 = vmatprep.subr.mxu0 0.0
          %1793 = vmatpush1.msra.mxu0 0.0
          %1794 = vmatprep.subr.mxu0 0.0
          %1795 = vmatpush1.msra.mxu0 0.0
          %1796 = vmatprep.subr.mxu0 0.0
          %1797 = vmatpush1.msra.mxu0 0.0
          %1798 = vmatprep.subr.mxu0 %v1522
          %1799 = vmatpush1.msra.mxu0 %v1521
          %1800 = vmatprep.subr.mxu0 %v1514
          %1801 = vmatpush1.msra.mxu0 %v1513
          %1802 = vmatprep.subr.mxu0 %v1506
          %1803 = vmatpush1.msra.mxu0 %v1505
          %1804 = vmatprep.subr.mxu0 %v1498
          %1805 = vmatpush1.msra.mxu0 %v1497
          %1806 = vmatprep.subr.mxu0 %v1490
          %1807 = vmatpush1.msra.mxu0 %v1489
          %1808 = vmatprep.subr.mxu0 %v1482
          %1809 = vmatpush1.msra.mxu0 %v1481
          %1810 = vmatprep.subr.mxu0 %v1474
          %1811 = vmatpush1.msra.mxu0 %v1473
          %1812 = vmatprep.subr.mxu0 %v1466
          %1813 = vmatpush1.msra.mxu0 %v1465
          %1814 = vmatprep.subr.mxu0 0.0
          %1815 = vmatpush2.msra.mxu0 0.0
          %1816 = vmatprep.subr.mxu0 0.0
          %1817 = vmatpush2.msra.mxu0 0.0
          %1818 = vmatprep.subr.mxu0 0.0
          %1819 = vmatpush2.msra.mxu0 0.0
          %1820 = vmatprep.subr.mxu0 0.0
          %1821 = vmatpush2.msra.mxu0 0.0
          %1822 = vmatprep.subr.mxu0 0.0
          %1823 = vmatpush2.msra.mxu0 0.0
          %1824 = vmatprep.subr.mxu0 0.0
          %1825 = vmatpush2.msra.mxu0 0.0
          %1826 = vmatprep.subr.mxu0 0.0
          %1827 = vmatpush2.msra.mxu0 0.0
          %1828 = vmatprep.subr.mxu0 0.0
          %1829 = vmatpush2.msra.mxu0 0.0
          %1830 = vmatprep.subr.mxu0 0.0
          %1831 = vmatpush2.msra.mxu0 0.0
          %1832 = vmatprep.subr.mxu0 0.0
          %1833 = vmatpush2.msra.mxu0 0.0
          %1834 = vmatprep.subr.mxu0 0.0
          %1835 = vmatpush2.msra.mxu0 0.0
          %1836 = vmatprep.subr.mxu0 0.0
          %1837 = vmatpush2.msra.mxu0 0.0
          %1838 = vmatprep.subr.mxu0 0.0
          %1839 = vmatpush2.msra.mxu0 0.0
          %1840 = vmatprep.subr.mxu0 0.0
          %1841 = vmatpush2.msra.mxu0 0.0
          %1842 = vmatprep.subr.mxu0 0.0
          %1843 = vmatpush2.msra.mxu0 0.0
          %1844 = vmatprep.subr.mxu0 0.0
          %1845 = vmatpush2.msra.mxu0 0.0
          %1846 = vmatprep.mubr.f32.mxu0 0.0
          %1847 = vmatmul.mubr.f32.gmra.mxu0 %v1567
          %v1848 = vpop.f32.mrf.mxu0
          %v1849 = vadd.f32 %v1552, %v1848
          %v1850 = vpop.f32.mrf.mxu0
          %v1851 = vadd.f32 %v1556, %v1850
          %1852 = vdwg.mxu0
          %v1853 = vpack.c.bf16 %v1636, %v1636
          %v1854 = vpack.c.bf16 %v1638, %v1638
          %v1855 = vpack.c.bf16 %v1707, %v1707
          %v1856 = vpack.c.bf16 %v1709, %v1709
          %v1857 = vpack.c.bf16 %v1778, %v1778
          %v1858 = vpack.c.bf16 %v1780, %v1780
          %v1859 = vpack.c.bf16 %v1849, %v1849
          %v1860 = vpack.c.bf16 %v1851, %v1851
          %v1869 = vcombine.low %v1853, %v1854
          %v1870 = vcombine.low %v1855, %v1856
          %v1871 = vcombine.low %v1857, %v1858
          %v1872 = vcombine.low %v1859, %v1860
          %v1874 = vunpack.c.l.s4 1966171168
          %v1875 = vunpack.c.0.s8 %v1874
          %v1876 = vlaneseq
          %v1877 = vshrl.u32 %v1876, 7
          %v1878 = vsub.s32 %v1875, %v1877
          %v1879 = vrot.slane %v1869, %v1878
          %v1881 = vunpack.c.l.s4 1966171168
          %v1882 = vunpack.c.0.s8 %v1881
          %v1883 = vlaneseq
          %v1884 = vshrl.u32 %v1883, 7
          %v1885 = vsub.s32 %v1882, %v1884
          %v1886 = vrot.slane %v1870, %v1885
          %v1888 = vunpack.c.l.s4 1966171168
          %v1889 = vunpack.c.0.s8 %v1888
          %v1890 = vlaneseq
          %v1891 = vshrl.u32 %v1890, 7
          %v1892 = vsub.s32 %v1889, %v1891
          %v1893 = vrot.slane %v1871, %v1892
          %v1895 = vunpack.c.l.s4 1966171168
          %v1896 = vunpack.c.0.s8 %v1895
          %v1897 = vlaneseq
          %v1898 = vshrl.u32 %v1897, 7
          %v1899 = vsub.s32 %v1896, %v1898
          %v1900 = vrot.slane %v1872, %v1899
          %v1901 = vcombine.low %v1879, %v1886
          %v1902 = vcombine.low %v1893, %v1900
          %v1904 = vunpack.c.l.s4 1966171168
          %v1905 = vunpack.c.0.s8 %v1904
          %v1906 = vlaneseq
          %v1907 = vshrl.u32 %v1906, 7
          %v1908 = vsub.s32 %v1905, %v1907
          %v1909 = vrot.slane %v1901, %v1908
          %v1911 = vunpack.c.l.s4 1966171168
          %v1912 = vunpack.c.0.s8 %v1911
          %v1913 = vlaneseq
          %v1914 = vshrl.u32 %v1913, 7
          %v1915 = vsub.s32 %v1912, %v1914
          %v1916 = vrot.slane %v1902, %v1915
          %v1917 = vcombine.low %v1909, %v1916
          %1919 = vst [vmem:[#allocation2] sm:$0xff] %v1917
          %vm1920 = vcmask 58368
          %1921 = vst.msk [vmem:[#allocation3] sm:$0x3] %vm1920, 0.0
        $region96: #{tpu_custom_call.1} parent=59 // pred_fallthru
          _
        %v1922 = vld [vmem:[#allocation2] sm:$0xff]
        %v1923 = vld [vmem:[%s488] sm:$0xff]
        %v1924 = vld [vmem:[%s488 + $0x8] sm:$0xff]
        %v1925 = vld [vmem:[%s488 + $0x10] sm:$0xff]
        %v1926 = vld [vmem:[%s488 + $0x18] sm:$0xff]
        %v1927 = vld [vmem:[%s488 + $0x20] sm:$0xff]
        %v1928 = vld [vmem:[%s488 + $0x28] sm:$0xff]
        %v1929 = vld [vmem:[%s488 + $0x30] sm:$0xff]
        %v1930 = vld [vmem:[%s488 + $0x38] sm:$0xff]
        %v1931 = vld [vmem:[%s488 + $0x40] sm:$0xff]
        %v1932 = vld [vmem:[%s488 + $0x48] sm:$0xff]
        %v1933 = vld [vmem:[%s488 + $0x50] sm:$0xff]
        %v1934 = vld [vmem:[%s488 + $0x58] sm:$0xff]
        %v1935 = vld [vmem:[%s488 + $0x60] sm:$0xff]
        %v1936 = vld [vmem:[%s488 + $0x68] sm:$0xff]
        %v1937 = vld [vmem:[%s488 + $0x70] sm:$0xff]
        %v1938 = vld [vmem:[%s488 + $0x78] sm:$0xff]
        %v1939 = vld [vmem:[%s488 + $0x80] sm:$0xff]
        %v1940 = vld [vmem:[%s488 + $0x88] sm:$0xff]
        %v1941 = vld [vmem:[%s488 + $0x90] sm:$0xff]
        %v1942 = vld [vmem:[%s488 + $0x98] sm:$0xff]
        %v1943 = vld [vmem:[%s488 + $0xa0] sm:$0xff]
        %v1944 = vld [vmem:[%s488 + $0xa8] sm:$0xff]
        %v1945 = vld [vmem:[%s488 + $0xb0] sm:$0xff]
        %v1946 = vld [vmem:[%s488 + $0xb8] sm:$0xff]
        %v1947 = vld [vmem:[%s488 + $0xc0] sm:$0xff]
        %v1948 = vld [vmem:[%s488 + $0xc8] sm:$0xff]
        %v1949 = vld [vmem:[%s488 + $0xd0] sm:$0xff]
        %v1950 = vld [vmem:[%s488 + $0xd8] sm:$0xff]
        %v1951 = vld [vmem:[%s488 + $0xe0] sm:$0xff]
        %v1952 = vld [vmem:[%s488 + $0xe8] sm:$0xff]
        %v1953 = vld [vmem:[%s488 + $0xf0] sm:$0xff]
        %v1954 = vld [vmem:[%s488 + $0xf8] sm:$0xff]
        %v1955 = vld [vmem:[%s488 + $0x100] sm:$0xff]
        %v1956 = vld [vmem:[%s488 + $0x108] sm:$0xff]
        %v1957 = vld [vmem:[%s488 + $0x110] sm:$0xff]
        %v1958 = vld [vmem:[%s488 + $0x118] sm:$0xff]
        %v1959 = vld [vmem:[%s488 + $0x120] sm:$0xff]
        %v1960 = vld [vmem:[%s488 + $0x128] sm:$0xff]
        %v1961 = vld [vmem:[%s488 + $0x130] sm:$0xff]
        %v1962 = vld [vmem:[%s488 + $0x138] sm:$0xff]
        %v1963 = vld [vmem:[%s488 + $0x140] sm:$0xff]
        %v1964 = vld [vmem:[%s488 + $0x148] sm:$0xff]
        %v1965 = vld [vmem:[%s488 + $0x150] sm:$0xff]
        %v1966 = vld [vmem:[%s488 + $0x158] sm:$0xff]
        %v1967 = vld [vmem:[%s488 + $0x160] sm:$0xff]
        %v1968 = vld [vmem:[%s488 + $0x168] sm:$0xff]
        %v1969 = vld [vmem:[%s488 + $0x170] sm:$0xff]
        %v1970 = vld [vmem:[%s488 + $0x178] sm:$0xff]
        %v1971 = vld [vmem:[%s488 + $0x180] sm:$0xff]
        %v1972 = vld [vmem:[%s488 + $0x188] sm:$0xff]
        %v1973 = vld [vmem:[%s488 + $0x190] sm:$0xff]
        %v1974 = vld [vmem:[%s488 + $0x198] sm:$0xff]
        %v1975 = vld [vmem:[%s488 + $0x1a0] sm:$0xff]
        %v1976 = vld [vmem:[%s488 + $0x1a8] sm:$0xff]
        %v1977 = vld [vmem:[%s488 + $0x1b0] sm:$0xff]
        %v1978 = vld [vmem:[%s488 + $0x1b8] sm:$0xff]
        %v1979 = vld [vmem:[%s488 + $0x1c0] sm:$0xff]
        %v1980 = vld [vmem:[%s488 + $0x1c8] sm:$0xff]
        %v1981 = vld [vmem:[%s488 + $0x1d0] sm:$0xff]
        %v1982 = vld [vmem:[%s488 + $0x1d8] sm:$0xff]
        %v1983 = vld [vmem:[%s488 + $0x1e0] sm:$0xff]
        %v1984 = vld [vmem:[%s488 + $0x1e8] sm:$0xff]
        %v1985 = vld [vmem:[%s488 + $0x1f0] sm:$0xff]
        %v1986 = vld [vmem:[%s488 + $0x1f8] sm:$0xff]
        %v1987 = vld [vmem:[%s488 + $0x200] sm:$0xff]
        %v1988 = vld [vmem:[%s488 + $0x208] sm:$0xff]
        %v1989 = vld [vmem:[%s488 + $0x210] sm:$0xff]
        %v1990 = vld [vmem:[%s488 + $0x218] sm:$0xff]
        %v1991 = vld [vmem:[%s488 + $0x220] sm:$0xff]
        %v1992 = vld [vmem:[%s488 + $0x228] sm:$0xff]
        %v1993 = vld [vmem:[%s488 + $0x230] sm:$0xff]
        %v1994 = vld [vmem:[%s488 + $0x238] sm:$0xff]
        %v1995 = vld [vmem:[%s488 + $0x240] sm:$0xff]
        %v1996 = vld [vmem:[%s488 + $0x248] sm:$0xff]
        %v1997 = vld [vmem:[%s488 + $0x250] sm:$0xff]
        %v1998 = vld [vmem:[%s488 + $0x258] sm:$0xff]
        %v1999 = vld [vmem:[%s488 + $0x260] sm:$0xff]
        %v2000 = vld [vmem:[%s488 + $0x268] sm:$0xff]
        %v2001 = vld [vmem:[%s488 + $0x270] sm:$0xff]
        %v2002 = vld [vmem:[%s488 + $0x278] sm:$0xff]
        %v2003 = vld [vmem:[%s488 + $0x280] sm:$0xff]
        %v2004 = vld [vmem:[%s488 + $0x288] sm:$0xff]
        %v2005 = vld [vmem:[%s488 + $0x290] sm:$0xff]
        %v2006 = vld [vmem:[%s488 + $0x298] sm:$0xff]
        %v2007 = vld [vmem:[%s488 + $0x2a0] sm:$0xff]
        %v2008 = vld [vmem:[%s488 + $0x2a8] sm:$0xff]
        %v2009 = vld [vmem:[%s488 + $0x2b0] sm:$0xff]
        %v2010 = vld [vmem:[%s488 + $0x2b8] sm:$0xff]
        %v2011 = vld [vmem:[%s488 + $0x2c0] sm:$0xff]
        %v2012 = vld [vmem:[%s488 + $0x2c8] sm:$0xff]
        %v2013 = vld [vmem:[%s488 + $0x2d0] sm:$0xff]
        %v2014 = vld [vmem:[%s488 + $0x2d8] sm:$0xff]
        %v2015 = vld [vmem:[%s488 + $0x2e0] sm:$0xff]
        %v2016 = vld [vmem:[%s488 + $0x2e8] sm:$0xff]
        %v2017 = vld [vmem:[%s488 + $0x2f0] sm:$0xff]
        %v2018 = vld [vmem:[%s488 + $0x2f8] sm:$0xff]
        %v2019 = vld [vmem:[%s488 + $0x300] sm:$0xff]
        %v2020 = vld [vmem:[%s488 + $0x308] sm:$0xff]
        %v2021 = vld [vmem:[%s488 + $0x310] sm:$0xff]
        %v2022 = vld [vmem:[%s488 + $0x318] sm:$0xff]
        %v2023 = vld [vmem:[%s488 + $0x320] sm:$0xff]
        %v2024 = vld [vmem:[%s488 + $0x328] sm:$0xff]
        %v2025 = vld [vmem:[%s488 + $0x330] sm:$0xff]
        %v2026 = vld [vmem:[%s488 + $0x338] sm:$0xff]
        %v2027 = vld [vmem:[%s488 + $0x340] sm:$0xff]
        %v2028 = vld [vmem:[%s488 + $0x348] sm:$0xff]
        %v2029 = vld [vmem:[%s488 + $0x350] sm:$0xff]
        %v2030 = vld [vmem:[%s488 + $0x358] sm:$0xff]
        %v2031 = vld [vmem:[%s488 + $0x360] sm:$0xff]
        %v2032 = vld [vmem:[%s488 + $0x368] sm:$0xff]
        %v2033 = vld [vmem:[%s488 + $0x370] sm:$0xff]
        %v2034 = vld [vmem:[%s488 + $0x378] sm:$0xff]
        %v2035 = vld [vmem:[%s488 + $0x380] sm:$0xff]
        %v2036 = vld [vmem:[%s488 + $0x388] sm:$0xff]
        %v2037 = vld [vmem:[%s488 + $0x390] sm:$0xff]
        %v2038 = vld [vmem:[%s488 + $0x398] sm:$0xff]
        %v2039 = vld [vmem:[%s488 + $0x3a0] sm:$0xff]
        %v2040 = vld [vmem:[%s488 + $0x3a8] sm:$0xff]
        %v2041 = vld [vmem:[%s488 + $0x3b0] sm:$0xff]
        %v2042 = vld [vmem:[%s488 + $0x3b8] sm:$0xff]
        %v2043 = vld [vmem:[%s488 + $0x3c0] sm:$0xff]
        %v2044 = vld [vmem:[%s488 + $0x3c8] sm:$0xff]
        %v2045 = vld [vmem:[%s488 + $0x3d0] sm:$0xff]
        %v2046 = vld [vmem:[%s488 + $0x3d8] sm:$0xff]
        %v2047 = vld [vmem:[%s488 + $0x3e0] sm:$0xff]
        %v2048 = vld [vmem:[%s488 + $0x3e8] sm:$0xff]
        %v2049 = vld [vmem:[%s488 + $0x3f0] sm:$0xff]
        %v2050 = vld [vmem:[%s488 + $0x3f8] sm:$0xff]
        %v2051 = vld [vmem:[%s488 + $0x400] sm:$0xff]
        %v2052 = vld [vmem:[%s488 + $0x408] sm:$0xff]
        %v2053 = vld [vmem:[%s488 + $0x410] sm:$0xff]
        %v2054 = vld [vmem:[%s488 + $0x418] sm:$0xff]
        %v2055 = vld [vmem:[%s488 + $0x420] sm:$0xff]
        %v2056 = vld [vmem:[%s488 + $0x428] sm:$0xff]
        %v2057 = vld [vmem:[%s488 + $0x430] sm:$0xff]
        %v2058 = vld [vmem:[%s488 + $0x438] sm:$0xff]
        %v2059 = vld [vmem:[%s488 + $0x440] sm:$0xff]
        %v2060 = vld [vmem:[%s488 + $0x448] sm:$0xff]
        %v2061 = vld [vmem:[%s488 + $0x450] sm:$0xff]
        %v2062 = vld [vmem:[%s488 + $0x458] sm:$0xff]
        %v2063 = vld [vmem:[%s488 + $0x460] sm:$0xff]
        %v2064 = vld [vmem:[%s488 + $0x468] sm:$0xff]
        %v2065 = vld [vmem:[%s488 + $0x470] sm:$0xff]
        %v2066 = vld [vmem:[%s488 + $0x478] sm:$0xff]
        %v2067 = vld [vmem:[%s488 + $0x480] sm:$0xff]
        %v2068 = vld [vmem:[%s488 + $0x488] sm:$0xff]
        %v2069 = vld [vmem:[%s488 + $0x490] sm:$0xff]
        %v2070 = vld [vmem:[%s488 + $0x498] sm:$0xff]
        %v2071 = vld [vmem:[%s488 + $0x4a0] sm:$0xff]
        %v2072 = vld [vmem:[%s488 + $0x4a8] sm:$0xff]
        %v2073 = vld [vmem:[%s488 + $0x4b0] sm:$0xff]
        %v2074 = vld [vmem:[%s488 + $0x4b8] sm:$0xff]
        %v2075 = vld [vmem:[%s488 + $0x4c0] sm:$0xff]
        %v2076 = vld [vmem:[%s488 + $0x4c8] sm:$0xff]
        %v2077 = vld [vmem:[%s488 + $0x4d0] sm:$0xff]
        %v2078 = vld [vmem:[%s488 + $0x4d8] sm:$0xff]
        %v2079 = vld [vmem:[%s488 + $0x4e0] sm:$0xff]
        %v2080 = vld [vmem:[%s488 + $0x4e8] sm:$0xff]
        %v2081 = vld [vmem:[%s488 + $0x4f0] sm:$0xff]
        %v2082 = vld [vmem:[%s488 + $0x4f8] sm:$0xff]
        %v2083 = vld [vmem:[%s488 + $0x500] sm:$0xff]
        %v2084 = vld [vmem:[%s488 + $0x508] sm:$0xff]
        %v2085 = vld [vmem:[%s488 + $0x510] sm:$0xff]
        %v2086 = vld [vmem:[%s488 + $0x518] sm:$0xff]
        %v2087 = vld [vmem:[%s488 + $0x520] sm:$0xff]
        %v2088 = vld [vmem:[%s488 + $0x528] sm:$0xff]
        %v2089 = vld [vmem:[%s488 + $0x530] sm:$0xff]
        %v2090 = vld [vmem:[%s488 + $0x538] sm:$0xff]
        %v2091 = vld [vmem:[%s488 + $0x540] sm:$0xff]
        %v2092 = vld [vmem:[%s488 + $0x548] sm:$0xff]
        %v2093 = vld [vmem:[%s488 + $0x550] sm:$0xff]
        %v2094 = vld [vmem:[%s488 + $0x558] sm:$0xff]
        %v2095 = vld [vmem:[%s488 + $0x560] sm:$0xff]
        %v2096 = vld [vmem:[%s488 + $0x568] sm:$0xff]
        %v2097 = vld [vmem:[%s488 + $0x570] sm:$0xff]
        %v2098 = vld [vmem:[%s488 + $0x578] sm:$0xff]
        %v2099 = vld [vmem:[%s488 + $0x580] sm:$0xff]
        %v2100 = vld [vmem:[%s488 + $0x588] sm:$0xff]
        %v2101 = vld [vmem:[%s488 + $0x590] sm:$0xff]
        %v2102 = vld [vmem:[%s488 + $0x598] sm:$0xff]
        %v2103 = vld [vmem:[%s488 + $0x5a0] sm:$0xff]
        %v2104 = vld [vmem:[%s488 + $0x5a8] sm:$0xff]
        %v2105 = vld [vmem:[%s488 + $0x5b0] sm:$0xff]
        %v2106 = vld [vmem:[%s488 + $0x5b8] sm:$0xff]
        %v2107 = vld [vmem:[%s488 + $0x5c0] sm:$0xff]
        %v2108 = vld [vmem:[%s488 + $0x5c8] sm:$0xff]
        %v2109 = vld [vmem:[%s488 + $0x5d0] sm:$0xff]
        %v2110 = vld [vmem:[%s488 + $0x5d8] sm:$0xff]
        %v2111 = vld [vmem:[%s488 + $0x5e0] sm:$0xff]
        %v2112 = vld [vmem:[%s488 + $0x5e8] sm:$0xff]
        %v2113 = vld [vmem:[%s488 + $0x5f0] sm:$0xff]
        %v2114 = vld [vmem:[%s488 + $0x5f8] sm:$0xff]
        %v2115 = vld [vmem:[%s488 + $0x600] sm:$0xff]
        %v2116 = vld [vmem:[%s488 + $0x608] sm:$0xff]
        %v2117 = vld [vmem:[%s488 + $0x610] sm:$0xff]
        %v2118 = vld [vmem:[%s488 + $0x618] sm:$0xff]
        %v2119 = vld [vmem:[%s488 + $0x620] sm:$0xff]
        %v2120 = vld [vmem:[%s488 + $0x628] sm:$0xff]
        %v2121 = vld [vmem:[%s488 + $0x630] sm:$0xff]
        %v2122 = vld [vmem:[%s488 + $0x638] sm:$0xff]
        %v2123 = vld [vmem:[%s488 + $0x640] sm:$0xff]
        %v2124 = vld [vmem:[%s488 + $0x648] sm:$0xff]
        %v2125 = vld [vmem:[%s488 + $0x650] sm:$0xff]
        %v2126 = vld [vmem:[%s488 + $0x658] sm:$0xff]
        %v2127 = vld [vmem:[%s488 + $0x660] sm:$0xff]
        %v2128 = vld [vmem:[%s488 + $0x668] sm:$0xff]
        %v2129 = vld [vmem:[%s488 + $0x670] sm:$0xff]
        %v2130 = vld [vmem:[%s488 + $0x678] sm:$0xff]
        %v2131 = vld [vmem:[%s488 + $0x680] sm:$0xff]
        %v2132 = vld [vmem:[%s488 + $0x688] sm:$0xff]
        %v2133 = vld [vmem:[%s488 + $0x690] sm:$0xff]
        %v2134 = vld [vmem:[%s488 + $0x698] sm:$0xff]
        %v2135 = vld [vmem:[%s488 + $0x6a0] sm:$0xff]
        %v2136 = vld [vmem:[%s488 + $0x6a8] sm:$0xff]
        %v2137 = vld [vmem:[%s488 + $0x6b0] sm:$0xff]
        %v2138 = vld [vmem:[%s488 + $0x6b8] sm:$0xff]
        %v2139 = vld [vmem:[%s488 + $0x6c0] sm:$0xff]
        %v2140 = vld [vmem:[%s488 + $0x6c8] sm:$0xff]
        %v2141 = vld [vmem:[%s488 + $0x6d0] sm:$0xff]
        %v2142 = vld [vmem:[%s488 + $0x6d8] sm:$0xff]
        %v2143 = vld [vmem:[%s488 + $0x6e0] sm:$0xff]
        %v2144 = vld [vmem:[%s488 + $0x6e8] sm:$0xff]
        %v2145 = vld [vmem:[%s488 + $0x6f0] sm:$0xff]
        %v2146 = vld [vmem:[%s488 + $0x6f8] sm:$0xff]
        %v2147 = vld [vmem:[%s488 + $0x700] sm:$0xff]
        %v2148 = vld [vmem:[%s488 + $0x708] sm:$0xff]
        %v2149 = vld [vmem:[%s488 + $0x710] sm:$0xff]
        %v2150 = vld [vmem:[%s488 + $0x718] sm:$0xff]
        %v2151 = vld [vmem:[%s488 + $0x720] sm:$0xff]
        %v2152 = vld [vmem:[%s488 + $0x728] sm:$0xff]
        %v2153 = vld [vmem:[%s488 + $0x730] sm:$0xff]
        %v2154 = vld [vmem:[%s488 + $0x738] sm:$0xff]
        %v2155 = vld [vmem:[%s488 + $0x740] sm:$0xff]
        %v2156 = vld [vmem:[%s488 + $0x748] sm:$0xff]
        %v2157 = vld [vmem:[%s488 + $0x750] sm:$0xff]
        %v2158 = vld [vmem:[%s488 + $0x758] sm:$0xff]
        %v2159 = vld [vmem:[%s488 + $0x760] sm:$0xff]
        %v2160 = vld [vmem:[%s488 + $0x768] sm:$0xff]
        %v2161 = vld [vmem:[%s488 + $0x770] sm:$0xff]
        %v2162 = vld [vmem:[%s488 + $0x778] sm:$0xff]
        %v2163 = vld [vmem:[%s488 + $0x780] sm:$0xff]
        %v2164 = vld [vmem:[%s488 + $0x788] sm:$0xff]
        %v2165 = vld [vmem:[%s488 + $0x790] sm:$0xff]
        %v2166 = vld [vmem:[%s488 + $0x798] sm:$0xff]
        %v2167 = vld [vmem:[%s488 + $0x7a0] sm:$0xff]
        %v2168 = vld [vmem:[%s488 + $0x7a8] sm:$0xff]
        %v2169 = vld [vmem:[%s488 + $0x7b0] sm:$0xff]
        %v2170 = vld [vmem:[%s488 + $0x7b8] sm:$0xff]
        %v2171 = vld [vmem:[%s488 + $0x7c0] sm:$0xff]
        %v2172 = vld [vmem:[%s488 + $0x7c8] sm:$0xff]
        %v2173 = vld [vmem:[%s488 + $0x7d0] sm:$0xff]
        %v2174 = vld [vmem:[%s488 + $0x7d8] sm:$0xff]
        %v2175 = vld [vmem:[%s488 + $0x7e0] sm:$0xff]
        %v2176 = vld [vmem:[%s488 + $0x7e8] sm:$0xff]
        %v2177 = vld [vmem:[%s488 + $0x7f0] sm:$0xff]
        %v2178 = vld [vmem:[%s488 + $0x7f8] sm:$0xff]
        %v2179 = vld [vmem:[%s497] sm:$0xf]
        %v2181 = vlaneseq
        %v2182 = vshrl.u32 %v2181, 7
        %v2183 = vsub.s32 0, %v2182
        %v2184 = vrot.slane %v2179, %v2183
        %v2185 = vlaneseq
        %v2186 = vshrl.u32 %v2185, 7
        %v2187 = vsub.s32 1, %v2186
        %v2188 = vrot.slane %v2179, %v2187
        %v2189 = vlaneseq
        %v2190 = vshrl.u32 %v2189, 7
        %v2191 = vsub.s32 2, %v2190
        %v2192 = vrot.slane %v2179, %v2191
        %v2193 = vlaneseq
        %v2194 = vshrl.u32 %v2193, 7
        %v2195 = vsub.s32 3, %v2194
        %v2196 = vrot.slane %v2179, %v2195
        %v2202 = vcombine.high %v1922, %v1922
        %v2204 = vunpack.c.l.s4 1966171168
        %v2205 = vunpack.c.0.s8 %v2204
        %v2206 = vlaneseq
        %v2207 = vshrl.u32 %v2206, 7
        %v2208 = vsub.s32 %v2205, %v2207
        %v2209 = vrot.slane %v1922, %v2208
        %v2211 = vunpack.c.l.s4 1966171168
        %v2212 = vunpack.c.0.s8 %v2211
        %v2213 = vlaneseq
        %v2214 = vshrl.u32 %v2213, 7
        %v2215 = vsub.s32 %v2212, %v2214
        %v2216 = vrot.slane %v2202, %v2215
        %v2217 = vcombine.high %v2209, %v2209
        %v2218 = vcombine.high %v2216, %v2216
        %v2220 = vunpack.c.l.s4 1966171168
        %v2221 = vunpack.c.0.s8 %v2220
        %v2222 = vlaneseq
        %v2223 = vshrl.u32 %v2222, 7
        %v2224 = vsub.s32 %v2221, %v2223
        %v2225 = vrot.slane %v2209, %v2224
        %v2227 = vunpack.c.l.s4 1966171168
        %v2228 = vunpack.c.0.s8 %v2227
        %v2229 = vlaneseq
        %v2230 = vshrl.u32 %v2229, 7
        %v2231 = vsub.s32 %v2228, %v2230
        %v2232 = vrot.slane %v2216, %v2231
        %v2234 = vunpack.c.l.s4 1966171168
        %v2235 = vunpack.c.0.s8 %v2234
        %v2236 = vlaneseq
        %v2237 = vshrl.u32 %v2236, 7
        %v2238 = vsub.s32 %v2235, %v2237
        %v2239 = vrot.slane %v2217, %v2238
        %v2241 = vunpack.c.l.s4 1966171168
        %v2242 = vunpack.c.0.s8 %v2241
        %v2243 = vlaneseq
        %v2244 = vshrl.u32 %v2243, 7
        %v2245 = vsub.s32 %v2242, %v2244
        %v2246 = vrot.slane %v2218, %v2245
        %v2247 = vcombine.high %v2225, %v2225
        %v2248 = vcombine.high %v2232, %v2232
        %v2249 = vcombine.high %v2239, %v2239
        %v2250 = vcombine.high %v2246, %v2246
        %v2515 = vunpack.c.l.b16 %v1923
        %v2516 = vunpack.c.h.b16 %v1923
        %v2517 = vunpack.c.l.b16 %v1924
        %v2518 = vunpack.c.h.b16 %v1924
        %v2519 = vunpack.c.l.b16 %v1925
        %v2520 = vunpack.c.h.b16 %v1925
        %v2521 = vunpack.c.l.b16 %v1926
        %v2522 = vunpack.c.h.b16 %v1926
        %v2523 = vunpack.c.l.b16 %v1927
        %v2524 = vunpack.c.h.b16 %v1927
        %v2525 = vunpack.c.l.b16 %v1928
        %v2526 = vunpack.c.h.b16 %v1928
        %v2527 = vunpack.c.l.b16 %v1929
        %v2528 = vunpack.c.h.b16 %v1929
        %v2529 = vunpack.c.l.b16 %v1930
        %v2530 = vunpack.c.h.b16 %v1930
        %v2531 = vunpack.c.l.b16 %v1931
        %v2532 = vunpack.c.h.b16 %v1931
        %v2533 = vunpack.c.l.b16 %v1932
        %v2534 = vunpack.c.h.b16 %v1932
        %v2535 = vunpack.c.l.b16 %v1933
        %v2536 = vunpack.c.h.b16 %v1933
        %v2537 = vunpack.c.l.b16 %v1934
        %v2538 = vunpack.c.h.b16 %v1934
        %v2539 = vunpack.c.l.b16 %v1935
        %v2540 = vunpack.c.h.b16 %v1935
        %v2541 = vunpack.c.l.b16 %v1936
        %v2542 = vunpack.c.h.b16 %v1936
        %v2543 = vunpack.c.l.b16 %v1937
        %v2544 = vunpack.c.h.b16 %v1937
        %v2545 = vunpack.c.l.b16 %v1938
        %v2546 = vunpack.c.h.b16 %v1938
        %v2547 = vunpack.c.l.b16 %v1939
        %v2548 = vunpack.c.h.b16 %v1939
        %v2549 = vunpack.c.l.b16 %v1940
        %v2550 = vunpack.c.h.b16 %v1940
        %v2551 = vunpack.c.l.b16 %v1941
        %v2552 = vunpack.c.h.b16 %v1941
        %v2553 = vunpack.c.l.b16 %v1942
        %v2554 = vunpack.c.h.b16 %v1942
        %v2555 = vunpack.c.l.b16 %v1943
        %v2556 = vunpack.c.h.b16 %v1943
        %v2557 = vunpack.c.l.b16 %v1944
        %v2558 = vunpack.c.h.b16 %v1944
        %v2559 = vunpack.c.l.b16 %v1945
        %v2560 = vunpack.c.h.b16 %v1945
        %v2561 = vunpack.c.l.b16 %v1946
        %v2562 = vunpack.c.h.b16 %v1946
        %v2563 = vunpack.c.l.b16 %v1947
        %v2564 = vunpack.c.h.b16 %v1947
        %v2565 = vunpack.c.l.b16 %v1948
        %v2566 = vunpack.c.h.b16 %v1948
        %v2567 = vunpack.c.l.b16 %v1949
        %v2568 = vunpack.c.h.b16 %v1949
        %v2569 = vunpack.c.l.b16 %v1950
        %v2570 = vunpack.c.h.b16 %v1950
        %v2571 = vunpack.c.l.b16 %v1951
        %v2572 = vunpack.c.h.b16 %v1951
        %v2573 = vunpack.c.l.b16 %v1952
        %v2574 = vunpack.c.h.b16 %v1952
        %v2575 = vunpack.c.l.b16 %v1953
        %v2576 = vunpack.c.h.b16 %v1953
        %v2577 = vunpack.c.l.b16 %v1954
        %v2578 = vunpack.c.h.b16 %v1954
        %v2579 = vunpack.c.l.b16 %v1955
        %v2580 = vunpack.c.h.b16 %v1955
        %v2581 = vunpack.c.l.b16 %v1956
        %v2582 = vunpack.c.h.b16 %v1956
        %v2583 = vunpack.c.l.b16 %v1957
        %v2584 = vunpack.c.h.b16 %v1957
        %v2585 = vunpack.c.l.b16 %v1958
        %v2586 = vunpack.c.h.b16 %v1958
        %v2587 = vunpack.c.l.b16 %v1959
        %v2588 = vunpack.c.h.b16 %v1959
        %v2589 = vunpack.c.l.b16 %v1960
        %v2590 = vunpack.c.h.b16 %v1960
        %v2591 = vunpack.c.l.b16 %v1961
        %v2592 = vunpack.c.h.b16 %v1961
        %v2593 = vunpack.c.l.b16 %v1962
        %v2594 = vunpack.c.h.b16 %v1962
        %v2595 = vunpack.c.l.b16 %v1963
        %v2596 = vunpack.c.h.b16 %v1963
        %v2597 = vunpack.c.l.b16 %v1964
        %v2598 = vunpack.c.h.b16 %v1964
        %v2599 = vunpack.c.l.b16 %v1965
        %v2600 = vunpack.c.h.b16 %v1965
        %v2601 = vunpack.c.l.b16 %v1966
        %v2602 = vunpack.c.h.b16 %v1966
        %v2603 = vunpack.c.l.b16 %v1967
        %v2604 = vunpack.c.h.b16 %v1967
        %v2605 = vunpack.c.l.b16 %v1968
        %v2606 = vunpack.c.h.b16 %v1968
        %v2607 = vunpack.c.l.b16 %v1969
        %v2608 = vunpack.c.h.b16 %v1969
        %v2609 = vunpack.c.l.b16 %v1970
        %v2610 = vunpack.c.h.b16 %v1970
        %v2611 = vunpack.c.l.b16 %v1971
        %v2612 = vunpack.c.h.b16 %v1971
        %v2613 = vunpack.c.l.b16 %v1972
        %v2614 = vunpack.c.h.b16 %v1972
        %v2615 = vunpack.c.l.b16 %v1973
        %v2616 = vunpack.c.h.b16 %v1973
        %v2617 = vunpack.c.l.b16 %v1974
        %v2618 = vunpack.c.h.b16 %v1974
        %v2619 = vunpack.c.l.b16 %v1975
        %v2620 = vunpack.c.h.b16 %v1975
        %v2621 = vunpack.c.l.b16 %v1976
        %v2622 = vunpack.c.h.b16 %v1976
        %v2623 = vunpack.c.l.b16 %v1977
        %v2624 = vunpack.c.h.b16 %v1977
        %v2625 = vunpack.c.l.b16 %v1978
        %v2626 = vunpack.c.h.b16 %v1978
        %v2627 = vunpack.c.l.b16 %v1979
        %v2628 = vunpack.c.h.b16 %v1979
        %v2629 = vunpack.c.l.b16 %v1980
        %v2630 = vunpack.c.h.b16 %v1980
        %v2631 = vunpack.c.l.b16 %v1981
        %v2632 = vunpack.c.h.b16 %v1981
        %v2633 = vunpack.c.l.b16 %v1982
        %v2634 = vunpack.c.h.b16 %v1982
        %v2635 = vunpack.c.l.b16 %v1983
        %v2636 = vunpack.c.h.b16 %v1983
        %v2637 = vunpack.c.l.b16 %v1984
        %v2638 = vunpack.c.h.b16 %v1984
        %v2639 = vunpack.c.l.b16 %v1985
        %v2640 = vunpack.c.h.b16 %v1985
        %v2641 = vunpack.c.l.b16 %v1986
        %v2642 = vunpack.c.h.b16 %v1986
        %v2643 = vunpack.c.l.b16 %v1987
        %v2644 = vunpack.c.h.b16 %v1987
        %v2645 = vunpack.c.l.b16 %v1988
        %v2646 = vunpack.c.h.b16 %v1988
        %v2647 = vunpack.c.l.b16 %v1989
        %v2648 = vunpack.c.h.b16 %v1989
        %v2649 = vunpack.c.l.b16 %v1990
        %v2650 = vunpack.c.h.b16 %v1990
        %v2651 = vunpack.c.l.b16 %v1991
        %v2652 = vunpack.c.h.b16 %v1991
        %v2653 = vunpack.c.l.b16 %v1992
        %v2654 = vunpack.c.h.b16 %v1992
        %v2655 = vunpack.c.l.b16 %v1993
        %v2656 = vunpack.c.h.b16 %v1993
        %v2657 = vunpack.c.l.b16 %v1994
        %v2658 = vunpack.c.h.b16 %v1994
        %v2659 = vunpack.c.l.b16 %v1995
        %v2660 = vunpack.c.h.b16 %v1995
        %v2661 = vunpack.c.l.b16 %v1996
        %v2662 = vunpack.c.h.b16 %v1996
        %v2663 = vunpack.c.l.b16 %v1997
        %v2664 = vunpack.c.h.b16 %v1997
        %v2665 = vunpack.c.l.b16 %v1998
        %v2666 = vunpack.c.h.b16 %v1998
        %v2667 = vunpack.c.l.b16 %v1999
        %v2668 = vunpack.c.h.b16 %v1999
        %v2669 = vunpack.c.l.b16 %v2000
        %v2670 = vunpack.c.h.b16 %v2000
        %v2671 = vunpack.c.l.b16 %v2001
        %v2672 = vunpack.c.h.b16 %v2001
        %v2673 = vunpack.c.l.b16 %v2002
        %v2674 = vunpack.c.h.b16 %v2002
        %v2675 = vunpack.c.l.b16 %v2003
        %v2676 = vunpack.c.h.b16 %v2003
        %v2677 = vunpack.c.l.b16 %v2004
        %v2678 = vunpack.c.h.b16 %v2004
        %v2679 = vunpack.c.l.b16 %v2005
        %v2680 = vunpack.c.h.b16 %v2005
        %v2681 = vunpack.c.l.b16 %v2006
        %v2682 = vunpack.c.h.b16 %v2006
        %v2683 = vunpack.c.l.b16 %v2007
        %v2684 = vunpack.c.h.b16 %v2007
        %v2685 = vunpack.c.l.b16 %v2008
        %v2686 = vunpack.c.h.b16 %v2008
        %v2687 = vunpack.c.l.b16 %v2009
        %v2688 = vunpack.c.h.b16 %v2009
        %v2689 = vunpack.c.l.b16 %v2010
        %v2690 = vunpack.c.h.b16 %v2010
        %v2691 = vunpack.c.l.b16 %v2011
        %v2692 = vunpack.c.h.b16 %v2011
        %v2693 = vunpack.c.l.b16 %v2012
        %v2694 = vunpack.c.h.b16 %v2012
        %v2695 = vunpack.c.l.b16 %v2013
        %v2696 = vunpack.c.h.b16 %v2013
        %v2697 = vunpack.c.l.b16 %v2014
        %v2698 = vunpack.c.h.b16 %v2014
        %v2699 = vunpack.c.l.b16 %v2015
        %v2700 = vunpack.c.h.b16 %v2015
        %v2701 = vunpack.c.l.b16 %v2016
        %v2702 = vunpack.c.h.b16 %v2016
        %v2703 = vunpack.c.l.b16 %v2017
        %v2704 = vunpack.c.h.b16 %v2017
        %v2705 = vunpack.c.l.b16 %v2018
        %v2706 = vunpack.c.h.b16 %v2018
        %v2707 = vunpack.c.l.b16 %v2019
        %v2708 = vunpack.c.h.b16 %v2019
        %v2709 = vunpack.c.l.b16 %v2020
        %v2710 = vunpack.c.h.b16 %v2020
        %v2711 = vunpack.c.l.b16 %v2021
        %v2712 = vunpack.c.h.b16 %v2021
        %v2713 = vunpack.c.l.b16 %v2022
        %v2714 = vunpack.c.h.b16 %v2022
        %v2715 = vunpack.c.l.b16 %v2023
        %v2716 = vunpack.c.h.b16 %v2023
        %v2717 = vunpack.c.l.b16 %v2024
        %v2718 = vunpack.c.h.b16 %v2024
        %v2719 = vunpack.c.l.b16 %v2025
        %v2720 = vunpack.c.h.b16 %v2025
        %v2721 = vunpack.c.l.b16 %v2026
        %v2722 = vunpack.c.h.b16 %v2026
        %v2723 = vunpack.c.l.b16 %v2027
        %v2724 = vunpack.c.h.b16 %v2027
        %v2725 = vunpack.c.l.b16 %v2028
        %v2726 = vunpack.c.h.b16 %v2028
        %v2727 = vunpack.c.l.b16 %v2029
        %v2728 = vunpack.c.h.b16 %v2029
        %v2729 = vunpack.c.l.b16 %v2030
        %v2730 = vunpack.c.h.b16 %v2030
        %v2731 = vunpack.c.l.b16 %v2031
        %v2732 = vunpack.c.h.b16 %v2031
        %v2733 = vunpack.c.l.b16 %v2032
        %v2734 = vunpack.c.h.b16 %v2032
        %v2735 = vunpack.c.l.b16 %v2033
        %v2736 = vunpack.c.h.b16 %v2033
        %v2737 = vunpack.c.l.b16 %v2034
        %v2738 = vunpack.c.h.b16 %v2034
        %v2739 = vunpack.c.l.b16 %v2035
        %v2740 = vunpack.c.h.b16 %v2035
        %v2741 = vunpack.c.l.b16 %v2036
        %v2742 = vunpack.c.h.b16 %v2036
        %v2743 = vunpack.c.l.b16 %v2037
        %v2744 = vunpack.c.h.b16 %v2037
        %v2745 = vunpack.c.l.b16 %v2038
        %v2746 = vunpack.c.h.b16 %v2038
        %v2747 = vunpack.c.l.b16 %v2039
        %v2748 = vunpack.c.h.b16 %v2039
        %v2749 = vunpack.c.l.b16 %v2040
        %v2750 = vunpack.c.h.b16 %v2040
        %v2751 = vunpack.c.l.b16 %v2041
        %v2752 = vunpack.c.h.b16 %v2041
        %v2753 = vunpack.c.l.b16 %v2042
        %v2754 = vunpack.c.h.b16 %v2042
        %v2755 = vunpack.c.l.b16 %v2043
        %v2756 = vunpack.c.h.b16 %v2043
        %v2757 = vunpack.c.l.b16 %v2044
        %v2758 = vunpack.c.h.b16 %v2044
        %v2759 = vunpack.c.l.b16 %v2045
        %v2760 = vunpack.c.h.b16 %v2045
        %v2761 = vunpack.c.l.b16 %v2046
        %v2762 = vunpack.c.h.b16 %v2046
        %v2763 = vunpack.c.l.b16 %v2047
        %v2764 = vunpack.c.h.b16 %v2047
        %v2765 = vunpack.c.l.b16 %v2048
        %v2766 = vunpack.c.h.b16 %v2048
        %v2767 = vunpack.c.l.b16 %v2049
        %v2768 = vunpack.c.h.b16 %v2049
        %v2769 = vunpack.c.l.b16 %v2050
        %v2770 = vunpack.c.h.b16 %v2050
        %v2771 = vunpack.c.l.b16 %v2051
        %v2772 = vunpack.c.h.b16 %v2051
        %v2773 = vunpack.c.l.b16 %v2052
        %v2774 = vunpack.c.h.b16 %v2052
        %v2775 = vunpack.c.l.b16 %v2053
        %v2776 = vunpack.c.h.b16 %v2053
        %v2777 = vunpack.c.l.b16 %v2054
        %v2778 = vunpack.c.h.b16 %v2054
        %v2779 = vunpack.c.l.b16 %v2055
        %v2780 = vunpack.c.h.b16 %v2055
        %v2781 = vunpack.c.l.b16 %v2056
        %v2782 = vunpack.c.h.b16 %v2056
        %v2783 = vunpack.c.l.b16 %v2057
        %v2784 = vunpack.c.h.b16 %v2057
        %v2785 = vunpack.c.l.b16 %v2058
        %v2786 = vunpack.c.h.b16 %v2058
        %v2787 = vunpack.c.l.b16 %v2059
        %v2788 = vunpack.c.h.b16 %v2059
        %v2789 = vunpack.c.l.b16 %v2060
        %v2790 = vunpack.c.h.b16 %v2060
        %v2791 = vunpack.c.l.b16 %v2061
        %v2792 = vunpack.c.h.b16 %v2061
        %v2793 = vunpack.c.l.b16 %v2062
        %v2794 = vunpack.c.h.b16 %v2062
        %v2795 = vunpack.c.l.b16 %v2063
        %v2796 = vunpack.c.h.b16 %v2063
        %v2797 = vunpack.c.l.b16 %v2064
        %v2798 = vunpack.c.h.b16 %v2064
        %v2799 = vunpack.c.l.b16 %v2065
        %v2800 = vunpack.c.h.b16 %v2065
        %v2801 = vunpack.c.l.b16 %v2066
        %v2802 = vunpack.c.h.b16 %v2066
        %v2803 = vunpack.c.l.b16 %v2067
        %v2804 = vunpack.c.h.b16 %v2067
        %v2805 = vunpack.c.l.b16 %v2068
        %v2806 = vunpack.c.h.b16 %v2068
        %v2807 = vunpack.c.l.b16 %v2069
        %v2808 = vunpack.c.h.b16 %v2069
        %v2809 = vunpack.c.l.b16 %v2070
        %v2810 = vunpack.c.h.b16 %v2070
        %v2811 = vunpack.c.l.b16 %v2071
        %v2812 = vunpack.c.h.b16 %v2071
        %v2813 = vunpack.c.l.b16 %v2072
        %v2814 = vunpack.c.h.b16 %v2072
        %v2815 = vunpack.c.l.b16 %v2073
        %v2816 = vunpack.c.h.b16 %v2073
        %v2817 = vunpack.c.l.b16 %v2074
        %v2818 = vunpack.c.h.b16 %v2074
        %v2819 = vunpack.c.l.b16 %v2075
        %v2820 = vunpack.c.h.b16 %v2075
        %v2821 = vunpack.c.l.b16 %v2076
        %v2822 = vunpack.c.h.b16 %v2076
        %v2823 = vunpack.c.l.b16 %v2077
        %v2824 = vunpack.c.h.b16 %v2077
        %v2825 = vunpack.c.l.b16 %v2078
        %v2826 = vunpack.c.h.b16 %v2078
        %v2827 = vunpack.c.l.b16 %v2079
        %v2828 = vunpack.c.h.b16 %v2079
        %v2829 = vunpack.c.l.b16 %v2080
        %v2830 = vunpack.c.h.b16 %v2080
        %v2831 = vunpack.c.l.b16 %v2081
        %v2832 = vunpack.c.h.b16 %v2081
        %v2833 = vunpack.c.l.b16 %v2082
        %v2834 = vunpack.c.h.b16 %v2082
        %v2835 = vunpack.c.l.b16 %v2083
        %v2836 = vunpack.c.h.b16 %v2083
        %v2837 = vunpack.c.l.b16 %v2084
        %v2838 = vunpack.c.h.b16 %v2084
        %v2839 = vunpack.c.l.b16 %v2085
        %v2840 = vunpack.c.h.b16 %v2085
        %v2841 = vunpack.c.l.b16 %v2086
        %v2842 = vunpack.c.h.b16 %v2086
        %v2843 = vunpack.c.l.b16 %v2087
        %v2844 = vunpack.c.h.b16 %v2087
        %v2845 = vunpack.c.l.b16 %v2088
        %v2846 = vunpack.c.h.b16 %v2088
        %v2847 = vunpack.c.l.b16 %v2089
        %v2848 = vunpack.c.h.b16 %v2089
        %v2849 = vunpack.c.l.b16 %v2090
        %v2850 = vunpack.c.h.b16 %v2090
        %v2851 = vunpack.c.l.b16 %v2091
        %v2852 = vunpack.c.h.b16 %v2091
        %v2853 = vunpack.c.l.b16 %v2092
        %v2854 = vunpack.c.h.b16 %v2092
        %v2855 = vunpack.c.l.b16 %v2093
        %v2856 = vunpack.c.h.b16 %v2093
        %v2857 = vunpack.c.l.b16 %v2094
        %v2858 = vunpack.c.h.b16 %v2094
        %v2859 = vunpack.c.l.b16 %v2095
        %v2860 = vunpack.c.h.b16 %v2095
        %v2861 = vunpack.c.l.b16 %v2096
        %v2862 = vunpack.c.h.b16 %v2096
        %v2863 = vunpack.c.l.b16 %v2097
        %v2864 = vunpack.c.h.b16 %v2097
        %v2865 = vunpack.c.l.b16 %v2098
        %v2866 = vunpack.c.h.b16 %v2098
        %v2867 = vunpack.c.l.b16 %v2099
        %v2868 = vunpack.c.h.b16 %v2099
        %v2869 = vunpack.c.l.b16 %v2100
        %v2870 = vunpack.c.h.b16 %v2100
        %v2871 = vunpack.c.l.b16 %v2101
        %v2872 = vunpack.c.h.b16 %v2101
        %v2873 = vunpack.c.l.b16 %v2102
        %v2874 = vunpack.c.h.b16 %v2102
        %v2875 = vunpack.c.l.b16 %v2103
        %v2876 = vunpack.c.h.b16 %v2103
        %v2877 = vunpack.c.l.b16 %v2104
        %v2878 = vunpack.c.h.b16 %v2104
        %v2879 = vunpack.c.l.b16 %v2105
        %v2880 = vunpack.c.h.b16 %v2105
        %v2881 = vunpack.c.l.b16 %v2106
        %v2882 = vunpack.c.h.b16 %v2106
        %v2883 = vunpack.c.l.b16 %v2107
        %v2884 = vunpack.c.h.b16 %v2107
        %v2885 = vunpack.c.l.b16 %v2108
        %v2886 = vunpack.c.h.b16 %v2108
        %v2887 = vunpack.c.l.b16 %v2109
        %v2888 = vunpack.c.h.b16 %v2109
        %v2889 = vunpack.c.l.b16 %v2110
        %v2890 = vunpack.c.h.b16 %v2110
        %v2891 = vunpack.c.l.b16 %v2111
        %v2892 = vunpack.c.h.b16 %v2111
        %v2893 = vunpack.c.l.b16 %v2112
        %v2894 = vunpack.c.h.b16 %v2112
        %v2895 = vunpack.c.l.b16 %v2113
        %v2896 = vunpack.c.h.b16 %v2113
        %v2897 = vunpack.c.l.b16 %v2114
        %v2898 = vunpack.c.h.b16 %v2114
        %v2899 = vunpack.c.l.b16 %v2115
        %v2900 = vunpack.c.h.b16 %v2115
        %v2901 = vunpack.c.l.b16 %v2116
        %v2902 = vunpack.c.h.b16 %v2116
        %v2903 = vunpack.c.l.b16 %v2117
        %v2904 = vunpack.c.h.b16 %v2117
        %v2905 = vunpack.c.l.b16 %v2118
        %v2906 = vunpack.c.h.b16 %v2118
        %v2907 = vunpack.c.l.b16 %v2119
        %v2908 = vunpack.c.h.b16 %v2119
        %v2909 = vunpack.c.l.b16 %v2120
        %v2910 = vunpack.c.h.b16 %v2120
        %v2911 = vunpack.c.l.b16 %v2121
        %v2912 = vunpack.c.h.b16 %v2121
        %v2913 = vunpack.c.l.b16 %v2122
        %v2914 = vunpack.c.h.b16 %v2122
        %v2915 = vunpack.c.l.b16 %v2123
        %v2916 = vunpack.c.h.b16 %v2123
        %v2917 = vunpack.c.l.b16 %v2124
        %v2918 = vunpack.c.h.b16 %v2124
        %v2919 = vunpack.c.l.b16 %v2125
        %v2920 = vunpack.c.h.b16 %v2125
        %v2921 = vunpack.c.l.b16 %v2126
        %v2922 = vunpack.c.h.b16 %v2126
        %v2923 = vunpack.c.l.b16 %v2127
        %v2924 = vunpack.c.h.b16 %v2127
        %v2925 = vunpack.c.l.b16 %v2128
        %v2926 = vunpack.c.h.b16 %v2128
        %v2927 = vunpack.c.l.b16 %v2129
        %v2928 = vunpack.c.h.b16 %v2129
        %v2929 = vunpack.c.l.b16 %v2130
        %v2930 = vunpack.c.h.b16 %v2130
        %v2931 = vunpack.c.l.b16 %v2131
        %v2932 = vunpack.c.h.b16 %v2131
        %v2933 = vunpack.c.l.b16 %v2132
        %v2934 = vunpack.c.h.b16 %v2132
        %v2935 = vunpack.c.l.b16 %v2133
        %v2936 = vunpack.c.h.b16 %v2133
        %v2937 = vunpack.c.l.b16 %v2134
        %v2938 = vunpack.c.h.b16 %v2134
        %v2939 = vunpack.c.l.b16 %v2135
        %v2940 = vunpack.c.h.b16 %v2135
        %v2941 = vunpack.c.l.b16 %v2136
        %v2942 = vunpack.c.h.b16 %v2136
        %v2943 = vunpack.c.l.b16 %v2137
        %v2944 = vunpack.c.h.b16 %v2137
        %v2945 = vunpack.c.l.b16 %v2138
        %v2946 = vunpack.c.h.b16 %v2138
        %v2947 = vunpack.c.l.b16 %v2139
        %v2948 = vunpack.c.h.b16 %v2139
        %v2949 = vunpack.c.l.b16 %v2140
        %v2950 = vunpack.c.h.b16 %v2140
        %v2951 = vunpack.c.l.b16 %v2141
        %v2952 = vunpack.c.h.b16 %v2141
        %v2953 = vunpack.c.l.b16 %v2142
        %v2954 = vunpack.c.h.b16 %v2142
        %v2955 = vunpack.c.l.b16 %v2143
        %v2956 = vunpack.c.h.b16 %v2143
        %v2957 = vunpack.c.l.b16 %v2144
        %v2958 = vunpack.c.h.b16 %v2144
        %v2959 = vunpack.c.l.b16 %v2145
        %v2960 = vunpack.c.h.b16 %v2145
        %v2961 = vunpack.c.l.b16 %v2146
        %v2962 = vunpack.c.h.b16 %v2146
        %v2963 = vunpack.c.l.b16 %v2147
        %v2964 = vunpack.c.h.b16 %v2147
        %v2965 = vunpack.c.l.b16 %v2148
        %v2966 = vunpack.c.h.b16 %v2148
        %v2967 = vunpack.c.l.b16 %v2149
        %v2968 = vunpack.c.h.b16 %v2149
        %v2969 = vunpack.c.l.b16 %v2150
        %v2970 = vunpack.c.h.b16 %v2150
        %v2971 = vunpack.c.l.b16 %v2151
        %v2972 = vunpack.c.h.b16 %v2151
        %v2973 = vunpack.c.l.b16 %v2152
        %v2974 = vunpack.c.h.b16 %v2152
        %v2975 = vunpack.c.l.b16 %v2153
        %v2976 = vunpack.c.h.b16 %v2153
        %v2977 = vunpack.c.l.b16 %v2154
        %v2978 = vunpack.c.h.b16 %v2154
        %v2979 = vunpack.c.l.b16 %v2155
        %v2980 = vunpack.c.h.b16 %v2155
        %v2981 = vunpack.c.l.b16 %v2156
        %v2982 = vunpack.c.h.b16 %v2156
        %v2983 = vunpack.c.l.b16 %v2157
        %v2984 = vunpack.c.h.b16 %v2157
        %v2985 = vunpack.c.l.b16 %v2158
        %v2986 = vunpack.c.h.b16 %v2158
        %v2987 = vunpack.c.l.b16 %v2159
        %v2988 = vunpack.c.h.b16 %v2159
        %v2989 = vunpack.c.l.b16 %v2160
        %v2990 = vunpack.c.h.b16 %v2160
        %v2991 = vunpack.c.l.b16 %v2161
        %v2992 = vunpack.c.h.b16 %v2161
        %v2993 = vunpack.c.l.b16 %v2162
        %v2994 = vunpack.c.h.b16 %v2162
        %v2995 = vunpack.c.l.b16 %v2163
        %v2996 = vunpack.c.h.b16 %v2163
        %v2997 = vunpack.c.l.b16 %v2164
        %v2998 = vunpack.c.h.b16 %v2164
        %v2999 = vunpack.c.l.b16 %v2165
        %v3000 = vunpack.c.h.b16 %v2165
        %v3001 = vunpack.c.l.b16 %v2166
        %v3002 = vunpack.c.h.b16 %v2166
        %v3003 = vunpack.c.l.b16 %v2167
        %v3004 = vunpack.c.h.b16 %v2167
        %v3005 = vunpack.c.l.b16 %v2168
        %v3006 = vunpack.c.h.b16 %v2168
        %v3007 = vunpack.c.l.b16 %v2169
        %v3008 = vunpack.c.h.b16 %v2169
        %v3009 = vunpack.c.l.b16 %v2170
        %v3010 = vunpack.c.h.b16 %v2170
        %v3011 = vunpack.c.l.b16 %v2171
        %v3012 = vunpack.c.h.b16 %v2171
        %v3013 = vunpack.c.l.b16 %v2172
        %v3014 = vunpack.c.h.b16 %v2172
        %v3015 = vunpack.c.l.b16 %v2173
        %v3016 = vunpack.c.h.b16 %v2173
        %v3017 = vunpack.c.l.b16 %v2174
        %v3018 = vunpack.c.h.b16 %v2174
        %v3019 = vunpack.c.l.b16 %v2175
        %v3020 = vunpack.c.h.b16 %v2175
        %v3021 = vunpack.c.l.b16 %v2176
        %v3022 = vunpack.c.h.b16 %v2176
        %v3023 = vunpack.c.l.b16 %v2177
        %v3024 = vunpack.c.h.b16 %v2177
        %v3025 = vunpack.c.l.b16 %v2178
        %v3026 = vunpack.c.h.b16 %v2178
        %v3027 = vpack.c.b16 %v2519, %v2515
        %v3028 = vpack.c.b16 %v2520, %v2516
        %v3029 = vpack.c.b16 %v2521, %v2517
        %v3030 = vpack.c.b16 %v2522, %v2518
        %v3031 = vpack.c.b16 %v2527, %v2523
        %v3032 = vpack.c.b16 %v2528, %v2524
        %v3033 = vpack.c.b16 %v2529, %v2525
        %v3034 = vpack.c.b16 %v2530, %v2526
        %v3035 = vpack.c.b16 %v2535, %v2531
        %v3036 = vpack.c.b16 %v2536, %v2532
        %v3037 = vpack.c.b16 %v2537, %v2533
        %v3038 = vpack.c.b16 %v2538, %v2534
        %v3039 = vpack.c.b16 %v2543, %v2539
        %v3040 = vpack.c.b16 %v2544, %v2540
        %v3041 = vpack.c.b16 %v2545, %v2541
        %v3042 = vpack.c.b16 %v2546, %v2542
        %v3043 = vpack.c.b16 %v2551, %v2547
        %v3044 = vpack.c.b16 %v2552, %v2548
        %v3045 = vpack.c.b16 %v2553, %v2549
        %v3046 = vpack.c.b16 %v2554, %v2550
        %v3047 = vpack.c.b16 %v2559, %v2555
        %v3048 = vpack.c.b16 %v2560, %v2556
        %v3049 = vpack.c.b16 %v2561, %v2557
        %v3050 = vpack.c.b16 %v2562, %v2558
        %v3051 = vpack.c.b16 %v2567, %v2563
        %v3052 = vpack.c.b16 %v2568, %v2564
        %v3053 = vpack.c.b16 %v2569, %v2565
        %v3054 = vpack.c.b16 %v2570, %v2566
        %v3055 = vpack.c.b16 %v2575, %v2571
        %v3056 = vpack.c.b16 %v2576, %v2572
        %v3057 = vpack.c.b16 %v2577, %v2573
        %v3058 = vpack.c.b16 %v2578, %v2574
        %v3059 = vpack.c.b16 %v2583, %v2579
        %v3060 = vpack.c.b16 %v2584, %v2580
        %v3061 = vpack.c.b16 %v2585, %v2581
        %v3062 = vpack.c.b16 %v2586, %v2582
        %v3063 = vpack.c.b16 %v2591, %v2587
        %v3064 = vpack.c.b16 %v2592, %v2588
        %v3065 = vpack.c.b16 %v2593, %v2589
        %v3066 = vpack.c.b16 %v2594, %v2590
        %v3067 = vpack.c.b16 %v2599, %v2595
        %v3068 = vpack.c.b16 %v2600, %v2596
        %v3069 = vpack.c.b16 %v2601, %v2597
        %v3070 = vpack.c.b16 %v2602, %v2598
        %v3071 = vpack.c.b16 %v2607, %v2603
        %v3072 = vpack.c.b16 %v2608, %v2604
        %v3073 = vpack.c.b16 %v2609, %v2605
        %v3074 = vpack.c.b16 %v2610, %v2606
        %v3075 = vpack.c.b16 %v2615, %v2611
        %v3076 = vpack.c.b16 %v2616, %v2612
        %v3077 = vpack.c.b16 %v2617, %v2613
        %v3078 = vpack.c.b16 %v2618, %v2614
        %v3079 = vpack.c.b16 %v2623, %v2619
        %v3080 = vpack.c.b16 %v2624, %v2620
        %v3081 = vpack.c.b16 %v2625, %v2621
        %v3082 = vpack.c.b16 %v2626, %v2622
        %v3083 = vpack.c.b16 %v2631, %v2627
        %v3084 = vpack.c.b16 %v2632, %v2628
        %v3085 = vpack.c.b16 %v2633, %v2629
        %v3086 = vpack.c.b16 %v2634, %v2630
        %v3087 = vpack.c.b16 %v2639, %v2635
        %v3088 = vpack.c.b16 %v2640, %v2636
        %v3089 = vpack.c.b16 %v2641, %v2637
        %v3090 = vpack.c.b16 %v2642, %v2638
        %v3091 = vpack.c.b16 %v2647, %v2643
        %v3092 = vpack.c.b16 %v2648, %v2644
        %v3093 = vpack.c.b16 %v2649, %v2645
        %v3094 = vpack.c.b16 %v2650, %v2646
        %v3095 = vpack.c.b16 %v2655, %v2651
        %v3096 = vpack.c.b16 %v2656, %v2652
        %v3097 = vpack.c.b16 %v2657, %v2653
        %v3098 = vpack.c.b16 %v2658, %v2654
        %v3099 = vpack.c.b16 %v2663, %v2659
        %v3100 = vpack.c.b16 %v2664, %v2660
        %v3101 = vpack.c.b16 %v2665, %v2661
        %v3102 = vpack.c.b16 %v2666, %v2662
        %v3103 = vpack.c.b16 %v2671, %v2667
        %v3104 = vpack.c.b16 %v2672, %v2668
        %v3105 = vpack.c.b16 %v2673, %v2669
        %v3106 = vpack.c.b16 %v2674, %v2670
        %v3107 = vpack.c.b16 %v2679, %v2675
        %v3108 = vpack.c.b16 %v2680, %v2676
        %v3109 = vpack.c.b16 %v2681, %v2677
        %v3110 = vpack.c.b16 %v2682, %v2678
        %v3111 = vpack.c.b16 %v2687, %v2683
        %v3112 = vpack.c.b16 %v2688, %v2684
        %v3113 = vpack.c.b16 %v2689, %v2685
        %v3114 = vpack.c.b16 %v2690, %v2686
        %v3115 = vpack.c.b16 %v2695, %v2691
        %v3116 = vpack.c.b16 %v2696, %v2692
        %v3117 = vpack.c.b16 %v2697, %v2693
        %v3118 = vpack.c.b16 %v2698, %v2694
        %v3119 = vpack.c.b16 %v2703, %v2699
        %v3120 = vpack.c.b16 %v2704, %v2700
        %v3121 = vpack.c.b16 %v2705, %v2701
        %v3122 = vpack.c.b16 %v2706, %v2702
        %v3123 = vpack.c.b16 %v2711, %v2707
        %v3124 = vpack.c.b16 %v2712, %v2708
        %v3125 = vpack.c.b16 %v2713, %v2709
        %v3126 = vpack.c.b16 %v2714, %v2710
        %v3127 = vpack.c.b16 %v2719, %v2715
        %v3128 = vpack.c.b16 %v2720, %v2716
        %v3129 = vpack.c.b16 %v2721, %v2717
        %v3130 = vpack.c.b16 %v2722, %v2718
        %v3131 = vpack.c.b16 %v2727, %v2723
        %v3132 = vpack.c.b16 %v2728, %v2724
        %v3133 = vpack.c.b16 %v2729, %v2725
        %v3134 = vpack.c.b16 %v2730, %v2726
        %v3135 = vpack.c.b16 %v2735, %v2731
        %v3136 = vpack.c.b16 %v2736, %v2732
        %v3137 = vpack.c.b16 %v2737, %v2733
        %v3138 = vpack.c.b16 %v2738, %v2734
        %v3139 = vpack.c.b16 %v2743, %v2739
        %v3140 = vpack.c.b16 %v2744, %v2740
        %v3141 = vpack.c.b16 %v2745, %v2741
        %v3142 = vpack.c.b16 %v2746, %v2742
        %v3143 = vpack.c.b16 %v2751, %v2747
        %v3144 = vpack.c.b16 %v2752, %v2748
        %v3145 = vpack.c.b16 %v2753, %v2749
        %v3146 = vpack.c.b16 %v2754, %v2750
        %v3147 = vpack.c.b16 %v2759, %v2755
        %v3148 = vpack.c.b16 %v2760, %v2756
        %v3149 = vpack.c.b16 %v2761, %v2757
        %v3150 = vpack.c.b16 %v2762, %v2758
        %v3151 = vpack.c.b16 %v2767, %v2763
        %v3152 = vpack.c.b16 %v2768, %v2764
        %v3153 = vpack.c.b16 %v2769, %v2765
        %v3154 = vpack.c.b16 %v2770, %v2766
        %v3155 = vpack.c.b16 %v2775, %v2771
        %v3156 = vpack.c.b16 %v2776, %v2772
        %v3157 = vpack.c.b16 %v2777, %v2773
        %v3158 = vpack.c.b16 %v2778, %v2774
        %v3159 = vpack.c.b16 %v2783, %v2779
        %v3160 = vpack.c.b16 %v2784, %v2780
        %v3161 = vpack.c.b16 %v2785, %v2781
        %v3162 = vpack.c.b16 %v2786, %v2782
        %v3163 = vpack.c.b16 %v2791, %v2787
        %v3164 = vpack.c.b16 %v2792, %v2788
        %v3165 = vpack.c.b16 %v2793, %v2789
        %v3166 = vpack.c.b16 %v2794, %v2790
        %v3167 = vpack.c.b16 %v2799, %v2795
        %v3168 = vpack.c.b16 %v2800, %v2796
        %v3169 = vpack.c.b16 %v2801, %v2797
        %v3170 = vpack.c.b16 %v2802, %v2798
        %v3171 = vpack.c.b16 %v2807, %v2803
        %v3172 = vpack.c.b16 %v2808, %v2804
        %v3173 = vpack.c.b16 %v2809, %v2805
        %v3174 = vpack.c.b16 %v2810, %v2806
        %v3175 = vpack.c.b16 %v2815, %v2811
        %v3176 = vpack.c.b16 %v2816, %v2812
        %v3177 = vpack.c.b16 %v2817, %v2813
        %v3178 = vpack.c.b16 %v2818, %v2814
        %v3179 = vpack.c.b16 %v2823, %v2819
        %v3180 = vpack.c.b16 %v2824, %v2820
        %v3181 = vpack.c.b16 %v2825, %v2821
        %v3182 = vpack.c.b16 %v2826, %v2822
        %v3183 = vpack.c.b16 %v2831, %v2827
        %v3184 = vpack.c.b16 %v2832, %v2828
        %v3185 = vpack.c.b16 %v2833, %v2829
        %v3186 = vpack.c.b16 %v2834, %v2830
        %v3187 = vpack.c.b16 %v2839, %v2835
        %v3188 = vpack.c.b16 %v2840, %v2836
        %v3189 = vpack.c.b16 %v2841, %v2837
        %v3190 = vpack.c.b16 %v2842, %v2838
        %v3191 = vpack.c.b16 %v2847, %v2843
        %v3192 = vpack.c.b16 %v2848, %v2844
        %v3193 = vpack.c.b16 %v2849, %v2845
        %v3194 = vpack.c.b16 %v2850, %v2846
        %v3195 = vpack.c.b16 %v2855, %v2851
        %v3196 = vpack.c.b16 %v2856, %v2852
        %v3197 = vpack.c.b16 %v2857, %v2853
        %v3198 = vpack.c.b16 %v2858, %v2854
        %v3199 = vpack.c.b16 %v2863, %v2859
        %v3200 = vpack.c.b16 %v2864, %v2860
        %v3201 = vpack.c.b16 %v2865, %v2861
        %v3202 = vpack.c.b16 %v2866, %v2862
        %v3203 = vpack.c.b16 %v2871, %v2867
        %v3204 = vpack.c.b16 %v2872, %v2868
        %v3205 = vpack.c.b16 %v2873, %v2869
        %v3206 = vpack.c.b16 %v2874, %v2870
        %v3207 = vpack.c.b16 %v2879, %v2875
        %v3208 = vpack.c.b16 %v2880, %v2876
        %v3209 = vpack.c.b16 %v2881, %v2877
        %v3210 = vpack.c.b16 %v2882, %v2878
        %v3211 = vpack.c.b16 %v2887, %v2883
        %v3212 = vpack.c.b16 %v2888, %v2884
        %v3213 = vpack.c.b16 %v2889, %v2885
        %v3214 = vpack.c.b16 %v2890, %v2886
        %v3215 = vpack.c.b16 %v2895, %v2891
        %v3216 = vpack.c.b16 %v2896, %v2892
        %v3217 = vpack.c.b16 %v2897, %v2893
        %v3218 = vpack.c.b16 %v2898, %v2894
        %v3219 = vpack.c.b16 %v2903, %v2899
        %v3220 = vpack.c.b16 %v2904, %v2900
        %v3221 = vpack.c.b16 %v2905, %v2901
        %v3222 = vpack.c.b16 %v2906, %v2902
        %v3223 = vpack.c.b16 %v2911, %v2907
        %v3224 = vpack.c.b16 %v2912, %v2908
        %v3225 = vpack.c.b16 %v2913, %v2909
        %v3226 = vpack.c.b16 %v2914, %v2910
        %v3227 = vpack.c.b16 %v2919, %v2915
        %v3228 = vpack.c.b16 %v2920, %v2916
        %v3229 = vpack.c.b16 %v2921, %v2917
        %v3230 = vpack.c.b16 %v2922, %v2918
        %v3231 = vpack.c.b16 %v2927, %v2923
        %v3232 = vpack.c.b16 %v2928, %v2924
        %v3233 = vpack.c.b16 %v2929, %v2925
        %v3234 = vpack.c.b16 %v2930, %v2926
        %v3235 = vpack.c.b16 %v2935, %v2931
        %v3236 = vpack.c.b16 %v2936, %v2932
        %v3237 = vpack.c.b16 %v2937, %v2933
        %v3238 = vpack.c.b16 %v2938, %v2934
        %v3239 = vpack.c.b16 %v2943, %v2939
        %v3240 = vpack.c.b16 %v2944, %v2940
        %v3241 = vpack.c.b16 %v2945, %v2941
        %v3242 = vpack.c.b16 %v2946, %v2942
        %v3243 = vpack.c.b16 %v2951, %v2947
        %v3244 = vpack.c.b16 %v2952, %v2948
        %v3245 = vpack.c.b16 %v2953, %v2949
        %v3246 = vpack.c.b16 %v2954, %v2950
        %v3247 = vpack.c.b16 %v2959, %v2955
        %v3248 = vpack.c.b16 %v2960, %v2956
        %v3249 = vpack.c.b16 %v2961, %v2957
        %v3250 = vpack.c.b16 %v2962, %v2958
        %v3251 = vpack.c.b16 %v2967, %v2963
        %v3252 = vpack.c.b16 %v2968, %v2964
        %v3253 = vpack.c.b16 %v2969, %v2965
        %v3254 = vpack.c.b16 %v2970, %v2966
        %v3255 = vpack.c.b16 %v2975, %v2971
        %v3256 = vpack.c.b16 %v2976, %v2972
        %v3257 = vpack.c.b16 %v2977, %v2973
        %v3258 = vpack.c.b16 %v2978, %v2974
        %v3259 = vpack.c.b16 %v2983, %v2979
        %v3260 = vpack.c.b16 %v2984, %v2980
        %v3261 = vpack.c.b16 %v2985, %v2981
        %v3262 = vpack.c.b16 %v2986, %v2982
        %v3263 = vpack.c.b16 %v2991, %v2987
        %v3264 = vpack.c.b16 %v2992, %v2988
        %v3265 = vpack.c.b16 %v2993, %v2989
        %v3266 = vpack.c.b16 %v2994, %v2990
        %v3267 = vpack.c.b16 %v2999, %v2995
        %v3268 = vpack.c.b16 %v3000, %v2996
        %v3269 = vpack.c.b16 %v3001, %v2997
        %v3270 = vpack.c.b16 %v3002, %v2998
        %v3271 = vpack.c.b16 %v3007, %v3003
        %v3272 = vpack.c.b16 %v3008, %v3004
        %v3273 = vpack.c.b16 %v3009, %v3005
        %v3274 = vpack.c.b16 %v3010, %v3006
        %v3275 = vpack.c.b16 %v3015, %v3011
        %v3276 = vpack.c.b16 %v3016, %v3012
        %v3277 = vpack.c.b16 %v3017, %v3013
        %v3278 = vpack.c.b16 %v3018, %v3014
        %v3279 = vpack.c.b16 %v3023, %v3019
        %v3280 = vpack.c.b16 %v3024, %v3020
        %v3281 = vpack.c.b16 %v3025, %v3021
        %v3282 = vpack.c.b16 %v3026, %v3022
        %3539 = vmatprep.subr.bf16.mxu0 %v3056
        %3540 = vmatpush1.bf16.msra.mxu0 %v3055
        %3541 = vmatprep.subr.bf16.mxu0 %v3052
        %3542 = vmatpush1.bf16.msra.mxu0 %v3051
        %3543 = vmatprep.subr.bf16.mxu0 %v3048
        %3544 = vmatpush1.bf16.msra.mxu0 %v3047
        %3545 = vmatprep.subr.bf16.mxu0 %v3044
        %3546 = vmatpush1.bf16.msra.mxu0 %v3043
        %3547 = vmatprep.subr.bf16.mxu0 %v3040
        %3548 = vmatpush1.bf16.msra.mxu0 %v3039
        %3549 = vmatprep.subr.bf16.mxu0 %v3036
        %3550 = vmatpush1.bf16.msra.mxu0 %v3035
        %3551 = vmatprep.subr.bf16.mxu0 %v3032
        %3552 = vmatpush1.bf16.msra.mxu0 %v3031
        %3553 = vmatprep.subr.bf16.mxu0 %v3028
        %3554 = vmatpush1.bf16.msra.mxu0 %v3027
        %3555 = vmatprep.subr.bf16.mxu0 %v3088
        %3556 = vmatpush2.bf16.msra.mxu0 %v3087
        %3557 = vmatprep.subr.bf16.mxu0 %v3084
        %3558 = vmatpush2.bf16.msra.mxu0 %v3083
        %3559 = vmatprep.subr.bf16.mxu0 %v3080
        %3560 = vmatpush2.bf16.msra.mxu0 %v3079
        %3561 = vmatprep.subr.bf16.mxu0 %v3076
        %3562 = vmatpush2.bf16.msra.mxu0 %v3075
        %3563 = vmatprep.subr.bf16.mxu0 %v3072
        %3564 = vmatpush2.bf16.msra.mxu0 %v3071
        %3565 = vmatprep.subr.bf16.mxu0 %v3068
        %3566 = vmatpush2.bf16.msra.mxu0 %v3067
        %3567 = vmatprep.subr.bf16.mxu0 %v3064
        %3568 = vmatpush2.bf16.msra.mxu0 %v3063
        %3569 = vmatprep.subr.bf16.mxu0 %v3060
        %3570 = vmatpush2.bf16.msra.mxu0 %v3059
        %3571 = vmatprep.mubr.bf16.mxu0 %v2239
        %3572 = vmatmul.mubr.bf16.gmra.mxu0 %v2225
        %v3573 = vpop.f32.mrf.mxu0
        %v3574 = vadd.f32 %v2184, %v3573
        %v3575 = vpop.f32.mrf.mxu0
        %v3576 = vadd.f32 %v2188, %v3575
        %v3577 = vpop.f32.mrf.mxu0
        %v3578 = vpop.f32.mrf.mxu0
        %3579 = vdwg.mxu0
        %3580 = vmatprep.subr.bf16.mxu0 %v3120
        %3581 = vmatpush1.bf16.msra.mxu0 %v3119
        %3582 = vmatprep.subr.bf16.mxu0 %v3116
        %3583 = vmatpush1.bf16.msra.mxu0 %v3115
        %3584 = vmatprep.subr.bf16.mxu0 %v3112
        %3585 = vmatpush1.bf16.msra.mxu0 %v3111
        %3586 = vmatprep.subr.bf16.mxu0 %v3108
        %3587 = vmatpush1.bf16.msra.mxu0 %v3107
        %3588 = vmatprep.subr.bf16.mxu0 %v3104
        %3589 = vmatpush1.bf16.msra.mxu0 %v3103
        %3590 = vmatprep.subr.bf16.mxu0 %v3100
        %3591 = vmatpush1.bf16.msra.mxu0 %v3099
        %3592 = vmatprep.subr.bf16.mxu0 %v3096
        %3593 = vmatpush1.bf16.msra.mxu0 %v3095
        %3594 = vmatprep.subr.bf16.mxu0 %v3092
        %3595 = vmatpush1.bf16.msra.mxu0 %v3091
        %3596 = vmatprep.subr.bf16.mxu0 %v3152
        %3597 = vmatpush2.bf16.msra.mxu0 %v3151
        %3598 = vmatprep.subr.bf16.mxu0 %v3148
        %3599 = vmatpush2.bf16.msra.mxu0 %v3147
        %3600 = vmatprep.subr.bf16.mxu0 %v3144
        %3601 = vmatpush2.bf16.msra.mxu0 %v3143
        %3602 = vmatprep.subr.bf16.mxu0 %v3140
        %3603 = vmatpush2.bf16.msra.mxu0 %v3139
        %3604 = vmatprep.subr.bf16.mxu0 %v3136
        %3605 = vmatpush2.bf16.msra.mxu0 %v3135
        %3606 = vmatprep.subr.bf16.mxu0 %v3132
        %3607 = vmatpush2.bf16.msra.mxu0 %v3131
        %3608 = vmatprep.subr.bf16.mxu0 %v3128
        %3609 = vmatpush2.bf16.msra.mxu0 %v3127
        %3610 = vmatprep.subr.bf16.mxu0 %v3124
        %3611 = vmatpush2.bf16.msra.mxu0 %v3123
        %3612 = vmatprep.mubr.bf16.mxu0 %v2249
        %3613 = vmatmul.mubr.bf16.gmra.mxu0 %v2247
        %v3614 = vpop.f32.mrf.mxu0
        %v3615 = vadd.f32 %v3574, %v3614
        %v3616 = vpop.f32.mrf.mxu0
        %v3617 = vadd.f32 %v3576, %v3616
        %v3618 = vpop.f32.mrf.mxu0
        %v3619 = vpop.f32.mrf.mxu0
        %3620 = vdwg.mxu0
        %3621 = vmatprep.subr.bf16.mxu0 %v3184
        %3622 = vmatpush1.bf16.msra.mxu0 %v3183
        %3623 = vmatprep.subr.bf16.mxu0 %v3180
        %3624 = vmatpush1.bf16.msra.mxu0 %v3179
        %3625 = vmatprep.subr.bf16.mxu0 %v3176
        %3626 = vmatpush1.bf16.msra.mxu0 %v3175
        %3627 = vmatprep.subr.bf16.mxu0 %v3172
        %3628 = vmatpush1.bf16.msra.mxu0 %v3171
        %3629 = vmatprep.subr.bf16.mxu0 %v3168
        %3630 = vmatpush1.bf16.msra.mxu0 %v3167
        %3631 = vmatprep.subr.bf16.mxu0 %v3164
        %3632 = vmatpush1.bf16.msra.mxu0 %v3163
        %3633 = vmatprep.subr.bf16.mxu0 %v3160
        %3634 = vmatpush1.bf16.msra.mxu0 %v3159
        %3635 = vmatprep.subr.bf16.mxu0 %v3156
        %3636 = vmatpush1.bf16.msra.mxu0 %v3155
        %3637 = vmatprep.subr.bf16.mxu0 %v3216
        %3638 = vmatpush2.bf16.msra.mxu0 %v3215
        %3639 = vmatprep.subr.bf16.mxu0 %v3212
        %3640 = vmatpush2.bf16.msra.mxu0 %v3211
        %3641 = vmatprep.subr.bf16.mxu0 %v3208
        %3642 = vmatpush2.bf16.msra.mxu0 %v3207
        %3643 = vmatprep.subr.bf16.mxu0 %v3204
        %3644 = vmatpush2.bf16.msra.mxu0 %v3203
        %3645 = vmatprep.subr.bf16.mxu0 %v3200
        %3646 = vmatpush2.bf16.msra.mxu0 %v3199
        %3647 = vmatprep.subr.bf16.mxu0 %v3196
        %3648 = vmatpush2.bf16.msra.mxu0 %v3195
        %3649 = vmatprep.subr.bf16.mxu0 %v3192
        %3650 = vmatpush2.bf16.msra.mxu0 %v3191
        %3651 = vmatprep.subr.bf16.mxu0 %v3188
        %3652 = vmatpush2.bf16.msra.mxu0 %v3187
        %3653 = vmatprep.mubr.bf16.mxu0 %v2246
        %3654 = vmatmul.mubr.bf16.gmra.mxu0 %v2232
        %v3655 = vpop.f32.mrf.mxu0
        %v3656 = vadd.f32 %v3615, %v3655
        %v3657 = vpop.f32.mrf.mxu0
        %v3658 = vadd.f32 %v3617, %v3657
        %v3659 = vpop.f32.mrf.mxu0
        %v3660 = vpop.f32.mrf.mxu0
        %3661 = vdwg.mxu0
        %3662 = vmatprep.subr.bf16.mxu0 %v3248
        %3663 = vmatpush1.bf16.msra.mxu0 %v3247
        %3664 = vmatprep.subr.bf16.mxu0 %v3244
        %3665 = vmatpush1.bf16.msra.mxu0 %v3243
        %3666 = vmatprep.subr.bf16.mxu0 %v3240
        %3667 = vmatpush1.bf16.msra.mxu0 %v3239
        %3668 = vmatprep.subr.bf16.mxu0 %v3236
        %3669 = vmatpush1.bf16.msra.mxu0 %v3235
        %3670 = vmatprep.subr.bf16.mxu0 %v3232
        %3671 = vmatpush1.bf16.msra.mxu0 %v3231
        %3672 = vmatprep.subr.bf16.mxu0 %v3228
        %3673 = vmatpush1.bf16.msra.mxu0 %v3227
        %3674 = vmatprep.subr.bf16.mxu0 %v3224
        %3675 = vmatpush1.bf16.msra.mxu0 %v3223
        %3676 = vmatprep.subr.bf16.mxu0 %v3220
        %3677 = vmatpush1.bf16.msra.mxu0 %v3219
        %3678 = vmatprep.subr.bf16.mxu0 %v3280
        %3679 = vmatpush2.bf16.msra.mxu0 %v3279
        %3680 = vmatprep.subr.bf16.mxu0 %v3276
        %3681 = vmatpush2.bf16.msra.mxu0 %v3275
        %3682 = vmatprep.subr.bf16.mxu0 %v3272
        %3683 = vmatpush2.bf16.msra.mxu0 %v3271
        %3684 = vmatprep.subr.bf16.mxu0 %v3268
        %3685 = vmatpush2.bf16.msra.mxu0 %v3267
        %3686 = vmatprep.subr.bf16.mxu0 %v3264
        %3687 = vmatpush2.bf16.msra.mxu0 %v3263
        %3688 = vmatprep.subr.bf16.mxu0 %v3260
        %3689 = vmatpush2.bf16.msra.mxu0 %v3259
        %3690 = vmatprep.subr.bf16.mxu0 %v3256
        %3691 = vmatpush2.bf16.msra.mxu0 %v3255
        %3692 = vmatprep.subr.bf16.mxu0 %v3252
        %3693 = vmatpush2.bf16.msra.mxu0 %v3251
        %3694 = vmatprep.mubr.bf16.mxu0 %v2250
        %3695 = vmatmul.mubr.bf16.gmra.mxu0 %v2248
        %v3696 = vpop.f32.mrf.mxu0
        %v3697 = vadd.f32 %v3656, %v3696
        %v3698 = vpop.f32.mrf.mxu0
        %v3699 = vadd.f32 %v3658, %v3698
        %v3700 = vpop.f32.mrf.mxu0
        %v3701 = vpop.f32.mrf.mxu0
        %3702 = vdwg.mxu0
        %3703 = vmatprep.subr.bf16.mxu0 %v3058
        %3704 = vmatpush1.bf16.msra.mxu0 %v3057
        %3705 = vmatprep.subr.bf16.mxu0 %v3054
        %3706 = vmatpush1.bf16.msra.mxu0 %v3053
        %3707 = vmatprep.subr.bf16.mxu0 %v3050
        %3708 = vmatpush1.bf16.msra.mxu0 %v3049
        %3709 = vmatprep.subr.bf16.mxu0 %v3046
        %3710 = vmatpush1.bf16.msra.mxu0 %v3045
        %3711 = vmatprep.subr.bf16.mxu0 %v3042
        %3712 = vmatpush1.bf16.msra.mxu0 %v3041
        %3713 = vmatprep.subr.bf16.mxu0 %v3038
        %3714 = vmatpush1.bf16.msra.mxu0 %v3037
        %3715 = vmatprep.subr.bf16.mxu0 %v3034
        %3716 = vmatpush1.bf16.msra.mxu0 %v3033
        %3717 = vmatprep.subr.bf16.mxu0 %v3030
        %3718 = vmatpush1.bf16.msra.mxu0 %v3029
        %3719 = vmatprep.subr.bf16.mxu0 %v3090
        %3720 = vmatpush2.bf16.msra.mxu0 %v3089
        %3721 = vmatprep.subr.bf16.mxu0 %v3086
        %3722 = vmatpush2.bf16.msra.mxu0 %v3085
        %3723 = vmatprep.subr.bf16.mxu0 %v3082
        %3724 = vmatpush2.bf16.msra.mxu0 %v3081
        %3725 = vmatprep.subr.bf16.mxu0 %v3078
        %3726 = vmatpush2.bf16.msra.mxu0 %v3077
        %3727 = vmatprep.subr.bf16.mxu0 %v3074
        %3728 = vmatpush2.bf16.msra.mxu0 %v3073
        %3729 = vmatprep.subr.bf16.mxu0 %v3070
        %3730 = vmatpush2.bf16.msra.mxu0 %v3069
        %3731 = vmatprep.subr.bf16.mxu0 %v3066
        %3732 = vmatpush2.bf16.msra.mxu0 %v3065
        %3733 = vmatprep.subr.bf16.mxu0 %v3062
        %3734 = vmatpush2.bf16.msra.mxu0 %v3061
        %3735 = vmatprep.mubr.bf16.mxu0 %v2239
        %3736 = vmatmul.mubr.bf16.gmra.mxu0 %v2225
        %v3737 = vpop.f32.mrf.mxu0
        %v3738 = vadd.f32 %v2192, %v3737
        %v3739 = vpop.f32.mrf.mxu0
        %v3740 = vadd.f32 %v2196, %v3739
        %v3741 = vpop.f32.mrf.mxu0
        %v3742 = vpop.f32.mrf.mxu0
        %3743 = vdwg.mxu0
        %3744 = vmatprep.subr.bf16.mxu0 %v3122
        %3745 = vmatpush1.bf16.msra.mxu0 %v3121
        %3746 = vmatprep.subr.bf16.mxu0 %v3118
        %3747 = vmatpush1.bf16.msra.mxu0 %v3117
        %3748 = vmatprep.subr.bf16.mxu0 %v3114
        %3749 = vmatpush1.bf16.msra.mxu0 %v3113
        %3750 = vmatprep.subr.bf16.mxu0 %v3110
        %3751 = vmatpush1.bf16.msra.mxu0 %v3109
        %3752 = vmatprep.subr.bf16.mxu0 %v3106
        %3753 = vmatpush1.bf16.msra.mxu0 %v3105
        %3754 = vmatprep.subr.bf16.mxu0 %v3102
        %3755 = vmatpush1.bf16.msra.mxu0 %v3101
        %3756 = vmatprep.subr.bf16.mxu0 %v3098
        %3757 = vmatpush1.bf16.msra.mxu0 %v3097
        %3758 = vmatprep.subr.bf16.mxu0 %v3094
        %3759 = vmatpush1.bf16.msra.mxu0 %v3093
        %3760 = vmatprep.subr.bf16.mxu0 %v3154
        %3761 = vmatpush2.bf16.msra.mxu0 %v3153
        %3762 = vmatprep.subr.bf16.mxu0 %v3150
        %3763 = vmatpush2.bf16.msra.mxu0 %v3149
        %3764 = vmatprep.subr.bf16.mxu0 %v3146
        %3765 = vmatpush2.bf16.msra.mxu0 %v3145
        %3766 = vmatprep.subr.bf16.mxu0 %v3142
        %3767 = vmatpush2.bf16.msra.mxu0 %v3141
        %3768 = vmatprep.subr.bf16.mxu0 %v3138
        %3769 = vmatpush2.bf16.msra.mxu0 %v3137
        %3770 = vmatprep.subr.bf16.mxu0 %v3134
        %3771 = vmatpush2.bf16.msra.mxu0 %v3133
        %3772 = vmatprep.subr.bf16.mxu0 %v3130
        %3773 = vmatpush2.bf16.msra.mxu0 %v3129
        %3774 = vmatprep.subr.bf16.mxu0 %v3126
        %3775 = vmatpush2.bf16.msra.mxu0 %v3125
        %3776 = vmatprep.mubr.bf16.mxu0 %v2249
        %3777 = vmatmul.mubr.bf16.gmra.mxu0 %v2247
        %v3778 = vpop.f32.mrf.mxu0
        %v3779 = vadd.f32 %v3738, %v3778
        %v3780 = vpop.f32.mrf.mxu0
        %v3781 = vadd.f32 %v3740, %v3780
        %v3782 = vpop.f32.mrf.mxu0
        %v3783 = vpop.f32.mrf.mxu0
        %3784 = vdwg.mxu0
        %3785 = vmatprep.subr.bf16.mxu0 %v3186
        %3786 = vmatpush1.bf16.msra.mxu0 %v3185
        %3787 = vmatprep.subr.bf16.mxu0 %v3182
        %3788 = vmatpush1.bf16.msra.mxu0 %v3181
        %3789 = vmatprep.subr.bf16.mxu0 %v3178
        %3790 = vmatpush1.bf16.msra.mxu0 %v3177
        %3791 = vmatprep.subr.bf16.mxu0 %v3174
        %3792 = vmatpush1.bf16.msra.mxu0 %v3173
        %3793 = vmatprep.subr.bf16.mxu0 %v3170
        %3794 = vmatpush1.bf16.msra.mxu0 %v3169
        %3795 = vmatprep.subr.bf16.mxu0 %v3166
        %3796 = vmatpush1.bf16.msra.mxu0 %v3165
        %3797 = vmatprep.subr.bf16.mxu0 %v3162
        %3798 = vmatpush1.bf16.msra.mxu0 %v3161
        %3799 = vmatprep.subr.bf16.mxu0 %v3158
        %3800 = vmatpush1.bf16.msra.mxu0 %v3157
        %3801 = vmatprep.subr.bf16.mxu0 %v3218
        %3802 = vmatpush2.bf16.msra.mxu0 %v3217
        %3803 = vmatprep.subr.bf16.mxu0 %v3214
        %3804 = vmatpush2.bf16.msra.mxu0 %v3213
        %3805 = vmatprep.subr.bf16.mxu0 %v3210
        %3806 = vmatpush2.bf16.msra.mxu0 %v3209
        %3807 = vmatprep.subr.bf16.mxu0 %v3206
        %3808 = vmatpush2.bf16.msra.mxu0 %v3205
        %3809 = vmatprep.subr.bf16.mxu0 %v3202
        %3810 = vmatpush2.bf16.msra.mxu0 %v3201
        %3811 = vmatprep.subr.bf16.mxu0 %v3198
        %3812 = vmatpush2.bf16.msra.mxu0 %v3197
        %3813 = vmatprep.subr.bf16.mxu0 %v3194
        %3814 = vmatpush2.bf16.msra.mxu0 %v3193
        %3815 = vmatprep.subr.bf16.mxu0 %v3190
        %3816 = vmatpush2.bf16.msra.mxu0 %v3189
        %3817 = vmatprep.mubr.bf16.mxu0 %v2246
        %3818 = vmatmul.mubr.bf16.gmra.mxu0 %v2232
        %v3819 = vpop.f32.mrf.mxu0
        %v3820 = vadd.f32 %v3779, %v3819
        %v3821 = vpop.f32.mrf.mxu0
        %v3822 = vadd.f32 %v3781, %v3821
        %v3823 = vpop.f32.mrf.mxu0
        %v3824 = vpop.f32.mrf.mxu0
        %3825 = vdwg.mxu0
        %3826 = vmatprep.subr.bf16.mxu0 %v3250
        %3827 = vmatpush1.bf16.msra.mxu0 %v3249
        %3828 = vmatprep.subr.bf16.mxu0 %v3246
        %3829 = vmatpush1.bf16.msra.mxu0 %v3245
        %3830 = vmatprep.subr.bf16.mxu0 %v3242
        %3831 = vmatpush1.bf16.msra.mxu0 %v3241
        %3832 = vmatprep.subr.bf16.mxu0 %v3238
        %3833 = vmatpush1.bf16.msra.mxu0 %v3237
        %3834 = vmatprep.subr.bf16.mxu0 %v3234
        %3835 = vmatpush1.bf16.msra.mxu0 %v3233
        %3836 = vmatprep.subr.bf16.mxu0 %v3230
        %3837 = vmatpush1.bf16.msra.mxu0 %v3229
        %3838 = vmatprep.subr.bf16.mxu0 %v3226
        %3839 = vmatpush1.bf16.msra.mxu0 %v3225
        %3840 = vmatprep.subr.bf16.mxu0 %v3222
        %3841 = vmatpush1.bf16.msra.mxu0 %v3221
        %3842 = vmatprep.subr.bf16.mxu0 %v3282
        %3843 = vmatpush2.bf16.msra.mxu0 %v3281
        %3844 = vmatprep.subr.bf16.mxu0 %v3278
        %3845 = vmatpush2.bf16.msra.mxu0 %v3277
        %3846 = vmatprep.subr.bf16.mxu0 %v3274
        %3847 = vmatpush2.bf16.msra.mxu0 %v3273
        %3848 = vmatprep.subr.bf16.mxu0 %v3270
        %3849 = vmatpush2.bf16.msra.mxu0 %v3269
        %3850 = vmatprep.subr.bf16.mxu0 %v3266
        %3851 = vmatpush2.bf16.msra.mxu0 %v3265
        %3852 = vmatprep.subr.bf16.mxu0 %v3262
        %3853 = vmatpush2.bf16.msra.mxu0 %v3261
        %3854 = vmatprep.subr.bf16.mxu0 %v3258
        %3855 = vmatpush2.bf16.msra.mxu0 %v3257
        %3856 = vmatprep.subr.bf16.mxu0 %v3254
        %3857 = vmatpush2.bf16.msra.mxu0 %v3253
        %3858 = vmatprep.mubr.bf16.mxu0 %v2250
        %3859 = vmatmul.mubr.bf16.gmra.mxu0 %v2248
        %v3860 = vpop.f32.mrf.mxu0
        %v3861 = vadd.f32 %v3820, %v3860
        %v3862 = vpop.f32.mrf.mxu0
        %v3863 = vadd.f32 %v3822, %v3862
        %v3864 = vpop.f32.mrf.mxu0
        %v3865 = vpop.f32.mrf.mxu0
        %3866 = vdwg.mxu0
        %v3867 = vmax.f32 %v3697, 0.0
        %v3868 = vmax.f32 %v3699, 0.0
        %v3869 = vmax.f32 %v3861, 0.0
        %v3870 = vmax.f32 %v3863, 0.0
        %v3871 = vld [vmem:[#allocation3] sm:$0x3]
        %v3872 = vpack.c.bf16 %v3867, %v3867
        %v3873 = vpack.c.bf16 %v3868, %v3868
        %v3874 = vpack.c.bf16 %v3869, %v3869
        %v3875 = vpack.c.bf16 %v3870, %v3870
        %v3876 = vld [vmem:[%s570] sm:$0xf]
        %v3877 = vld [vmem:[%s570 + $0x4] sm:$0xf]
        %v3878 = vld [vmem:[%s570 + $0x8] sm:$0xf]
        %v3879 = vld [vmem:[%s570 + $0xc] sm:$0xf]
        %v3880 = vld [vmem:[%s570 + $0x10] sm:$0xf]
        %v3881 = vld [vmem:[%s570 + $0x14] sm:$0xf]
        %v3882 = vld [vmem:[%s570 + $0x18] sm:$0xf]
        %v3883 = vld [vmem:[%s570 + $0x1c] sm:$0xf]
        %v3884 = vld [vmem:[%s570 + $0x20] sm:$0xf]
        %v3885 = vld [vmem:[%s570 + $0x24] sm:$0xf]
        %v3886 = vld [vmem:[%s570 + $0x28] sm:$0xf]
        %v3887 = vld [vmem:[%s570 + $0x2c] sm:$0xf]
        %v3888 = vld [vmem:[%s570 + $0x30] sm:$0xf]
        %v3889 = vld [vmem:[%s570 + $0x34] sm:$0xf]
        %v3890 = vld [vmem:[%s570 + $0x38] sm:$0xf]
        %v3891 = vld [vmem:[%s570 + $0x3c] sm:$0xf]
        %v3892 = vld [vmem:[%s570 + $0x40] sm:$0xf]
        %v3893 = vld [vmem:[%s570 + $0x44] sm:$0xf]
        %v3894 = vld [vmem:[%s570 + $0x48] sm:$0xf]
        %v3895 = vld [vmem:[%s570 + $0x4c] sm:$0xf]
        %v3896 = vld [vmem:[%s570 + $0x50] sm:$0xf]
        %v3897 = vld [vmem:[%s570 + $0x54] sm:$0xf]
        %v3898 = vld [vmem:[%s570 + $0x58] sm:$0xf]
        %v3899 = vld [vmem:[%s570 + $0x5c] sm:$0xf]
        %v3900 = vld [vmem:[%s570 + $0x60] sm:$0xf]
        %v3901 = vld [vmem:[%s570 + $0x64] sm:$0xf]
        %v3902 = vld [vmem:[%s570 + $0x68] sm:$0xf]
        %v3903 = vld [vmem:[%s570 + $0x6c] sm:$0xf]
        %v3904 = vld [vmem:[%s570 + $0x70] sm:$0xf]
        %v3905 = vld [vmem:[%s570 + $0x74] sm:$0xf]
        %v3906 = vld [vmem:[%s570 + $0x78] sm:$0xf]
        %v3907 = vld [vmem:[%s570 + $0x7c] sm:$0xf]
        %v3908 = vld [vmem:[%s570 + $0x80] sm:$0xf]
        %v3909 = vld [vmem:[%s570 + $0x84] sm:$0xf]
        %v3910 = vld [vmem:[%s570 + $0x88] sm:$0xf]
        %v3911 = vld [vmem:[%s570 + $0x8c] sm:$0xf]
        %v3912 = vld [vmem:[%s570 + $0x90] sm:$0xf]
        %v3913 = vld [vmem:[%s570 + $0x94] sm:$0xf]
        %v3914 = vld [vmem:[%s570 + $0x98] sm:$0xf]
        %v3915 = vld [vmem:[%s570 + $0x9c] sm:$0xf]
        %v3916 = vld [vmem:[%s570 + $0xa0] sm:$0xf]
        %v3917 = vld [vmem:[%s570 + $0xa4] sm:$0xf]
        %v3918 = vld [vmem:[%s570 + $0xa8] sm:$0xf]
        %v3919 = vld [vmem:[%s570 + $0xac] sm:$0xf]
        %v3920 = vld [vmem:[%s570 + $0xb0] sm:$0xf]
        %v3921 = vld [vmem:[%s570 + $0xb4] sm:$0xf]
        %v3922 = vld [vmem:[%s570 + $0xb8] sm:$0xf]
        %v3923 = vld [vmem:[%s570 + $0xbc] sm:$0xf]
        %v3924 = vld [vmem:[%s570 + $0xc0] sm:$0xf]
        %v3925 = vld [vmem:[%s570 + $0xc4] sm:$0xf]
        %v3926 = vld [vmem:[%s570 + $0xc8] sm:$0xf]
        %v3927 = vld [vmem:[%s570 + $0xcc] sm:$0xf]
        %v3928 = vld [vmem:[%s570 + $0xd0] sm:$0xf]
        %v3929 = vld [vmem:[%s570 + $0xd4] sm:$0xf]
        %v3930 = vld [vmem:[%s570 + $0xd8] sm:$0xf]
        %v3931 = vld [vmem:[%s570 + $0xdc] sm:$0xf]
        %v3932 = vld [vmem:[%s570 + $0xe0] sm:$0xf]
        %v3933 = vld [vmem:[%s570 + $0xe4] sm:$0xf]
        %v3934 = vld [vmem:[%s570 + $0xe8] sm:$0xf]
        %v3935 = vld [vmem:[%s570 + $0xec] sm:$0xf]
        %v3936 = vld [vmem:[%s570 + $0xf0] sm:$0xf]
        %v3937 = vld [vmem:[%s570 + $0xf4] sm:$0xf]
        %v3938 = vld [vmem:[%s570 + $0xf8] sm:$0xf]
        %v3939 = vld [vmem:[%s570 + $0xfc] sm:$0xf]
        %v4004 = vunpack.c.l.b16 %v3876
        %v4005 = vunpack.c.l.b16 %v3877
        %v4006 = vunpack.c.l.b16 %v3878
        %v4007 = vunpack.c.l.b16 %v3879
        %v4008 = vunpack.c.l.b16 %v3880
        %v4009 = vunpack.c.l.b16 %v3881
        %v4010 = vunpack.c.l.b16 %v3882
        %v4011 = vunpack.c.l.b16 %v3883
        %v4012 = vunpack.c.l.b16 %v3884
        %v4013 = vunpack.c.l.b16 %v3885
        %v4014 = vunpack.c.l.b16 %v3886
        %v4015 = vunpack.c.l.b16 %v3887
        %v4016 = vunpack.c.l.b16 %v3888
        %v4017 = vunpack.c.l.b16 %v3889
        %v4018 = vunpack.c.l.b16 %v3890
        %v4019 = vunpack.c.l.b16 %v3891
        %v4020 = vunpack.c.l.b16 %v3892
        %v4021 = vunpack.c.l.b16 %v3893
        %v4022 = vunpack.c.l.b16 %v3894
        %v4023 = vunpack.c.l.b16 %v3895
        %v4024 = vunpack.c.l.b16 %v3896
        %v4025 = vunpack.c.l.b16 %v3897
        %v4026 = vunpack.c.l.b16 %v3898
        %v4027 = vunpack.c.l.b16 %v3899
        %v4028 = vunpack.c.l.b16 %v3900
        %v4029 = vunpack.c.l.b16 %v3901
        %v4030 = vunpack.c.l.b16 %v3902
        %v4031 = vunpack.c.l.b16 %v3903
        %v4032 = vunpack.c.l.b16 %v3904
        %v4033 = vunpack.c.l.b16 %v3905
        %v4034 = vunpack.c.l.b16 %v3906
        %v4035 = vunpack.c.l.b16 %v3907
        %v4036 = vunpack.c.l.b16 %v3908
        %v4037 = vunpack.c.l.b16 %v3909
        %v4038 = vunpack.c.l.b16 %v3910
        %v4039 = vunpack.c.l.b16 %v3911
        %v4040 = vunpack.c.l.b16 %v3912
        %v4041 = vunpack.c.l.b16 %v3913
        %v4042 = vunpack.c.l.b16 %v3914
        %v4043 = vunpack.c.l.b16 %v3915
        %v4044 = vunpack.c.l.b16 %v3916
        %v4045 = vunpack.c.l.b16 %v3917
        %v4046 = vunpack.c.l.b16 %v3918
        %v4047 = vunpack.c.l.b16 %v3919
        %v4048 = vunpack.c.l.b16 %v3920
        %v4049 = vunpack.c.l.b16 %v3921
        %v4050 = vunpack.c.l.b16 %v3922
        %v4051 = vunpack.c.l.b16 %v3923
        %v4052 = vunpack.c.l.b16 %v3924
        %v4053 = vunpack.c.l.b16 %v3925
        %v4054 = vunpack.c.l.b16 %v3926
        %v4055 = vunpack.c.l.b16 %v3927
        %v4056 = vunpack.c.l.b16 %v3928
        %v4057 = vunpack.c.l.b16 %v3929
        %v4058 = vunpack.c.l.b16 %v3930
        %v4059 = vunpack.c.l.b16 %v3931
        %v4060 = vunpack.c.l.b16 %v3932
        %v4061 = vunpack.c.l.b16 %v3933
        %v4062 = vunpack.c.l.b16 %v3934
        %v4063 = vunpack.c.l.b16 %v3935
        %v4064 = vunpack.c.l.b16 %v3936
        %v4065 = vunpack.c.l.b16 %v3937
        %v4066 = vunpack.c.l.b16 %v3938
        %v4067 = vunpack.c.l.b16 %v3939
        %v4068 = vpack.c.b16 %v4005, %v4004
        %v4069 = vpack.c.b16 %v4007, %v4006
        %v4070 = vpack.c.b16 %v4009, %v4008
        %v4071 = vpack.c.b16 %v4011, %v4010
        %v4072 = vpack.c.b16 %v4013, %v4012
        %v4073 = vpack.c.b16 %v4015, %v4014
        %v4074 = vpack.c.b16 %v4017, %v4016
        %v4075 = vpack.c.b16 %v4019, %v4018
        %v4076 = vpack.c.b16 %v4021, %v4020
        %v4077 = vpack.c.b16 %v4023, %v4022
        %v4078 = vpack.c.b16 %v4025, %v4024
        %v4079 = vpack.c.b16 %v4027, %v4026
        %v4080 = vpack.c.b16 %v4029, %v4028
        %v4081 = vpack.c.b16 %v4031, %v4030
        %v4082 = vpack.c.b16 %v4033, %v4032
        %v4083 = vpack.c.b16 %v4035, %v4034
        %v4084 = vpack.c.b16 %v4037, %v4036
        %v4085 = vpack.c.b16 %v4039, %v4038
        %v4086 = vpack.c.b16 %v4041, %v4040
        %v4087 = vpack.c.b16 %v4043, %v4042
        %v4088 = vpack.c.b16 %v4045, %v4044
        %v4089 = vpack.c.b16 %v4047, %v4046
        %v4090 = vpack.c.b16 %v4049, %v4048
        %v4091 = vpack.c.b16 %v4051, %v4050
        %v4092 = vpack.c.b16 %v4053, %v4052
        %v4093 = vpack.c.b16 %v4055, %v4054
        %v4094 = vpack.c.b16 %v4057, %v4056
        %v4095 = vpack.c.b16 %v4059, %v4058
        %v4096 = vpack.c.b16 %v4061, %v4060
        %v4097 = vpack.c.b16 %v4063, %v4062
        %v4098 = vpack.c.b16 %v4065, %v4064
        %v4099 = vpack.c.b16 %v4067, %v4066
        %4132 = vmatprep.subr.bf16.mxu0 0
        %4133 = vmatpush1.bf16.msra.mxu0 %v4075
        %4134 = vmatprep.subr.bf16.mxu0 0
        %4135 = vmatpush1.bf16.msra.mxu0 %v4074
        %4136 = vmatprep.subr.bf16.mxu0 0
        %4137 = vmatpush1.bf16.msra.mxu0 %v4073
        %4138 = vmatprep.subr.bf16.mxu0 0
        %4139 = vmatpush1.bf16.msra.mxu0 %v4072
        %4140 = vmatprep.subr.bf16.mxu0 0
        %4141 = vmatpush1.bf16.msra.mxu0 %v4071
        %4142 = vmatprep.subr.bf16.mxu0 0
        %4143 = vmatpush1.bf16.msra.mxu0 %v4070
        %4144 = vmatprep.subr.bf16.mxu0 0
        %4145 = vmatpush1.bf16.msra.mxu0 %v4069
        %4146 = vmatprep.subr.bf16.mxu0 0
        %4147 = vmatpush1.bf16.msra.mxu0 %v4068
        %4148 = vmatprep.subr.bf16.mxu0 0
        %4149 = vmatpush2.bf16.msra.mxu0 %v4083
        %4150 = vmatprep.subr.bf16.mxu0 0
        %4151 = vmatpush2.bf16.msra.mxu0 %v4082
        %4152 = vmatprep.subr.bf16.mxu0 0
        %4153 = vmatpush2.bf16.msra.mxu0 %v4081
        %4154 = vmatprep.subr.bf16.mxu0 0
        %4155 = vmatpush2.bf16.msra.mxu0 %v4080
        %4156 = vmatprep.subr.bf16.mxu0 0
        %4157 = vmatpush2.bf16.msra.mxu0 %v4079
        %4158 = vmatprep.subr.bf16.mxu0 0
        %4159 = vmatpush2.bf16.msra.mxu0 %v4078
        %4160 = vmatprep.subr.bf16.mxu0 0
        %4161 = vmatpush2.bf16.msra.mxu0 %v4077
        %4162 = vmatprep.subr.bf16.mxu0 0
        %4163 = vmatpush2.bf16.msra.mxu0 %v4076
        %4164 = vmatprep.mubr.bf16.mxu0 %v3873
        %4165 = vmatmul.mubr.bf16.gmra.mxu0 %v3872
        %v4166 = vpop.f32.mrf.mxu0
        %v4167 = vadd.f32 0.0, %v4166
        %v4168 = vpop.f32.mrf.mxu0
        %v4169 = vpop.f32.mrf.mxu0
        %v4170 = vpop.f32.mrf.mxu0
        %4171 = vdwg.mxu0
        %4172 = vmatprep.subr.bf16.mxu0 0
        %4173 = vmatpush1.bf16.msra.mxu0 %v4091
        %4174 = vmatprep.subr.bf16.mxu0 0
        %4175 = vmatpush1.bf16.msra.mxu0 %v4090
        %4176 = vmatprep.subr.bf16.mxu0 0
        %4177 = vmatpush1.bf16.msra.mxu0 %v4089
        %4178 = vmatprep.subr.bf16.mxu0 0
        %4179 = vmatpush1.bf16.msra.mxu0 %v4088
        %4180 = vmatprep.subr.bf16.mxu0 0
        %4181 = vmatpush1.bf16.msra.mxu0 %v4087
        %4182 = vmatprep.subr.bf16.mxu0 0
        %4183 = vmatpush1.bf16.msra.mxu0 %v4086
        %4184 = vmatprep.subr.bf16.mxu0 0
        %4185 = vmatpush1.bf16.msra.mxu0 %v4085
        %4186 = vmatprep.subr.bf16.mxu0 0
        %4187 = vmatpush1.bf16.msra.mxu0 %v4084
        %4188 = vmatprep.subr.bf16.mxu0 0
        %4189 = vmatpush2.bf16.msra.mxu0 %v4099
        %4190 = vmatprep.subr.bf16.mxu0 0
        %4191 = vmatpush2.bf16.msra.mxu0 %v4098
        %4192 = vmatprep.subr.bf16.mxu0 0
        %4193 = vmatpush2.bf16.msra.mxu0 %v4097
        %4194 = vmatprep.subr.bf16.mxu0 0
        %4195 = vmatpush2.bf16.msra.mxu0 %v4096
        %4196 = vmatprep.subr.bf16.mxu0 0
        %4197 = vmatpush2.bf16.msra.mxu0 %v4095
        %4198 = vmatprep.subr.bf16.mxu0 0
        %4199 = vmatpush2.bf16.msra.mxu0 %v4094
        %4200 = vmatprep.subr.bf16.mxu0 0
        %4201 = vmatpush2.bf16.msra.mxu0 %v4093
        %4202 = vmatprep.subr.bf16.mxu0 0
        %4203 = vmatpush2.bf16.msra.mxu0 %v4092
        %4204 = vmatprep.mubr.bf16.mxu0 %v3875
        %4205 = vmatmul.mubr.bf16.gmra.mxu0 %v3874
        %v4206 = vpop.f32.mrf.mxu0
        %v4207 = vadd.f32 %v4167, %v4206
        %v4208 = vpop.f32.mrf.mxu0
        %v4209 = vpop.f32.mrf.mxu0
        %v4210 = vpop.f32.mrf.mxu0
        %4211 = vdwg.mxu0
        %v4212 = vadd.f32 %v3871, %v4207
        %vm4213 = vcmask 58368
        %4214 = vst.msk [vmem:[#allocation3] sm:$0x3] %vm4213, %v4212
        %p4215 = scmp.eq.s32.totalorder %s38, 3
        // Predicated region
        $region97: #{tpu_custom_call.1} parent=59 // pred_check
          %p4216 = pneg %p4215
        $region98: #{tpu_custom_call.1} parent=59 // pred_check_branch
          %4218 = sbr.rel (%p4216) target = $region100
        $region99: #{tpu_custom_call.1} parent=59 // pred_region
          %v4219 = vld [vmem:[#allocation3] sm:$0x3]
          %v4220 = vld [vmem:[%s505] sm:$0x1]
          %v4222 = vlaneseq
          %v4223 = vshrl.u32 %v4222, 7
          %v4224 = vsub.s32 0, %v4223
          %v4225 = vrot.slane %v4220, %v4224
          %v4227 = vadd.f32 %v4219, %v4225
          %4228 = vst.msk [vmem:[%s559] sm:$0x3] %vm4213, %v4227
        $region100: #{tpu_custom_call.1} parent=59 // pred_fallthru
          _
        %s4229 = sand.u32 %s289, 1
        %s4230 = scalar_lea.sflag [#allocation6], %s4229
        %s4231 = sand.u32 %s289, 1
        %s4232 = smul.addr %s4231, 2
        %s4233 = scalar_lea.vmem [#allocation18], %s4232
        // Predicated region
        $region101: #{tpu_custom_call.1} parent=59 // pred_check
          %p4234 = pneg %p299
        $region102: #{tpu_custom_call.1} parent=59 // pred_check_branch
          %4236 = sbr.rel (%p4234) target = $region104
        $region103: #{tpu_custom_call.1} parent=59 // pred_region
          %s4238 = ssub.s32 32, 32
          %4239 = vsyncadd %s4230, %s4238
          %s4240 = smul.addr %s37, 32
          %s4241 = scalar_lea.hbm %s10, %s4240
          %s4243 = sshll.u32 %s4233, 4
          %s4244 = int_to_ptr.vmem [resolvable:$true] %s4243
          %4246 = dma.vmem_to_hbm [thread:$0]  %s4244, 32, %s4241, %s4230
        $region104: #{tpu_custom_call.1} parent=59 // pred_fallthru
          _
      $region60: #{tpu_custom_call.1} parent=5 // pred_fallthru
        _
      %p4247 = scmp.le.s32.totalorder 2, %s28
      // Predicated region
      $region105: #{tpu_custom_call.1} parent=5 // pred_check
        %p4248 = pneg %p4247
      $region106: #{tpu_custom_call.1} parent=5 // pred_check_branch
        %4250 = sbr.rel (%p4248) target = $region108
      $region107: #{tpu_custom_call.1} parent=5 // pred_region
        %s4251 = ssub.s32 %s28, 2
        // Predicated region
        $region109: #{tpu_custom_call.1} parent=107 // pred_check
          %p4252 = pneg %p305
        $region110: #{tpu_custom_call.1} parent=107 // pred_check_branch
          %4254 = sbr.rel (%p4252) target = $region112
        $region111: #{tpu_custom_call.1} parent=107 // pred_region
          %s4255 = sand.u32 %s290, 1
          %s4256 = scalar_lea.sflag [#allocation6], %s4255
          %s4257 = sand.u32 %s290, 1
          %s4258 = smul.addr %s4257, 2
          %s4259 = scalar_lea.vmem [#allocation18], %s4258
          %4260 = dma.done %s4256, 32
        $region112: #{tpu_custom_call.1} parent=107 // pred_fallthru
          _
      $region108: #{tpu_custom_call.1} parent=5 // pred_fallthru
        _
    $region6: #{tpu_custom_call.1} parent=1 // loop_footer
      %s32 = sadd.s32 1, %s28
    $region7: #{tpu_custom_call.1} parent=1 // loop_footer_branch
      %27 = sbr.rel target = $region3
    $region8: #{tpu_custom_call.1} parent=1 // loop_exit
      _
    %4261 = vsyncpa [#allocation5], 1
    %s4262 = scalar_lea.sflag [#allocation5], 1
    %4263 = vsyncpa %s4262, 1
    %4264 = vsyncpa [#allocation8], 1
    %4265 = vsyncpa [#allocation11], 1
    %4266 = vsyncpa [#allocation14], 1
    %s4267 = scalar_lea.sflag [#allocation14], 1
    %4268 = vsyncpa %s4267, 1
    %4269 = vsyncpa [#allocation17], 1
    %s4270 = scalar_lea.sflag [#allocation17], 1
    %4271 = vsyncpa %s4270, 1
    %4272 = vsyncpa [#allocation6], 1
    %s4273 = scalar_lea.sflag [#allocation6], 1
    %4274 = vsyncpa %s4273, 1

</llo_original>
